<compile_context>
chip_gen: v7x
topology: tpu7x:2x2x1
jax: 0.10.0
libtpu: 0.0.40
codegen_flags: <defaults>
</compile_context>

<pallas_src>
import re

import jax
import jax.numpy as jnp
from jax.experimental import pallas as pl
from jax.experimental.pallas import tpu as pltpu


def lstm_model_kernel(x_ref, w0x_ref, w0h_ref, b0_ref, w1x_ref, w1h_ref, b1_ref,
                      wcls_ref, out_ref):
    """2-layer LSTM recurrence + bias-free classifier for one batch block.

    x_ref:    (S, Bb, D)   time-major input block (compute dtype)
    w0x_ref:  (D, 4H)      layer-0 input->gates weight (pre-transposed)
    w0h_ref:  (H, 4H)      layer-0 hidden->gates weight (pre-transposed)
    b0_ref:   (1, 4H)      layer-0 combined bias (b_ih + b_hh), f32
    w1x_ref:  (H, 4H)      layer-1 input->gates weight (pre-transposed)
    w1h_ref:  (H, 4H)      layer-1 hidden->gates weight (pre-transposed)
    b1_ref:   (1, 4H)      layer-1 combined bias, f32
    wcls_ref: (1, H)       classifier weight (n_classes = 1, no bias), f32
    out_ref:  (Bb, S)      per-timestep classifier output, f32
    """
    S, Bb, D = x_ref.shape
    H = w0h_ref.shape[0]
    cdt = w0h_ref.dtype            # matmul compute dtype (f32 or bf16)
    f32 = jnp.float32

    # --- hoisted layer-0 input projection for all timesteps: one big matmul,
    #     with the combined layer-0 bias folded in (single broadcast of b0). ---
    x2d = x_ref[...].reshape(S * Bb, D)
    xp0 = (jnp.dot(x2d, w0x_ref[...], preferred_element_type=f32)
           + b0_ref[...]).reshape(S, Bb, 4 * H)

    # --- hoist the remaining broadcasts / weight loads off the serial path. ---
    b1b = jnp.broadcast_to(b1_ref[...], (Bb, 4 * H))
    wclsb = jnp.broadcast_to(wcls_ref[...], (Bb, H))
    w0h = w0h_ref[...]
    w1x = w1x_ref[...]
    w1h = w1h_ref[...]

    h0 = jnp.zeros((Bb, H), f32)
    c0 = jnp.zeros((Bb, H), f32)
    h1 = jnp.zeros((Bb, H), f32)
    c1 = jnp.zeros((Bb, H), f32)

    def lstm_cell(gates, c_prev):
        # Full-tile EUP passes over the whole (Bb, 4H) vreg, then slice the
        # already-activated gates (PyTorch gate order [i, f, g, o]).
        # sigmoid via exp + approx reciprocal: stays on the EUP approx path and
        # drops the Newton-refinement VPU ops from the per-step serial chain.
        sig = pl.reciprocal(1.0 + jnp.exp(-gates), approx=True)
        th = jnp.tanh(gates)
        i_g = sig[:, 0:H]
        f_g = sig[:, H:2 * H]
        g_g = th[:, 2 * H:3 * H]
        o_g = sig[:, 3 * H:4 * H]
        c_new = f_g * c_prev + i_g * g_g
        h_new = o_g * jnp.tanh(c_new)
        return h_new, c_new

    out_cols = []
    # S is small and static -> full unroll so MXU / EUP / VPU work from adjacent
    # steps and layers can be interleaved by the scheduler.
    # TODO(synk): pin the loop-invariant w0h / w1x / w1h in MXU weight staging
    # registers via pltpu.matmul_push_rhs / matmul_acc_lhs / matmul_pop so only
    # the (Bb, K) LHS streams each step (saves the implicit RHS re-push per dot).
    # TODO(synk): for large S, switch to lax.fori_loop(..., unroll=4) with a
    # time-chunked, double-buffered VMEM scratch for xp0 (bounds residency for
    # v7x's 64 MiB VMEM) and set vmem_limit_bytes accordingly.
    for t in range(S):
        # layer 0: input projection precomputed; only the recurrent matmul is left
        # on the serial critical path.
        g0 = xp0[t] + jnp.dot(h0.astype(cdt), w0h, preferred_element_type=f32)
        h0, c0 = lstm_cell(g0, c0)

        # layer 1: two matmuls (no concatenate). dot(h1_prev, w1h) depends only on
        # the previous step, so it is scheduled off the critical chain; on v7x the
        # two partials accumulate in the MRB.
        g1 = (jnp.dot(h0.astype(cdt), w1x, preferred_element_type=f32)
              + jnp.dot(h1.astype(cdt), w1h, preferred_element_type=f32)
              + b1b)
        h1, c1 = lstm_cell(g1, c1)

        # fused bias-free classifier (Linear(H -> 1)): lane reduce -> (Bb, 1).
        # Off the critical path (fills XLU slack); revisit only if a bundle dump
        # shows XLU contention.
        out_cols.append(jnp.sum(h1 * wclsb, axis=-1, keepdims=True))

    # one lane-concatenated store of the whole (Bb, S) output block.
    out_ref[...] = jnp.concatenate(out_cols, axis=-1)


def _tpu_generation() -> int:
    """Best-effort TPU generation number (0 if not a TPU / unknown).

    Parses the first digit group of device_kind so 'TPU v5 lite', 'TPU v6e',
    and 'TPU7x' are all classified correctly (substring 'v7' checks are not).
    """
    try:
        dev = jax.devices()[0]
        if dev.platform != "tpu":
            return 0
        m = re.search(r"(\d+)", dev.device_kind.lower())
        return int(m.group(1)) if m else 0
    except Exception:
        return 0


def lstm_model_forward(x, params, w_cls, *, use_bf16=None, num_batch_blocks=None):
    """x: (B, S, D) batch-first, like torch. Returns (B, S) float32."""
    B, S, D = x.shape
    (wih0, whh0, b0), (wih1, whh1, b1) = params
    H = whh0.shape[0]

    gen = _tpu_generation()
    if use_bf16 is None:
        # All current TPU MXUs (v5e / v6e / v7x) are bf16-native with f32
        # accumulation; cell state and nonlinearities stay f32 in the kernel.
        use_bf16 = gen >= 4
    cdt = jnp.bfloat16 if use_bf16 else jnp.float32

    if num_batch_blocks is None:
        # Only split across v7x's two TensorCores when each per-core block is wide
        # enough to be throughput-bound; splitting a tiny batch just duplicates
        # weight DMAs and adds grid overhead without shortening the serial chain.
        num_batch_blocks = 2 if (gen >= 7 and B % 16 == 0 and (B // 2) >= 64) else 1
    nb = num_batch_blocks
    assert B % nb == 0, "batch must divide evenly across batch blocks"
    Bb = B // nb
    if nb > 1:
        assert Bb % 8 == 0, "per-core batch block must be a multiple of 8 sublanes"

    # time-major input; matmul operands in the compute dtype; biases stay f32.
    x_t = jnp.transpose(x, (1, 0, 2)).astype(cdt)                    # (S, B, D)
    w0x = wih0.astype(cdt)                                           # (D, 4H)
    w0h = whh0.astype(cdt)                                           # (H, 4H)
    w1x = wih1.astype(cdt)                                           # (H, 4H)
    w1h = whh1.astype(cdt)                                           # (H, 4H)
    b0f = b0.astype(jnp.float32)
    b1f = b1.astype(jnp.float32)
    wcf = w_cls.astype(jnp.float32)                                  # (1, H)

    out = pl.pallas_call(
        lstm_model_kernel,
        out_shape=jax.ShapeDtypeStruct((B, S), jnp.float32),
        grid=(nb,),
        in_specs=[
            pl.BlockSpec((S, Bb, D), lambda b: (0, b, 0)),
            pl.BlockSpec((D, 4 * H), lambda b: (0, 0)),
            pl.BlockSpec((H, 4 * H), lambda b: (0, 0)),
            pl.BlockSpec((1, 4 * H), lambda b: (0, 0)),
            pl.BlockSpec((H, 4 * H), lambda b: (0, 0)),
            pl.BlockSpec((H, 4 * H), lambda b: (0, 0)),
            pl.BlockSpec((1, 4 * H), lambda b: (0, 0)),
            pl.BlockSpec((1, H), lambda b: (0, 0)),
        ],
        out_specs=pl.BlockSpec((Bb, S), lambda b: (b, 0)),
        compiler_params=pltpu.CompilerParams(
            dimension_semantics=("parallel",)),
    )(x_t, w0x, w0h, b0f, w1x, w1h, b1f, wcf)
    return out


def lstm_model_ref(x, params, w_cls, compute_dtype=jnp.float32):
    """Pure-JAX reference reproducing torch nn.LSTM + Linear(no bias) + squeeze(2).

    With compute_dtype=float32 this is the exact module semantics; with bfloat16 it
    mirrors the kernel's bf16-operand / f32-accumulate MXU path for tight checking.
    """
    B, S, _ = x.shape
    inp = x
    for (wih_t, whh_t, b) in params:
        H = whh_t.shape[0]
        wih_c = wih_t.astype(compute_dtype)
        whh_c = whh_t.astype(compute_dtype)

        def step(carry, xt, wih_c=wih_c, whh_c=whh_c, b=b, H=H):
            h, c = carry
            gates = (jnp.dot(xt.astype(compute_dtype), wih_c,
                             preferred_element_type=jnp.float32)
                     + jnp.dot(h.astype(compute_dtype), whh_c,
                               preferred_element_type=jnp.float32)
                     + b)
            i = jax.nn.sigmoid(gates[:, 0:H])
            f = jax.nn.sigmoid(gates[:, H:2 * H])
            g = jnp.tanh(gates[:, 2 * H:3 * H])
            o = jax.nn.sigmoid(gates[:, 3 * H:4 * H])
            c = f * c + i * g
            h = o * jnp.tanh(c)
            return (h, c), h

        h0 = jnp.zeros((B, H), jnp.float32)
        c0 = jnp.zeros((B, H), jnp.float32)
        _, hs = jax.lax.scan(step, (h0, c0), jnp.transpose(inp, (1, 0, 2)))
        inp = jnp.transpose(hs, (1, 0, 2))                           # (B, S, H)
    return jnp.einsum('bsh,h->bs', inp, w_cls[0])                    # (B, S)


if __name__ == "__main__":
    # cfg analog: in_dim=16, lstm_hidden_dim=32, lstm_num_layers=2, n_classes=1
    B, S, D, H, L, n_classes = 8, 8, 16, 32, 2, 1

    key = jax.random.PRNGKey(0)
    ks = jax.random.split(key, 8)
    x = jax.random.normal(ks[0], (B, S, D), jnp.float32)

    params = []
    for l in range(L):
        in_dim = D if l == 0 else H
        wih_t = jax.random.normal(ks[1 + 3 * l], (in_dim, 4 * H), jnp.float32) * 0.1
        whh_t = jax.random.normal(ks[2 + 3 * l], (H, 4 * H), jnp.float32) * 0.1
        bias = jax.random.normal(ks[3 + 3 * l], (1, 4 * H), jnp.float32) * 0.1
        params.append((wih_t, whh_t, bias))
    w_cls = jax.random.normal(ks[7], (n_classes, H), jnp.float32) * 0.1

    use_bf16 = _tpu_generation() >= 4

    out = lstm_model_forward(x, params, w_cls, use_bf16=use_bf16)
    out = jax.block_until_ready(out)
    assert out.shape == (B, S)

    # Matched-precision reference (exact torch semantics when f32; the only kernel
    # delta vs it is the approx-EUP sigmoid plus bf16 operand rounding on bf16).
    cdt = jnp.bfloat16 if use_bf16 else jnp.float32
    ref = lstm_model_ref(x, params, w_cls, compute_dtype=cdt)
    rtol, atol = (1e-2, 2e-3) if use_bf16 else (5e-3, 1e-3)
    max_diff = float(jnp.max(jnp.abs(out - ref)))
    assert jnp.allclose(out, ref, rtol=rtol, atol=atol), (
        "mismatch vs reference: max abs diff = %e" % max_diff)

    if use_bf16:
        # loose sanity check against the full-f32 (exact module) reference as well.
        ref_f32 = lstm_model_ref(x, params, w_cls, compute_dtype=jnp.float32)
        assert jnp.allclose(out, ref_f32, rtol=1e-1, atol=5e-2), (
            "bf16 fast path drifted too far from f32 module semantics")

    print("KERNEL_OK")
</pallas_src>

<mosaic_0001>
module attributes {stable_mosaic.version = 11 : i64} {
  func.func @lstm_model_kernel(%arg0: i32, %arg1: memref<8x8x16xf32, #tpu.memory_space<vmem>>, %arg2: memref<16x128xf32, #tpu.memory_space<vmem>>, %arg3: memref<32x128xf32, #tpu.memory_space<vmem>>, %arg4: memref<1x128xf32, #tpu.memory_space<vmem>>, %arg5: memref<32x128xf32, #tpu.memory_space<vmem>>, %arg6: memref<32x128xf32, #tpu.memory_space<vmem>>, %arg7: memref<1x128xf32, #tpu.memory_space<vmem>>, %arg8: memref<1x32xf32, #tpu.memory_space<vmem>>, %arg9: memref<8x8xf32, #tpu.memory_space<vmem>>) attributes {dimension_semantics = [#tpu.dimension_semantics<parallel>], iteration_bounds = array<i64: 1>, scalar_prefetch = 0 : i64, scratch_operands = 0 : i64, tpu.core_type = #tpu.core_type<tc>, window_params = [{transform_indices = @transform_0, window_bounds = array<i64: 8, 8, 16>}, {pipeline_mode = #tpu.pipeline_mode<synchronous>, transform_indices = @transform_1, window_bounds = array<i64: 16, 128>}, {pipeline_mode = #tpu.pipeline_mode<synchronous>, transform_indices = @transform_2, window_bounds = array<i64: 32, 128>}, {pipeline_mode = #tpu.pipeline_mode<synchronous>, transform_indices = @transform_3, window_bounds = array<i64: 1, 128>}, {pipeline_mode = #tpu.pipeline_mode<synchronous>, transform_indices = @transform_4, window_bounds = array<i64: 32, 128>}, {pipeline_mode = #tpu.pipeline_mode<synchronous>, transform_indices = @transform_5, window_bounds = array<i64: 32, 128>}, {pipeline_mode = #tpu.pipeline_mode<synchronous>, transform_indices = @transform_6, window_bounds = array<i64: 1, 128>}, {pipeline_mode = #tpu.pipeline_mode<synchronous>, transform_indices = @transform_7, window_bounds = array<i64: 1, 32>}, {transform_indices = @transform_8, window_bounds = array<i64: 8, 8>}]} {
    %c0 = arith.constant 0 : index
    %c0_0 = arith.constant 0 : index
    %c0_1 = arith.constant 0 : index
    %0 = vector.load %arg1[%c0, %c0_0, %c0_1] : memref<8x8x16xf32, #tpu.memory_space<vmem>>, vector<8x8x16xf32>
    %1 = vector.shape_cast %0 : vector<8x8x16xf32> to vector<64x16xf32>
    %c0_2 = arith.constant 0 : index
    %c0_3 = arith.constant 0 : index
    %2 = vector.load %arg2[%c0_2, %c0_3] : memref<16x128xf32, #tpu.memory_space<vmem>>, vector<16x128xf32>
    %cst = arith.constant dense<0.000000e+00> : vector<64x128xf32>
    %3 = tpu.matmul %1, %2, %cst {dimension_numbers = #tpu.dot_dimension_numbers<[1], [0], [0], [1], [0, 0, 1, 1], [], []>} : vector<64x16xf32>, vector<16x128xf32>, vector<64x128xf32> -> vector<64x128xf32>
    %c0_4 = arith.constant 0 : index
    %c0_5 = arith.constant 0 : index
    %4 = vector.load %arg4[%c0_4, %c0_5] : memref<1x128xf32, #tpu.memory_space<vmem>>, vector<1x128xf32>
    %5 = vector.broadcast %4 : vector<1x128xf32> to vector<64x128xf32>
    %6 = arith.addf %3, %5 : vector<64x128xf32>
    %7 = vector.shape_cast %6 : vector<64x128xf32> to vector<8x8x128xf32>
    %c0_6 = arith.constant 0 : index
    %c0_7 = arith.constant 0 : index
    %8 = vector.load %arg7[%c0_6, %c0_7] : memref<1x128xf32, #tpu.memory_space<vmem>>, vector<1x128xf32>
    %9 = vector.shape_cast %8 : vector<1x128xf32> to vector<1x128xf32>
    %10 = vector.broadcast %9 : vector<1x128xf32> to vector<8x128xf32>
    %c0_8 = arith.constant 0 : index
    %c0_9 = arith.constant 0 : index
    %11 = vector.load %arg8[%c0_8, %c0_9] : memref<1x32xf32, #tpu.memory_space<vmem>>, vector<1x32xf32>
    %12 = vector.shape_cast %11 : vector<1x32xf32> to vector<1x32xf32>
    %13 = vector.broadcast %12 : vector<1x32xf32> to vector<8x32xf32>
    %c0_10 = arith.constant 0 : index
    %c0_11 = arith.constant 0 : index
    %14 = vector.load %arg3[%c0_10, %c0_11] : memref<32x128xf32, #tpu.memory_space<vmem>>, vector<32x128xf32>
    %c0_12 = arith.constant 0 : index
    %c0_13 = arith.constant 0 : index
    %15 = vector.load %arg5[%c0_12, %c0_13] : memref<32x128xf32, #tpu.memory_space<vmem>>, vector<32x128xf32>
    %c0_14 = arith.constant 0 : index
    %c0_15 = arith.constant 0 : index
    %16 = vector.load %arg6[%c0_14, %c0_15] : memref<32x128xf32, #tpu.memory_space<vmem>>, vector<32x128xf32>
    %cst_16 = arith.constant 0.000000e+00 : f32
    %17 = vector.broadcast %cst_16 : f32 to vector<8x32xf32>
    %cst_17 = arith.constant 0.000000e+00 : f32
    %18 = vector.broadcast %cst_17 : f32 to vector<8x32xf32>
    %cst_18 = arith.constant 0.000000e+00 : f32
    %19 = vector.broadcast %cst_18 : f32 to vector<8x32xf32>
    %cst_19 = arith.constant 0.000000e+00 : f32
    %20 = vector.broadcast %cst_19 : f32 to vector<8x32xf32>
    %21 = vector.extract_strided_slice %7 {offsets = [0, 0, 0], sizes = [1, 8, 128], strides = [1, 1, 1]} : vector<8x8x128xf32> to vector<1x8x128xf32>
    %22 = vector.shape_cast %21 : vector<1x8x128xf32> to vector<8x128xf32>
    %cst_20 = arith.constant dense<0.000000e+00> : vector<8x128xf32>
    %23 = tpu.matmul %17, %14, %cst_20 {dimension_numbers = #tpu.dot_dimension_numbers<[1], [0], [0], [1], [0, 0, 1, 1], [], []>} : vector<8x32xf32>, vector<32x128xf32>, vector<8x128xf32> -> vector<8x128xf32>
    %24 = arith.addf %22, %23 : vector<8x128xf32>
    %cst_21 = arith.constant 0.000000e+00 : f32
    %25 = vector.broadcast %cst_21 : f32 to vector<8x128xf32>
    %26 = arith.subf %25, %24 : vector<8x128xf32>
    %27 = math.exp %26 : vector<8x128xf32>
    %cst_22 = arith.constant 1.000000e+00 : f32
    %28 = vector.broadcast %cst_22 : f32 to vector<8x128xf32>
    %29 = arith.addf %28, %27 : vector<8x128xf32>
    %30 = tpu.reciprocal %29 {approx = true} : vector<8x128xf32> -> vector<8x128xf32>
    %31 = math.tanh %24 : vector<8x128xf32>
    %32 = vector.extract_strided_slice %30 {offsets = [0, 0], sizes = [8, 32], strides = [1, 1]} : vector<8x128xf32> to vector<8x32xf32>
    %33 = vector.extract_strided_slice %30 {offsets = [0, 32], sizes = [8, 32], strides = [1, 1]} : vector<8x128xf32> to vector<8x32xf32>
    %34 = vector.extract_strided_slice %31 {offsets = [0, 64], sizes = [8, 32], strides = [1, 1]} : vector<8x128xf32> to vector<8x32xf32>
    %35 = vector.extract_strided_slice %30 {offsets = [0, 96], sizes = [8, 32], strides = [1, 1]} : vector<8x128xf32> to vector<8x32xf32>
    %36 = arith.mulf %33, %18 : vector<8x32xf32>
    %37 = arith.mulf %32, %34 : vector<8x32xf32>
    %38 = arith.addf %36, %37 : vector<8x32xf32>
    %39 = math.tanh %38 : vector<8x32xf32>
    %40 = arith.mulf %35, %39 : vector<8x32xf32>
    %cst_23 = arith.constant dense<0.000000e+00> : vector<8x128xf32>
    %41 = tpu.matmul %40, %15, %cst_23 {dimension_numbers = #tpu.dot_dimension_numbers<[1], [0], [0], [1], [0, 0, 1, 1], [], []>} : vector<8x32xf32>, vector<32x128xf32>, vector<8x128xf32> -> vector<8x128xf32>
    %cst_24 = arith.constant dense<0.000000e+00> : vector<8x128xf32>
    %42 = tpu.matmul %19, %16, %cst_24 {dimension_numbers = #tpu.dot_dimension_numbers<[1], [0], [0], [1], [0, 0, 1, 1], [], []>} : vector<8x32xf32>, vector<32x128xf32>, vector<8x128xf32> -> vector<8x128xf32>
    %43 = arith.addf %41, %42 : vector<8x128xf32>
    %44 = arith.addf %43, %10 : vector<8x128xf32>
    %cst_25 = arith.constant 0.000000e+00 : f32
    %45 = vector.broadcast %cst_25 : f32 to vector<8x128xf32>
    %46 = arith.subf %45, %44 : vector<8x128xf32>
    %47 = math.exp %46 : vector<8x128xf32>
    %cst_26 = arith.constant 1.000000e+00 : f32
    %48 = vector.broadcast %cst_26 : f32 to vector<8x128xf32>
    %49 = arith.addf %48, %47 : vector<8x128xf32>
    %50 = tpu.reciprocal %49 {approx = true} : vector<8x128xf32> -> vector<8x128xf32>
    %51 = math.tanh %44 : vector<8x128xf32>
    %52 = vector.extract_strided_slice %50 {offsets = [0, 0], sizes = [8, 32], strides = [1, 1]} : vector<8x128xf32> to vector<8x32xf32>
    %53 = vector.extract_strided_slice %50 {offsets = [0, 32], sizes = [8, 32], strides = [1, 1]} : vector<8x128xf32> to vector<8x32xf32>
    %54 = vector.extract_strided_slice %51 {offsets = [0, 64], sizes = [8, 32], strides = [1, 1]} : vector<8x128xf32> to vector<8x32xf32>
    %55 = vector.extract_strided_slice %50 {offsets = [0, 96], sizes = [8, 32], strides = [1, 1]} : vector<8x128xf32> to vector<8x32xf32>
    %56 = arith.mulf %53, %20 : vector<8x32xf32>
    %57 = arith.mulf %52, %54 : vector<8x32xf32>
    %58 = arith.addf %56, %57 : vector<8x32xf32>
    %59 = math.tanh %58 : vector<8x32xf32>
    %60 = arith.mulf %55, %59 : vector<8x32xf32>
    %61 = arith.mulf %60, %13 : vector<8x32xf32>
    %cst_27 = arith.constant dense<0.000000e+00> : vector<8xf32>
    %62 = vector.multi_reduction <add>, %61, %cst_27 [1] : vector<8x32xf32> to vector<8xf32>
    %63 = vector.shape_cast %62 : vector<8xf32> to vector<8x1xf32>
    %64 = vector.extract_strided_slice %7 {offsets = [1, 0, 0], sizes = [1, 8, 128], strides = [1, 1, 1]} : vector<8x8x128xf32> to vector<1x8x128xf32>
    %65 = vector.shape_cast %64 : vector<1x8x128xf32> to vector<8x128xf32>
    %cst_28 = arith.constant dense<0.000000e+00> : vector<8x128xf32>
    %66 = tpu.matmul %40, %14, %cst_28 {dimension_numbers = #tpu.dot_dimension_numbers<[1], [0], [0], [1], [0, 0, 1, 1], [], []>} : vector<8x32xf32>, vector<32x128xf32>, vector<8x128xf32> -> vector<8x128xf32>
    %67 = arith.addf %65, %66 : vector<8x128xf32>
    %cst_29 = arith.constant 0.000000e+00 : f32
    %68 = vector.broadcast %cst_29 : f32 to vector<8x128xf32>
    %69 = arith.subf %68, %67 : vector<8x128xf32>
    %70 = math.exp %69 : vector<8x128xf32>
    %cst_30 = arith.constant 1.000000e+00 : f32
    %71 = vector.broadcast %cst_30 : f32 to vector<8x128xf32>
    %72 = arith.addf %71, %70 : vector<8x128xf32>
    %73 = tpu.reciprocal %72 {approx = true} : vector<8x128xf32> -> vector<8x128xf32>
    %74 = math.tanh %67 : vector<8x128xf32>
    %75 = vector.extract_strided_slice %73 {offsets = [0, 0], sizes = [8, 32], strides = [1, 1]} : vector<8x128xf32> to vector<8x32xf32>
    %76 = vector.extract_strided_slice %73 {offsets = [0, 32], sizes = [8, 32], strides = [1, 1]} : vector<8x128xf32> to vector<8x32xf32>
    %77 = vector.extract_strided_slice %74 {offsets = [0, 64], sizes = [8, 32], strides = [1, 1]} : vector<8x128xf32> to vector<8x32xf32>
    %78 = vector.extract_strided_slice %73 {offsets = [0, 96], sizes = [8, 32], strides = [1, 1]} : vector<8x128xf32> to vector<8x32xf32>
    %79 = arith.mulf %76, %38 : vector<8x32xf32>
    %80 = arith.mulf %75, %77 : vector<8x32xf32>
    %81 = arith.addf %79, %80 : vector<8x32xf32>
    %82 = math.tanh %81 : vector<8x32xf32>
    %83 = arith.mulf %78, %82 : vector<8x32xf32>
    %cst_31 = arith.constant dense<0.000000e+00> : vector<8x128xf32>
    %84 = tpu.matmul %83, %15, %cst_31 {dimension_numbers = #tpu.dot_dimension_numbers<[1], [0], [0], [1], [0, 0, 1, 1], [], []>} : vector<8x32xf32>, vector<32x128xf32>, vector<8x128xf32> -> vector<8x128xf32>
    %cst_32 = arith.constant dense<0.000000e+00> : vector<8x128xf32>
    %85 = tpu.matmul %60, %16, %cst_32 {dimension_numbers = #tpu.dot_dimension_numbers<[1], [0], [0], [1], [0, 0, 1, 1], [], []>} : vector<8x32xf32>, vector<32x128xf32>, vector<8x128xf32> -> vector<8x128xf32>
    %86 = arith.addf %84, %85 : vector<8x128xf32>
    %87 = arith.addf %86, %10 : vector<8x128xf32>
    %cst_33 = arith.constant 0.000000e+00 : f32
    %88 = vector.broadcast %cst_33 : f32 to vector<8x128xf32>
    %89 = arith.subf %88, %87 : vector<8x128xf32>
    %90 = math.exp %89 : vector<8x128xf32>
    %cst_34 = arith.constant 1.000000e+00 : f32
    %91 = vector.broadcast %cst_34 : f32 to vector<8x128xf32>
    %92 = arith.addf %91, %90 : vector<8x128xf32>
    %93 = tpu.reciprocal %92 {approx = true} : vector<8x128xf32> -> vector<8x128xf32>
    %94 = math.tanh %87 : vector<8x128xf32>
    %95 = vector.extract_strided_slice %93 {offsets = [0, 0], sizes = [8, 32], strides = [1, 1]} : vector<8x128xf32> to vector<8x32xf32>
    %96 = vector.extract_strided_slice %93 {offsets = [0, 32], sizes = [8, 32], strides = [1, 1]} : vector<8x128xf32> to vector<8x32xf32>
    %97 = vector.extract_strided_slice %94 {offsets = [0, 64], sizes = [8, 32], strides = [1, 1]} : vector<8x128xf32> to vector<8x32xf32>
    %98 = vector.extract_strided_slice %93 {offsets = [0, 96], sizes = [8, 32], strides = [1, 1]} : vector<8x128xf32> to vector<8x32xf32>
    %99 = arith.mulf %96, %58 : vector<8x32xf32>
    %100 = arith.mulf %95, %97 : vector<8x32xf32>
    %101 = arith.addf %99, %100 : vector<8x32xf32>
    %102 = math.tanh %101 : vector<8x32xf32>
    %103 = arith.mulf %98, %102 : vector<8x32xf32>
    %104 = arith.mulf %103, %13 : vector<8x32xf32>
    %cst_35 = arith.constant dense<0.000000e+00> : vector<8xf32>
    %105 = vector.multi_reduction <add>, %104, %cst_35 [1] : vector<8x32xf32> to vector<8xf32>
    %106 = vector.shape_cast %105 : vector<8xf32> to vector<8x1xf32>
    %107 = vector.extract_strided_slice %7 {offsets = [2, 0, 0], sizes = [1, 8, 128], strides = [1, 1, 1]} : vector<8x8x128xf32> to vector<1x8x128xf32>
    %108 = vector.shape_cast %107 : vector<1x8x128xf32> to vector<8x128xf32>
    %cst_36 = arith.constant dense<0.000000e+00> : vector<8x128xf32>
    %109 = tpu.matmul %83, %14, %cst_36 {dimension_numbers = #tpu.dot_dimension_numbers<[1], [0], [0], [1], [0, 0, 1, 1], [], []>} : vector<8x32xf32>, vector<32x128xf32>, vector<8x128xf32> -> vector<8x128xf32>
    %110 = arith.addf %108, %109 : vector<8x128xf32>
    %cst_37 = arith.constant 0.000000e+00 : f32
    %111 = vector.broadcast %cst_37 : f32 to vector<8x128xf32>
    %112 = arith.subf %111, %110 : vector<8x128xf32>
    %113 = math.exp %112 : vector<8x128xf32>
    %cst_38 = arith.constant 1.000000e+00 : f32
    %114 = vector.broadcast %cst_38 : f32 to vector<8x128xf32>
    %115 = arith.addf %114, %113 : vector<8x128xf32>
    %116 = tpu.reciprocal %115 {approx = true} : vector<8x128xf32> -> vector<8x128xf32>
    %117 = math.tanh %110 : vector<8x128xf32>
    %118 = vector.extract_strided_slice %116 {offsets = [0, 0], sizes = [8, 32], strides = [1, 1]} : vector<8x128xf32> to vector<8x32xf32>
    %119 = vector.extract_strided_slice %116 {offsets = [0, 32], sizes = [8, 32], strides = [1, 1]} : vector<8x128xf32> to vector<8x32xf32>
    %120 = vector.extract_strided_slice %117 {offsets = [0, 64], sizes = [8, 32], strides = [1, 1]} : vector<8x128xf32> to vector<8x32xf32>
    %121 = vector.extract_strided_slice %116 {offsets = [0, 96], sizes = [8, 32], strides = [1, 1]} : vector<8x128xf32> to vector<8x32xf32>
    %122 = arith.mulf %119, %81 : vector<8x32xf32>
    %123 = arith.mulf %118, %120 : vector<8x32xf32>
    %124 = arith.addf %122, %123 : vector<8x32xf32>
    %125 = math.tanh %124 : vector<8x32xf32>
    %126 = arith.mulf %121, %125 : vector<8x32xf32>
    %cst_39 = arith.constant dense<0.000000e+00> : vector<8x128xf32>
    %127 = tpu.matmul %126, %15, %cst_39 {dimension_numbers = #tpu.dot_dimension_numbers<[1], [0], [0], [1], [0, 0, 1, 1], [], []>} : vector<8x32xf32>, vector<32x128xf32>, vector<8x128xf32> -> vector<8x128xf32>
    %cst_40 = arith.constant dense<0.000000e+00> : vector<8x128xf32>
    %128 = tpu.matmul %103, %16, %cst_40 {dimension_numbers = #tpu.dot_dimension_numbers<[1], [0], [0], [1], [0, 0, 1, 1], [], []>} : vector<8x32xf32>, vector<32x128xf32>, vector<8x128xf32> -> vector<8x128xf32>
    %129 = arith.addf %127, %128 : vector<8x128xf32>
    %130 = arith.addf %129, %10 : vector<8x128xf32>
    %cst_41 = arith.constant 0.000000e+00 : f32
    %131 = vector.broadcast %cst_41 : f32 to vector<8x128xf32>
    %132 = arith.subf %131, %130 : vector<8x128xf32>
    %133 = math.exp %132 : vector<8x128xf32>
    %cst_42 = arith.constant 1.000000e+00 : f32
    %134 = vector.broadcast %cst_42 : f32 to vector<8x128xf32>
    %135 = arith.addf %134, %133 : vector<8x128xf32>
    %136 = tpu.reciprocal %135 {approx = true} : vector<8x128xf32> -> vector<8x128xf32>
    %137 = math.tanh %130 : vector<8x128xf32>
    %138 = vector.extract_strided_slice %136 {offsets = [0, 0], sizes = [8, 32], strides = [1, 1]} : vector<8x128xf32> to vector<8x32xf32>
    %139 = vector.extract_strided_slice %136 {offsets = [0, 32], sizes = [8, 32], strides = [1, 1]} : vector<8x128xf32> to vector<8x32xf32>
    %140 = vector.extract_strided_slice %137 {offsets = [0, 64], sizes = [8, 32], strides = [1, 1]} : vector<8x128xf32> to vector<8x32xf32>
    %141 = vector.extract_strided_slice %136 {offsets = [0, 96], sizes = [8, 32], strides = [1, 1]} : vector<8x128xf32> to vector<8x32xf32>
    %142 = arith.mulf %139, %101 : vector<8x32xf32>
    %143 = arith.mulf %138, %140 : vector<8x32xf32>
    %144 = arith.addf %142, %143 : vector<8x32xf32>
    %145 = math.tanh %144 : vector<8x32xf32>
    %146 = arith.mulf %141, %145 : vector<8x32xf32>
    %147 = arith.mulf %146, %13 : vector<8x32xf32>
    %cst_43 = arith.constant dense<0.000000e+00> : vector<8xf32>
    %148 = vector.multi_reduction <add>, %147, %cst_43 [1] : vector<8x32xf32> to vector<8xf32>
    %149 = vector.shape_cast %148 : vector<8xf32> to vector<8x1xf32>
    %150 = vector.extract_strided_slice %7 {offsets = [3, 0, 0], sizes = [1, 8, 128], strides = [1, 1, 1]} : vector<8x8x128xf32> to vector<1x8x128xf32>
    %151 = vector.shape_cast %150 : vector<1x8x128xf32> to vector<8x128xf32>
    %cst_44 = arith.constant dense<0.000000e+00> : vector<8x128xf32>
    %152 = tpu.matmul %126, %14, %cst_44 {dimension_numbers = #tpu.dot_dimension_numbers<[1], [0], [0], [1], [0, 0, 1, 1], [], []>} : vector<8x32xf32>, vector<32x128xf32>, vector<8x128xf32> -> vector<8x128xf32>
    %153 = arith.addf %151, %152 : vector<8x128xf32>
    %cst_45 = arith.constant 0.000000e+00 : f32
    %154 = vector.broadcast %cst_45 : f32 to vector<8x128xf32>
    %155 = arith.subf %154, %153 : vector<8x128xf32>
    %156 = math.exp %155 : vector<8x128xf32>
    %cst_46 = arith.constant 1.000000e+00 : f32
    %157 = vector.broadcast %cst_46 : f32 to vector<8x128xf32>
    %158 = arith.addf %157, %156 : vector<8x128xf32>
    %159 = tpu.reciprocal %158 {approx = true} : vector<8x128xf32> -> vector<8x128xf32>
    %160 = math.tanh %153 : vector<8x128xf32>
    %161 = vector.extract_strided_slice %159 {offsets = [0, 0], sizes = [8, 32], strides = [1, 1]} : vector<8x128xf32> to vector<8x32xf32>
    %162 = vector.extract_strided_slice %159 {offsets = [0, 32], sizes = [8, 32], strides = [1, 1]} : vector<8x128xf32> to vector<8x32xf32>
    %163 = vector.extract_strided_slice %160 {offsets = [0, 64], sizes = [8, 32], strides = [1, 1]} : vector<8x128xf32> to vector<8x32xf32>
    %164 = vector.extract_strided_slice %159 {offsets = [0, 96], sizes = [8, 32], strides = [1, 1]} : vector<8x128xf32> to vector<8x32xf32>
    %165 = arith.mulf %162, %124 : vector<8x32xf32>
    %166 = arith.mulf %161, %163 : vector<8x32xf32>
    %167 = arith.addf %165, %166 : vector<8x32xf32>
    %168 = math.tanh %167 : vector<8x32xf32>
    %169 = arith.mulf %164, %168 : vector<8x32xf32>
    %cst_47 = arith.constant dense<0.000000e+00> : vector<8x128xf32>
    %170 = tpu.matmul %169, %15, %cst_47 {dimension_numbers = #tpu.dot_dimension_numbers<[1], [0], [0], [1], [0, 0, 1, 1], [], []>} : vector<8x32xf32>, vector<32x128xf32>, vector<8x128xf32> -> vector<8x128xf32>
    %cst_48 = arith.constant dense<0.000000e+00> : vector<8x128xf32>
    %171 = tpu.matmul %146, %16, %cst_48 {dimension_numbers = #tpu.dot_dimension_numbers<[1], [0], [0], [1], [0, 0, 1, 1], [], []>} : vector<8x32xf32>, vector<32x128xf32>, vector<8x128xf32> -> vector<8x128xf32>
    %172 = arith.addf %170, %171 : vector<8x128xf32>
    %173 = arith.addf %172, %10 : vector<8x128xf32>
    %cst_49 = arith.constant 0.000000e+00 : f32
    %174 = vector.broadcast %cst_49 : f32 to vector<8x128xf32>
    %175 = arith.subf %174, %173 : vector<8x128xf32>
    %176 = math.exp %175 : vector<8x128xf32>
    %cst_50 = arith.constant 1.000000e+00 : f32
    %177 = vector.broadcast %cst_50 : f32 to vector<8x128xf32>
    %178 = arith.addf %177, %176 : vector<8x128xf32>
    %179 = tpu.reciprocal %178 {approx = true} : vector<8x128xf32> -> vector<8x128xf32>
    %180 = math.tanh %173 : vector<8x128xf32>
    %181 = vector.extract_strided_slice %179 {offsets = [0, 0], sizes = [8, 32], strides = [1, 1]} : vector<8x128xf32> to vector<8x32xf32>
    %182 = vector.extract_strided_slice %179 {offsets = [0, 32], sizes = [8, 32], strides = [1, 1]} : vector<8x128xf32> to vector<8x32xf32>
    %183 = vector.extract_strided_slice %180 {offsets = [0, 64], sizes = [8, 32], strides = [1, 1]} : vector<8x128xf32> to vector<8x32xf32>
    %184 = vector.extract_strided_slice %179 {offsets = [0, 96], sizes = [8, 32], strides = [1, 1]} : vector<8x128xf32> to vector<8x32xf32>
    %185 = arith.mulf %182, %144 : vector<8x32xf32>
    %186 = arith.mulf %181, %183 : vector<8x32xf32>
    %187 = arith.addf %185, %186 : vector<8x32xf32>
    %188 = math.tanh %187 : vector<8x32xf32>
    %189 = arith.mulf %184, %188 : vector<8x32xf32>
    %190 = arith.mulf %189, %13 : vector<8x32xf32>
    %cst_51 = arith.constant dense<0.000000e+00> : vector<8xf32>
    %191 = vector.multi_reduction <add>, %190, %cst_51 [1] : vector<8x32xf32> to vector<8xf32>
    %192 = vector.shape_cast %191 : vector<8xf32> to vector<8x1xf32>
    %193 = vector.extract_strided_slice %7 {offsets = [4, 0, 0], sizes = [1, 8, 128], strides = [1, 1, 1]} : vector<8x8x128xf32> to vector<1x8x128xf32>
    %194 = vector.shape_cast %193 : vector<1x8x128xf32> to vector<8x128xf32>
    %cst_52 = arith.constant dense<0.000000e+00> : vector<8x128xf32>
    %195 = tpu.matmul %169, %14, %cst_52 {dimension_numbers = #tpu.dot_dimension_numbers<[1], [0], [0], [1], [0, 0, 1, 1], [], []>} : vector<8x32xf32>, vector<32x128xf32>, vector<8x128xf32> -> vector<8x128xf32>
    %196 = arith.addf %194, %195 : vector<8x128xf32>
    %cst_53 = arith.constant 0.000000e+00 : f32
    %197 = vector.broadcast %cst_53 : f32 to vector<8x128xf32>
    %198 = arith.subf %197, %196 : vector<8x128xf32>
    %199 = math.exp %198 : vector<8x128xf32>
    %cst_54 = arith.constant 1.000000e+00 : f32
    %200 = vector.broadcast %cst_54 : f32 to vector<8x128xf32>
    %201 = arith.addf %200, %199 : vector<8x128xf32>
    %202 = tpu.reciprocal %201 {approx = true} : vector<8x128xf32> -> vector<8x128xf32>
    %203 = math.tanh %196 : vector<8x128xf32>
    %204 = vector.extract_strided_slice %202 {offsets = [0, 0], sizes = [8, 32], strides = [1, 1]} : vector<8x128xf32> to vector<8x32xf32>
    %205 = vector.extract_strided_slice %202 {offsets = [0, 32], sizes = [8, 32], strides = [1, 1]} : vector<8x128xf32> to vector<8x32xf32>
    %206 = vector.extract_strided_slice %203 {offsets = [0, 64], sizes = [8, 32], strides = [1, 1]} : vector<8x128xf32> to vector<8x32xf32>
    %207 = vector.extract_strided_slice %202 {offsets = [0, 96], sizes = [8, 32], strides = [1, 1]} : vector<8x128xf32> to vector<8x32xf32>
    %208 = arith.mulf %205, %167 : vector<8x32xf32>
    %209 = arith.mulf %204, %206 : vector<8x32xf32>
    %210 = arith.addf %208, %209 : vector<8x32xf32>
    %211 = math.tanh %210 : vector<8x32xf32>
    %212 = arith.mulf %207, %211 : vector<8x32xf32>
    %cst_55 = arith.constant dense<0.000000e+00> : vector<8x128xf32>
    %213 = tpu.matmul %212, %15, %cst_55 {dimension_numbers = #tpu.dot_dimension_numbers<[1], [0], [0], [1], [0, 0, 1, 1], [], []>} : vector<8x32xf32>, vector<32x128xf32>, vector<8x128xf32> -> vector<8x128xf32>
    %cst_56 = arith.constant dense<0.000000e+00> : vector<8x128xf32>
    %214 = tpu.matmul %189, %16, %cst_56 {dimension_numbers = #tpu.dot_dimension_numbers<[1], [0], [0], [1], [0, 0, 1, 1], [], []>} : vector<8x32xf32>, vector<32x128xf32>, vector<8x128xf32> -> vector<8x128xf32>
    %215 = arith.addf %213, %214 : vector<8x128xf32>
    %216 = arith.addf %215, %10 : vector<8x128xf32>
    %cst_57 = arith.constant 0.000000e+00 : f32
    %217 = vector.broadcast %cst_57 : f32 to vector<8x128xf32>
    %218 = arith.subf %217, %216 : vector<8x128xf32>
    %219 = math.exp %218 : vector<8x128xf32>
    %cst_58 = arith.constant 1.000000e+00 : f32
    %220 = vector.broadcast %cst_58 : f32 to vector<8x128xf32>
    %221 = arith.addf %220, %219 : vector<8x128xf32>
    %222 = tpu.reciprocal %221 {approx = true} : vector<8x128xf32> -> vector<8x128xf32>
    %223 = math.tanh %216 : vector<8x128xf32>
    %224 = vector.extract_strided_slice %222 {offsets = [0, 0], sizes = [8, 32], strides = [1, 1]} : vector<8x128xf32> to vector<8x32xf32>
    %225 = vector.extract_strided_slice %222 {offsets = [0, 32], sizes = [8, 32], strides = [1, 1]} : vector<8x128xf32> to vector<8x32xf32>
    %226 = vector.extract_strided_slice %223 {offsets = [0, 64], sizes = [8, 32], strides = [1, 1]} : vector<8x128xf32> to vector<8x32xf32>
    %227 = vector.extract_strided_slice %222 {offsets = [0, 96], sizes = [8, 32], strides = [1, 1]} : vector<8x128xf32> to vector<8x32xf32>
    %228 = arith.mulf %225, %187 : vector<8x32xf32>
    %229 = arith.mulf %224, %226 : vector<8x32xf32>
    %230 = arith.addf %228, %229 : vector<8x32xf32>
    %231 = math.tanh %230 : vector<8x32xf32>
    %232 = arith.mulf %227, %231 : vector<8x32xf32>
    %233 = arith.mulf %232, %13 : vector<8x32xf32>
    %cst_59 = arith.constant dense<0.000000e+00> : vector<8xf32>
    %234 = vector.multi_reduction <add>, %233, %cst_59 [1] : vector<8x32xf32> to vector<8xf32>
    %235 = vector.shape_cast %234 : vector<8xf32> to vector<8x1xf32>
    %236 = vector.extract_strided_slice %7 {offsets = [5, 0, 0], sizes = [1, 8, 128], strides = [1, 1, 1]} : vector<8x8x128xf32> to vector<1x8x128xf32>
    %237 = vector.shape_cast %236 : vector<1x8x128xf32> to vector<8x128xf32>
    %cst_60 = arith.constant dense<0.000000e+00> : vector<8x128xf32>
    %238 = tpu.matmul %212, %14, %cst_60 {dimension_numbers = #tpu.dot_dimension_numbers<[1], [0], [0], [1], [0, 0, 1, 1], [], []>} : vector<8x32xf32>, vector<32x128xf32>, vector<8x128xf32> -> vector<8x128xf32>
    %239 = arith.addf %237, %238 : vector<8x128xf32>
    %cst_61 = arith.constant 0.000000e+00 : f32
    %240 = vector.broadcast %cst_61 : f32 to vector<8x128xf32>
    %241 = arith.subf %240, %239 : vector<8x128xf32>
    %242 = math.exp %241 : vector<8x128xf32>
    %cst_62 = arith.constant 1.000000e+00 : f32
    %243 = vector.broadcast %cst_62 : f32 to vector<8x128xf32>
    %244 = arith.addf %243, %242 : vector<8x128xf32>
    %245 = tpu.reciprocal %244 {approx = true} : vector<8x128xf32> -> vector<8x128xf32>
    %246 = math.tanh %239 : vector<8x128xf32>
    %247 = vector.extract_strided_slice %245 {offsets = [0, 0], sizes = [8, 32], strides = [1, 1]} : vector<8x128xf32> to vector<8x32xf32>
    %248 = vector.extract_strided_slice %245 {offsets = [0, 32], sizes = [8, 32], strides = [1, 1]} : vector<8x128xf32> to vector<8x32xf32>
    %249 = vector.extract_strided_slice %246 {offsets = [0, 64], sizes = [8, 32], strides = [1, 1]} : vector<8x128xf32> to vector<8x32xf32>
    %250 = vector.extract_strided_slice %245 {offsets = [0, 96], sizes = [8, 32], strides = [1, 1]} : vector<8x128xf32> to vector<8x32xf32>
    %251 = arith.mulf %248, %210 : vector<8x32xf32>
    %252 = arith.mulf %247, %249 : vector<8x32xf32>
    %253 = arith.addf %251, %252 : vector<8x32xf32>
    %254 = math.tanh %253 : vector<8x32xf32>
    %255 = arith.mulf %250, %254 : vector<8x32xf32>
    %cst_63 = arith.constant dense<0.000000e+00> : vector<8x128xf32>
    %256 = tpu.matmul %255, %15, %cst_63 {dimension_numbers = #tpu.dot_dimension_numbers<[1], [0], [0], [1], [0, 0, 1, 1], [], []>} : vector<8x32xf32>, vector<32x128xf32>, vector<8x128xf32> -> vector<8x128xf32>
    %cst_64 = arith.constant dense<0.000000e+00> : vector<8x128xf32>
    %257 = tpu.matmul %232, %16, %cst_64 {dimension_numbers = #tpu.dot_dimension_numbers<[1], [0], [0], [1], [0, 0, 1, 1], [], []>} : vector<8x32xf32>, vector<32x128xf32>, vector<8x128xf32> -> vector<8x128xf32>
    %258 = arith.addf %256, %257 : vector<8x128xf32>
    %259 = arith.addf %258, %10 : vector<8x128xf32>
    %cst_65 = arith.constant 0.000000e+00 : f32
    %260 = vector.broadcast %cst_65 : f32 to vector<8x128xf32>
    %261 = arith.subf %260, %259 : vector<8x128xf32>
    %262 = math.exp %261 : vector<8x128xf32>
    %cst_66 = arith.constant 1.000000e+00 : f32
    %263 = vector.broadcast %cst_66 : f32 to vector<8x128xf32>
    %264 = arith.addf %263, %262 : vector<8x128xf32>
    %265 = tpu.reciprocal %264 {approx = true} : vector<8x128xf32> -> vector<8x128xf32>
    %266 = math.tanh %259 : vector<8x128xf32>
    %267 = vector.extract_strided_slice %265 {offsets = [0, 0], sizes = [8, 32], strides = [1, 1]} : vector<8x128xf32> to vector<8x32xf32>
    %268 = vector.extract_strided_slice %265 {offsets = [0, 32], sizes = [8, 32], strides = [1, 1]} : vector<8x128xf32> to vector<8x32xf32>
    %269 = vector.extract_strided_slice %266 {offsets = [0, 64], sizes = [8, 32], strides = [1, 1]} : vector<8x128xf32> to vector<8x32xf32>
    %270 = vector.extract_strided_slice %265 {offsets = [0, 96], sizes = [8, 32], strides = [1, 1]} : vector<8x128xf32> to vector<8x32xf32>
    %271 = arith.mulf %268, %230 : vector<8x32xf32>
    %272 = arith.mulf %267, %269 : vector<8x32xf32>
    %273 = arith.addf %271, %272 : vector<8x32xf32>
    %274 = math.tanh %273 : vector<8x32xf32>
    %275 = arith.mulf %270, %274 : vector<8x32xf32>
    %276 = arith.mulf %275, %13 : vector<8x32xf32>
    %cst_67 = arith.constant dense<0.000000e+00> : vector<8xf32>
    %277 = vector.multi_reduction <add>, %276, %cst_67 [1] : vector<8x32xf32> to vector<8xf32>
    %278 = vector.shape_cast %277 : vector<8xf32> to vector<8x1xf32>
    %279 = vector.extract_strided_slice %7 {offsets = [6, 0, 0], sizes = [1, 8, 128], strides = [1, 1, 1]} : vector<8x8x128xf32> to vector<1x8x128xf32>
    %280 = vector.shape_cast %279 : vector<1x8x128xf32> to vector<8x128xf32>
    %cst_68 = arith.constant dense<0.000000e+00> : vector<8x128xf32>
    %281 = tpu.matmul %255, %14, %cst_68 {dimension_numbers = #tpu.dot_dimension_numbers<[1], [0], [0], [1], [0, 0, 1, 1], [], []>} : vector<8x32xf32>, vector<32x128xf32>, vector<8x128xf32> -> vector<8x128xf32>
    %282 = arith.addf %280, %281 : vector<8x128xf32>
    %cst_69 = arith.constant 0.000000e+00 : f32
    %283 = vector.broadcast %cst_69 : f32 to vector<8x128xf32>
    %284 = arith.subf %283, %282 : vector<8x128xf32>
    %285 = math.exp %284 : vector<8x128xf32>
    %cst_70 = arith.constant 1.000000e+00 : f32
    %286 = vector.broadcast %cst_70 : f32 to vector<8x128xf32>
    %287 = arith.addf %286, %285 : vector<8x128xf32>
    %288 = tpu.reciprocal %287 {approx = true} : vector<8x128xf32> -> vector<8x128xf32>
    %289 = math.tanh %282 : vector<8x128xf32>
    %290 = vector.extract_strided_slice %288 {offsets = [0, 0], sizes = [8, 32], strides = [1, 1]} : vector<8x128xf32> to vector<8x32xf32>
    %291 = vector.extract_strided_slice %288 {offsets = [0, 32], sizes = [8, 32], strides = [1, 1]} : vector<8x128xf32> to vector<8x32xf32>
    %292 = vector.extract_strided_slice %289 {offsets = [0, 64], sizes = [8, 32], strides = [1, 1]} : vector<8x128xf32> to vector<8x32xf32>
    %293 = vector.extract_strided_slice %288 {offsets = [0, 96], sizes = [8, 32], strides = [1, 1]} : vector<8x128xf32> to vector<8x32xf32>
    %294 = arith.mulf %291, %253 : vector<8x32xf32>
    %295 = arith.mulf %290, %292 : vector<8x32xf32>
    %296 = arith.addf %294, %295 : vector<8x32xf32>
    %297 = math.tanh %296 : vector<8x32xf32>
    %298 = arith.mulf %293, %297 : vector<8x32xf32>
    %cst_71 = arith.constant dense<0.000000e+00> : vector<8x128xf32>
    %299 = tpu.matmul %298, %15, %cst_71 {dimension_numbers = #tpu.dot_dimension_numbers<[1], [0], [0], [1], [0, 0, 1, 1], [], []>} : vector<8x32xf32>, vector<32x128xf32>, vector<8x128xf32> -> vector<8x128xf32>
    %cst_72 = arith.constant dense<0.000000e+00> : vector<8x128xf32>
    %300 = tpu.matmul %275, %16, %cst_72 {dimension_numbers = #tpu.dot_dimension_numbers<[1], [0], [0], [1], [0, 0, 1, 1], [], []>} : vector<8x32xf32>, vector<32x128xf32>, vector<8x128xf32> -> vector<8x128xf32>
    %301 = arith.addf %299, %300 : vector<8x128xf32>
    %302 = arith.addf %301, %10 : vector<8x128xf32>
    %cst_73 = arith.constant 0.000000e+00 : f32
    %303 = vector.broadcast %cst_73 : f32 to vector<8x128xf32>
    %304 = arith.subf %303, %302 : vector<8x128xf32>
    %305 = math.exp %304 : vector<8x128xf32>
    %cst_74 = arith.constant 1.000000e+00 : f32
    %306 = vector.broadcast %cst_74 : f32 to vector<8x128xf32>
    %307 = arith.addf %306, %305 : vector<8x128xf32>
    %308 = tpu.reciprocal %307 {approx = true} : vector<8x128xf32> -> vector<8x128xf32>
    %309 = math.tanh %302 : vector<8x128xf32>
    %310 = vector.extract_strided_slice %308 {offsets = [0, 0], sizes = [8, 32], strides = [1, 1]} : vector<8x128xf32> to vector<8x32xf32>
    %311 = vector.extract_strided_slice %308 {offsets = [0, 32], sizes = [8, 32], strides = [1, 1]} : vector<8x128xf32> to vector<8x32xf32>
    %312 = vector.extract_strided_slice %309 {offsets = [0, 64], sizes = [8, 32], strides = [1, 1]} : vector<8x128xf32> to vector<8x32xf32>
    %313 = vector.extract_strided_slice %308 {offsets = [0, 96], sizes = [8, 32], strides = [1, 1]} : vector<8x128xf32> to vector<8x32xf32>
    %314 = arith.mulf %311, %273 : vector<8x32xf32>
    %315 = arith.mulf %310, %312 : vector<8x32xf32>
    %316 = arith.addf %314, %315 : vector<8x32xf32>
    %317 = math.tanh %316 : vector<8x32xf32>
    %318 = arith.mulf %313, %317 : vector<8x32xf32>
    %319 = arith.mulf %318, %13 : vector<8x32xf32>
    %cst_75 = arith.constant dense<0.000000e+00> : vector<8xf32>
    %320 = vector.multi_reduction <add>, %319, %cst_75 [1] : vector<8x32xf32> to vector<8xf32>
    %321 = vector.shape_cast %320 : vector<8xf32> to vector<8x1xf32>
    %322 = vector.extract_strided_slice %7 {offsets = [7, 0, 0], sizes = [1, 8, 128], strides = [1, 1, 1]} : vector<8x8x128xf32> to vector<1x8x128xf32>
    %323 = vector.shape_cast %322 : vector<1x8x128xf32> to vector<8x128xf32>
    %cst_76 = arith.constant dense<0.000000e+00> : vector<8x128xf32>
    %324 = tpu.matmul %298, %14, %cst_76 {dimension_numbers = #tpu.dot_dimension_numbers<[1], [0], [0], [1], [0, 0, 1, 1], [], []>} : vector<8x32xf32>, vector<32x128xf32>, vector<8x128xf32> -> vector<8x128xf32>
    %325 = arith.addf %323, %324 : vector<8x128xf32>
    %cst_77 = arith.constant 0.000000e+00 : f32
    %326 = vector.broadcast %cst_77 : f32 to vector<8x128xf32>
    %327 = arith.subf %326, %325 : vector<8x128xf32>
    %328 = math.exp %327 : vector<8x128xf32>
    %cst_78 = arith.constant 1.000000e+00 : f32
    %329 = vector.broadcast %cst_78 : f32 to vector<8x128xf32>
    %330 = arith.addf %329, %328 : vector<8x128xf32>
    %331 = tpu.reciprocal %330 {approx = true} : vector<8x128xf32> -> vector<8x128xf32>
    %332 = math.tanh %325 : vector<8x128xf32>
    %333 = vector.extract_strided_slice %331 {offsets = [0, 0], sizes = [8, 32], strides = [1, 1]} : vector<8x128xf32> to vector<8x32xf32>
    %334 = vector.extract_strided_slice %331 {offsets = [0, 32], sizes = [8, 32], strides = [1, 1]} : vector<8x128xf32> to vector<8x32xf32>
    %335 = vector.extract_strided_slice %332 {offsets = [0, 64], sizes = [8, 32], strides = [1, 1]} : vector<8x128xf32> to vector<8x32xf32>
    %336 = vector.extract_strided_slice %331 {offsets = [0, 96], sizes = [8, 32], strides = [1, 1]} : vector<8x128xf32> to vector<8x32xf32>
    %337 = arith.mulf %334, %296 : vector<8x32xf32>
    %338 = arith.mulf %333, %335 : vector<8x32xf32>
    %339 = arith.addf %337, %338 : vector<8x32xf32>
    %340 = math.tanh %339 : vector<8x32xf32>
    %341 = arith.mulf %336, %340 : vector<8x32xf32>
    %cst_79 = arith.constant dense<0.000000e+00> : vector<8x128xf32>
    %342 = tpu.matmul %341, %15, %cst_79 {dimension_numbers = #tpu.dot_dimension_numbers<[1], [0], [0], [1], [0, 0, 1, 1], [], []>} : vector<8x32xf32>, vector<32x128xf32>, vector<8x128xf32> -> vector<8x128xf32>
    %cst_80 = arith.constant dense<0.000000e+00> : vector<8x128xf32>
    %343 = tpu.matmul %318, %16, %cst_80 {dimension_numbers = #tpu.dot_dimension_numbers<[1], [0], [0], [1], [0, 0, 1, 1], [], []>} : vector<8x32xf32>, vector<32x128xf32>, vector<8x128xf32> -> vector<8x128xf32>
    %344 = arith.addf %342, %343 : vector<8x128xf32>
    %345 = arith.addf %344, %10 : vector<8x128xf32>
    %cst_81 = arith.constant 0.000000e+00 : f32
    %346 = vector.broadcast %cst_81 : f32 to vector<8x128xf32>
    %347 = arith.subf %346, %345 : vector<8x128xf32>
    %348 = math.exp %347 : vector<8x128xf32>
    %cst_82 = arith.constant 1.000000e+00 : f32
    %349 = vector.broadcast %cst_82 : f32 to vector<8x128xf32>
    %350 = arith.addf %349, %348 : vector<8x128xf32>
    %351 = tpu.reciprocal %350 {approx = true} : vector<8x128xf32> -> vector<8x128xf32>
    %352 = math.tanh %345 : vector<8x128xf32>
    %353 = vector.extract_strided_slice %351 {offsets = [0, 0], sizes = [8, 32], strides = [1, 1]} : vector<8x128xf32> to vector<8x32xf32>
    %354 = vector.extract_strided_slice %351 {offsets = [0, 32], sizes = [8, 32], strides = [1, 1]} : vector<8x128xf32> to vector<8x32xf32>
    %355 = vector.extract_strided_slice %352 {offsets = [0, 64], sizes = [8, 32], strides = [1, 1]} : vector<8x128xf32> to vector<8x32xf32>
    %356 = vector.extract_strided_slice %351 {offsets = [0, 96], sizes = [8, 32], strides = [1, 1]} : vector<8x128xf32> to vector<8x32xf32>
    %357 = arith.mulf %354, %316 : vector<8x32xf32>
    %358 = arith.mulf %353, %355 : vector<8x32xf32>
    %359 = arith.addf %357, %358 : vector<8x32xf32>
    %360 = math.tanh %359 : vector<8x32xf32>
    %361 = arith.mulf %356, %360 : vector<8x32xf32>
    %362 = arith.mulf %361, %13 : vector<8x32xf32>
    %cst_83 = arith.constant dense<0.000000e+00> : vector<8xf32>
    %363 = vector.multi_reduction <add>, %362, %cst_83 [1] : vector<8x32xf32> to vector<8xf32>
    %364 = vector.shape_cast %363 : vector<8xf32> to vector<8x1xf32>
    %365 = tpu.concatenate %63, %106, %149, %192, %235, %278, %321, %364 in 1 : vector<8x1xf32>, vector<8x1xf32>, vector<8x1xf32>, vector<8x1xf32>, vector<8x1xf32>, vector<8x1xf32>, vector<8x1xf32>, vector<8x1xf32> -> vector<8x8xf32>
    %c0_84 = arith.constant 0 : index
    %c0_85 = arith.constant 0 : index
    %366 = vector.load %arg9[%c0_84, %c0_85] : memref<8x8xf32, #tpu.memory_space<vmem>>, vector<8x8xf32>
    tpu.vector_store %arg9[%c0_84, %c0_85], %365 {strides = array<i32>} : memref<8x8xf32, #tpu.memory_space<vmem>>, vector<8x8xf32>,
    return
  }
  func.func @transform_0(%arg0: i32) -> (i32, i32, i32) {
    %c0_i32 = arith.constant 0 : i32
    %c0_i32_0 = arith.constant 0 : i32
    %c0_i32_1 = arith.constant 0 : i32
    return %c0_i32, %arg0, %c0_i32_0 : i32, i32, i32
  }
  func.func @transform_1(%arg0: i32) -> (i32, i32) {
    %c0_i32 = arith.constant 0 : i32
    %c0_i32_0 = arith.constant 0 : i32
    %c0_i32_1 = arith.constant 0 : i32
    return %c0_i32, %c0_i32_0 : i32, i32
  }
  func.func @transform_2(%arg0: i32) -> (i32, i32) {
    %c0_i32 = arith.constant 0 : i32
    %c0_i32_0 = arith.constant 0 : i32
    %c0_i32_1 = arith.constant 0 : i32
    return %c0_i32, %c0_i32_0 : i32, i32
  }
  func.func @transform_3(%arg0: i32) -> (i32, i32) {
    %c0_i32 = arith.constant 0 : i32
    %c0_i32_0 = arith.constant 0 : i32
    %c0_i32_1 = arith.constant 0 : i32
    return %c0_i32, %c0_i32_0 : i32, i32
  }
  func.func @transform_4(%arg0: i32) -> (i32, i32) {
    %c0_i32 = arith.constant 0 : i32
    %c0_i32_0 = arith.constant 0 : i32
    %c0_i32_1 = arith.constant 0 : i32
    return %c0_i32, %c0_i32_0 : i32, i32
  }
  func.func @transform_5(%arg0: i32) -> (i32, i32) {
    %c0_i32 = arith.constant 0 : i32
    %c0_i32_0 = arith.constant 0 : i32
    %c0_i32_1 = arith.constant 0 : i32
    return %c0_i32, %c0_i32_0 : i32, i32
  }
  func.func @transform_6(%arg0: i32) -> (i32, i32) {
    %c0_i32 = arith.constant 0 : i32
    %c0_i32_0 = arith.constant 0 : i32
    %c0_i32_1 = arith.constant 0 : i32
    return %c0_i32, %c0_i32_0 : i32, i32
  }
  func.func @transform_7(%arg0: i32) -> (i32, i32) {
    %c0_i32 = arith.constant 0 : i32
    %c0_i32_0 = arith.constant 0 : i32
    %c0_i32_1 = arith.constant 0 : i32
    return %c0_i32, %c0_i32_0 : i32, i32
  }
  func.func @transform_8(%arg0: i32) -> (i32, i32) {
    %c0_i32 = arith.constant 0 : i32
    %c0_i32_0 = arith.constant 0 : i32
    return %arg0, %c0_i32 : i32, i32
  }
}

</mosaic_0001>

<llo_original>
// kernel: tpu_custom_call.1
$region0: #{tpu_custom_call.1}
  #allocation0 [shape = 'u32[]', space=smem, size = 0x4, offset = 0x4, fixed_abs, tag = 'smem constant byte address 0x4 - core index']
  #allocation1 [shape = 'u32[144,128]{1,0:T(1,128)}', space=vmem, size = 0x12000, scoped, tag = 'internal scratch']
  %s0 = inlined_call_operand.hbm [shape: f32[8,8,16], index: 0, kind: input, shape index: {}]
  %s1 = inlined_call_operand.hbm [shape: f32[16,128], index: 1, kind: input, shape index: {}]
  %s2 = inlined_call_operand.hbm [shape: f32[32,128], index: 2, kind: input, shape index: {}]
  %s3 = inlined_call_operand.vmem [shape: f32[1,128], index: 3, kind: input, shape index: {}]
  %s4 = inlined_call_operand.hbm [shape: f32[32,128], index: 4, kind: input, shape index: {}]
  %s5 = inlined_call_operand.hbm [shape: f32[32,128], index: 5, kind: input, shape index: {}]
  %s6 = inlined_call_operand.vmem [shape: f32[1,128], index: 6, kind: input, shape index: {}]
  %s7 = inlined_call_operand.vmem [shape: f32[1,32], index: 7, kind: input, shape index: {}]
  %s8 = inlined_call_operand.hbm [shape: f32[8,8], index: 8, kind: output, shape index: {}]
  %s9 = sld [smem:[#allocation0]]
  $region62: #{tpu_custom_call.1} parent=0
    _
  %s11 = ssub.s32 1, %s9
  %s12 = scalar_select 0, %s11, %s9
  $region1: #{tpu_custom_call.1} parent=0
    #allocation2 [shape = 'u8[32768]{0}', space=vmem, size = 0x8000, scoped, tag = 'input window, operand 0, single buffered']
    #allocation3 [shape = 's32[1]{0}', space=sflag, size = 0x4, scoped, tag = 'scoped memory for tpu_custom_call.1']
    #allocation4 [shape = 's32[1]{0}', space=sflag, size = 0x4, scoped, tag = 'scoped memory for tpu_custom_call.1']
    #allocation5 [shape = 'u8[8192]{0}', space=vmem, size = 0x2000, scoped, tag = 'input window, operand 1, single buffered']
    #allocation6 [shape = 's32[1]{0}', space=sflag, size = 0x4, scoped, tag = 'scoped memory for tpu_custom_call.1']
    #allocation7 [shape = 'u8[16384]{0}', space=vmem, size = 0x4000, scoped, tag = 'input window, operand 2, single buffered']
    #allocation8 [shape = 'u8[16384]{0}', space=vmem, size = 0x4000, scoped, tag = 'input window, operand 4, single buffered']
    #allocation9 [shape = 's32[1]{0}', space=sflag, size = 0x4, scoped, tag = 'scoped memory for tpu_custom_call.1']
    #allocation10 [shape = 'u8[16384]{0}', space=vmem, size = 0x4000, scoped, tag = 'input window, operand 5, single buffered']
    #allocation11 [shape = 'u8[4096]{0}', space=vmem, size = 0x1000, scoped, tag = 'output window, operand 0, single buffered']
    %13 = vsyncpa [#allocation3], 0
    %14 = vsyncpa [#allocation6], 0
    %15 = vsyncpa [#allocation9], 0
    %16 = vsyncpa [#allocation4], 0
    // Predicated region
    $region2: #{tpu_custom_call.1} parent=1 // pred_check
      _
    $region3: #{tpu_custom_call.1} parent=1 // pred_check_branch
      %18 = sbr.rel (0) target = $region5
    $region4: #{tpu_custom_call.1} parent=1 // pred_region
      %s20 = ssub.s32 1024, 1024
      %21 = vsyncadd [#allocation3], %s20
      %s22 = sshll.u32 [#allocation2], 4
      %s23 = int_to_ptr.vmem [resolvable:$true] %s22
      %28 = dma.hbm_to_vmem [thread:$0]  %s0, 1024, %s23, [#allocation3], 128, 128, 8
    $region5: #{tpu_custom_call.1} parent=1 // pred_fallthru
      _
    // Predicated region
    $region6: #{tpu_custom_call.1} parent=1 // pred_check
      _
    $region7: #{tpu_custom_call.1} parent=1 // pred_check_branch
      %30 = sbr.rel (0) target = $region9
    $region8: #{tpu_custom_call.1} parent=1 // pred_region
      %s32 = ssub.s32 256, 256
      %33 = vsyncadd [#allocation6], %s32
      %s34 = sshll.u32 [#allocation5], 4
      %s35 = int_to_ptr.vmem [resolvable:$true] %s34
      %40 = dma.hbm_to_vmem [thread:$0]  %s1, 256, %s35, [#allocation6], 128, 128, 8
    $region9: #{tpu_custom_call.1} parent=1 // pred_fallthru
      _
    // Predicated region
    $region10: #{tpu_custom_call.1} parent=1 // pred_check
      _
    $region11: #{tpu_custom_call.1} parent=1 // pred_check_branch
      %42 = sbr.rel (0) target = $region13
    $region12: #{tpu_custom_call.1} parent=1 // pred_region
      %s44 = ssub.s32 512, 512
      %45 = vsyncadd [#allocation6], %s44
      %s46 = sshll.u32 [#allocation7], 4
      %s47 = int_to_ptr.vmem [resolvable:$true] %s46
      %52 = dma.hbm_to_vmem [thread:$0]  %s2, 512, %s47, [#allocation6], 128, 128, 8
    $region13: #{tpu_custom_call.1} parent=1 // pred_fallthru
      _
    // Predicated region
    $region14: #{tpu_custom_call.1} parent=1 // pred_check
      _
    $region15: #{tpu_custom_call.1} parent=1 // pred_check_branch
      %54 = sbr.rel (0) target = $region17
    $region16: #{tpu_custom_call.1} parent=1 // pred_region
      _
    $region17: #{tpu_custom_call.1} parent=1 // pred_fallthru
      _
    // Predicated region
    $region18: #{tpu_custom_call.1} parent=1 // pred_check
      _
    $region19: #{tpu_custom_call.1} parent=1 // pred_check_branch
      %56 = sbr.rel (0) target = $region21
    $region20: #{tpu_custom_call.1} parent=1 // pred_region
      %s58 = ssub.s32 512, 512
      %59 = vsyncadd [#allocation9], %s58
      %s60 = sshll.u32 [#allocation8], 4
      %s61 = int_to_ptr.vmem [resolvable:$true] %s60
      %66 = dma.hbm_to_vmem [thread:$0]  %s4, 512, %s61, [#allocation9], 128, 128, 8
    $region21: #{tpu_custom_call.1} parent=1 // pred_fallthru
      _
    // Predicated region
    $region22: #{tpu_custom_call.1} parent=1 // pred_check
      _
    $region23: #{tpu_custom_call.1} parent=1 // pred_check_branch
      %68 = sbr.rel (0) target = $region25
    $region24: #{tpu_custom_call.1} parent=1 // pred_region
      %s70 = ssub.s32 512, 512
      %71 = vsyncadd [#allocation9], %s70
      %s72 = sshll.u32 [#allocation10], 4
      %s73 = int_to_ptr.vmem [resolvable:$true] %s72
      %78 = dma.hbm_to_vmem [thread:$0]  %s5, 512, %s73, [#allocation9], 128, 128, 8
    $region25: #{tpu_custom_call.1} parent=1 // pred_fallthru
      _
    // Predicated region
    $region26: #{tpu_custom_call.1} parent=1 // pred_check
      _
    $region27: #{tpu_custom_call.1} parent=1 // pred_check_branch
      %80 = sbr.rel (0) target = $region29
    $region28: #{tpu_custom_call.1} parent=1 // pred_region
      _
    $region29: #{tpu_custom_call.1} parent=1 // pred_fallthru
      _
    // Predicated region
    $region30: #{tpu_custom_call.1} parent=1 // pred_check
      _
    $region31: #{tpu_custom_call.1} parent=1 // pred_check_branch
      %82 = sbr.rel (0) target = $region33
    $region32: #{tpu_custom_call.1} parent=1 // pred_region
      _
    $region33: #{tpu_custom_call.1} parent=1 // pred_fallthru
      _
    // Predicated region
    $region34: #{tpu_custom_call.1} parent=1 // pred_check
      _
    $region35: #{tpu_custom_call.1} parent=1 // pred_check_branch
      %84 = sbr.rel (0) target = $region37
    $region36: #{tpu_custom_call.1} parent=1 // pred_region
      %85 = dma.done [#allocation3], 1024
    $region37: #{tpu_custom_call.1} parent=1 // pred_fallthru
      _
    // Predicated region
    $region38: #{tpu_custom_call.1} parent=1 // pred_check
      _
    $region39: #{tpu_custom_call.1} parent=1 // pred_check_branch
      %87 = sbr.rel (0) target = $region41
    $region40: #{tpu_custom_call.1} parent=1 // pred_region
      %88 = dma.done [#allocation6], 256
    $region41: #{tpu_custom_call.1} parent=1 // pred_fallthru
      _
    // Predicated region
    $region42: #{tpu_custom_call.1} parent=1 // pred_check
      _
    $region43: #{tpu_custom_call.1} parent=1 // pred_check_branch
      %90 = sbr.rel (0) target = $region45
    $region44: #{tpu_custom_call.1} parent=1 // pred_region
      %91 = dma.done [#allocation6], 512
    $region45: #{tpu_custom_call.1} parent=1 // pred_fallthru
      _
    // Predicated region
    $region46: #{tpu_custom_call.1} parent=1 // pred_check
      _
    $region47: #{tpu_custom_call.1} parent=1 // pred_check_branch
      %93 = sbr.rel (0) target = $region49
    $region48: #{tpu_custom_call.1} parent=1 // pred_region
      %94 = dma.done [#allocation9], 512
    $region49: #{tpu_custom_call.1} parent=1 // pred_fallthru
      _
    // Predicated region
    $region50: #{tpu_custom_call.1} parent=1 // pred_check
      _
    $region51: #{tpu_custom_call.1} parent=1 // pred_check_branch
      %96 = sbr.rel (0) target = $region53
    $region52: #{tpu_custom_call.1} parent=1 // pred_region
      %97 = dma.done [#allocation9], 512
    $region53: #{tpu_custom_call.1} parent=1 // pred_fallthru
      _
    %v98 = vld [vmem:[#allocation2] sm:$0xff]
    %v99 = vld [vmem:[#allocation2 + $0x8] sm:$0xff]
    %v100 = vld [vmem:[#allocation2 + $0x10] sm:$0xff]
    %v101 = vld [vmem:[#allocation2 + $0x18] sm:$0xff]
    %v102 = vld [vmem:[#allocation2 + $0x20] sm:$0xff]
    %v103 = vld [vmem:[#allocation2 + $0x28] sm:$0xff]
    %v104 = vld [vmem:[#allocation2 + $0x30] sm:$0xff]
    %v105 = vld [vmem:[#allocation2 + $0x38] sm:$0xff]
    %v106 = vld [vmem:[#allocation5] sm:$0xff]
    %v107 = vld [vmem:[#allocation5 + $0x8] sm:$0xff]
    %v108 = vld [vmem:[%s3] sm:$0x1]
    %v110 = vlaneseq
    %v111 = vshrl.u32 %v110, 7
    %v112 = vsub.s32 0, %v111
    %v113 = vrot.slane %v108, %v112
    %vm115 = vcmask 130048
    %v117 = vsel %vm115, %v98, 0
    %v120 = vsel %vm115, %v99, 0
    %v123 = vsel %vm115, %v100, 0
    %v126 = vsel %vm115, %v101, 0
    %v129 = vsel %vm115, %v102, 0
    %v132 = vsel %vm115, %v103, 0
    %v135 = vsel %vm115, %v104, 0
    %v138 = vsel %vm115, %v105, 0
    %140 = vmatprep.subr.mxu0 0.0
    %141 = vmatpush1.msra.mxu0 %v106
    %142 = vmatprep.subr.mxu0 0.0
    %143 = vmatpush1.msra.mxu0 %v107
    %144 = vmatprep.subr.mxu0 0.0
    %145 = vmatpush1.msra.mxu0 0.0
    %146 = vmatprep.subr.mxu0 0.0
    %147 = vmatpush1.msra.mxu0 0.0
    %148 = vmatprep.subr.mxu0 0.0
    %149 = vmatpush1.msra.mxu0 0.0
    %150 = vmatprep.subr.mxu0 0.0
    %151 = vmatpush1.msra.mxu0 0.0
    %152 = vmatprep.subr.mxu0 0.0
    %153 = vmatpush1.msra.mxu0 0.0
    %154 = vmatprep.subr.mxu0 0.0
    %155 = vmatpush1.msra.mxu0 0.0
    %156 = vmatprep.subr.mxu0 0.0
    %157 = vmatpush1.msra.mxu0 0.0
    %158 = vmatprep.subr.mxu0 0.0
    %159 = vmatpush1.msra.mxu0 0.0
    %160 = vmatprep.subr.mxu0 0.0
    %161 = vmatpush1.msra.mxu0 0.0
    %162 = vmatprep.subr.mxu0 0.0
    %163 = vmatpush1.msra.mxu0 0.0
    %164 = vmatprep.subr.mxu0 0.0
    %165 = vmatpush1.msra.mxu0 0.0
    %166 = vmatprep.subr.mxu0 0.0
    %167 = vmatpush1.msra.mxu0 0.0
    %168 = vmatprep.subr.mxu0 0.0
    %169 = vmatpush1.msra.mxu0 0.0
    %170 = vmatprep.subr.mxu0 0.0
    %171 = vmatpush1.msra.mxu0 0.0
    %172 = vmatprep.subr.mxu0 0.0
    %173 = vmatpush1.msra.mxu0 0.0
    %174 = vmatprep.subr.mxu0 0.0
    %175 = vmatpush1.msra.mxu0 0.0
    %176 = vmatprep.subr.mxu0 0.0
    %177 = vmatpush1.msra.mxu0 0.0
    %178 = vmatprep.subr.mxu0 0.0
    %179 = vmatpush1.msra.mxu0 0.0
    %180 = vmatprep.subr.mxu0 0.0
    %181 = vmatpush1.msra.mxu0 0.0
    %182 = vmatprep.subr.mxu0 0.0
    %183 = vmatpush1.msra.mxu0 0.0
    %184 = vmatprep.subr.mxu0 0.0
    %185 = vmatpush1.msra.mxu0 0.0
    %186 = vmatprep.subr.mxu0 0.0
    %187 = vmatpush1.msra.mxu0 0.0
    %188 = vmatprep.subr.mxu0 0.0
    %189 = vmatpush1.msra.mxu0 0.0
    %190 = vmatprep.subr.mxu0 0.0
    %191 = vmatpush1.msra.mxu0 0.0
    %192 = vmatprep.subr.mxu0 0.0
    %193 = vmatpush1.msra.mxu0 0.0
    %194 = vmatprep.subr.mxu0 0.0
    %195 = vmatpush1.msra.mxu0 0.0
    %196 = vmatprep.subr.mxu0 0.0
    %197 = vmatpush1.msra.mxu0 0.0
    %198 = vmatprep.subr.mxu0 0.0
    %199 = vmatpush1.msra.mxu0 0.0
    %200 = vmatprep.subr.mxu0 0.0
    %201 = vmatpush1.msra.mxu0 0.0
    %202 = vmatprep.subr.mxu0 0.0
    %203 = vmatpush1.msra.mxu0 0.0
    %204 = vmatprep.mubr.f32.mxu0 0.0
    %205 = vmatmul.mubr.f32.gmra.mrb[0].mxu0 %v117
    %v206 = vpop.f32.mrb[0].mxu0
    %v207 = vadd.f32 %v113, %v206
    %v208 = vpop.f32.mrb[0].mxu0
    %209 = vmatprep.mubr.f32.mxu0 0.0
    %210 = vmatmul.mubr.f32.gmra.mrb[0].mxu0 %v120
    %v211 = vpop.f32.mrb[0].mxu0
    %v212 = vadd.f32 %v113, %v211
    %v213 = vpop.f32.mrb[0].mxu0
    %214 = vmatprep.mubr.f32.mxu0 0.0
    %215 = vmatmul.mubr.f32.gmra.mrb[0].mxu0 %v123
    %v216 = vpop.f32.mrb[0].mxu0
    %v217 = vadd.f32 %v113, %v216
    %v218 = vpop.f32.mrb[0].mxu0
    %219 = vmatprep.mubr.f32.mxu0 0.0
    %220 = vmatmul.mubr.f32.gmra.mrb[0].mxu0 %v126
    %v221 = vpop.f32.mrb[0].mxu0
    %v222 = vadd.f32 %v113, %v221
    %v223 = vpop.f32.mrb[0].mxu0
    %224 = vmatprep.mubr.f32.mxu0 0.0
    %225 = vmatmul.mubr.f32.gmra.mrb[0].mxu0 %v129
    %v226 = vpop.f32.mrb[0].mxu0
    %v227 = vadd.f32 %v113, %v226
    %v228 = vpop.f32.mrb[0].mxu0
    %229 = vmatprep.mubr.f32.mxu0 0.0
    %230 = vmatmul.mubr.f32.gmra.mrb[0].mxu0 %v132
    %v231 = vpop.f32.mrb[0].mxu0
    %v232 = vadd.f32 %v113, %v231
    %v233 = vpop.f32.mrb[0].mxu0
    %234 = vmatprep.mubr.f32.mxu0 0.0
    %235 = vmatmul.mubr.f32.gmra.mrb[0].mxu0 %v135
    %v236 = vpop.f32.mrb[0].mxu0
    %v237 = vadd.f32 %v113, %v236
    %v238 = vpop.f32.mrb[0].mxu0
    %239 = vmatprep.mubr.f32.mxu0 0.0
    %240 = vmatmul.mubr.f32.gmra.mrb[0].mxu0 %v138
    %v241 = vpop.f32.mrb[0].mxu0
    %v242 = vadd.f32 %v113, %v241
    %v243 = vpop.f32.mrb[0].mxu0
    %244 = vdwg.mxu0
    %v245 = vld [vmem:[%s6] sm:$0x1]
    %v247 = vlaneseq
    %v248 = vshrl.u32 %v247, 7
    %v249 = vsub.s32 0, %v248
    %v250 = vrot.slane %v245, %v249
    %v252 = vld [vmem:[%s7] sm:$0x1]
    %v254 = vlaneseq
    %v255 = vshrl.u32 %v254, 7
    %v256 = vsub.s32 0, %v255
    %v257 = vrot.slane %v252, %v256
    %v258 = vld [vmem:[#allocation7] sm:$0xff]
    %v259 = vld [vmem:[#allocation7 + $0x8] sm:$0xff]
    %v260 = vld [vmem:[#allocation7 + $0x10] sm:$0xff]
    %v261 = vld [vmem:[#allocation7 + $0x18] sm:$0xff]
    %v262 = vld [vmem:[#allocation8] sm:$0xff]
    %v263 = vld [vmem:[#allocation8 + $0x8] sm:$0xff]
    %v264 = vld [vmem:[#allocation8 + $0x10] sm:$0xff]
    %v265 = vld [vmem:[#allocation8 + $0x18] sm:$0xff]
    %v266 = vld [vmem:[#allocation10] sm:$0xff]
    %v267 = vld [vmem:[#allocation10 + $0x8] sm:$0xff]
    %v268 = vld [vmem:[#allocation10 + $0x10] sm:$0xff]
    %v269 = vld [vmem:[#allocation10 + $0x18] sm:$0xff]
    %vm270 = vcmask 261120
    %v272 = vsel %vm270, 0.0, 0
    %274 = vmatprep.subr.mxu0 0.0
    %275 = vmatpush1.msra.mxu0 %v258
    %276 = vmatprep.subr.mxu0 0.0
    %277 = vmatpush1.msra.mxu0 %v259
    %278 = vmatprep.subr.mxu0 0.0
    %279 = vmatpush1.msra.mxu0 %v260
    %280 = vmatprep.subr.mxu0 0.0
    %281 = vmatpush1.msra.mxu0 %v261
    %282 = vmatprep.subr.mxu0 0.0
    %283 = vmatpush1.msra.mxu0 0.0
    %284 = vmatprep.subr.mxu0 0.0
    %285 = vmatpush1.msra.mxu0 0.0
    %286 = vmatprep.subr.mxu0 0.0
    %287 = vmatpush1.msra.mxu0 0.0
    %288 = vmatprep.subr.mxu0 0.0
    %289 = vmatpush1.msra.mxu0 0.0
    %290 = vmatprep.subr.mxu0 0.0
    %291 = vmatpush1.msra.mxu0 0.0
    %292 = vmatprep.subr.mxu0 0.0
    %293 = vmatpush1.msra.mxu0 0.0
    %294 = vmatprep.subr.mxu0 0.0
    %295 = vmatpush1.msra.mxu0 0.0
    %296 = vmatprep.subr.mxu0 0.0
    %297 = vmatpush1.msra.mxu0 0.0
    %298 = vmatprep.subr.mxu0 0.0
    %299 = vmatpush1.msra.mxu0 0.0
    %300 = vmatprep.subr.mxu0 0.0
    %301 = vmatpush1.msra.mxu0 0.0
    %302 = vmatprep.subr.mxu0 0.0
    %303 = vmatpush1.msra.mxu0 0.0
    %304 = vmatprep.subr.mxu0 0.0
    %305 = vmatpush1.msra.mxu0 0.0
    %306 = vmatprep.subr.mxu0 0.0
    %307 = vmatpush1.msra.mxu0 0.0
    %308 = vmatprep.subr.mxu0 0.0
    %309 = vmatpush1.msra.mxu0 0.0
    %310 = vmatprep.subr.mxu0 0.0
    %311 = vmatpush1.msra.mxu0 0.0
    %312 = vmatprep.subr.mxu0 0.0
    %313 = vmatpush1.msra.mxu0 0.0
    %314 = vmatprep.subr.mxu0 0.0
    %315 = vmatpush1.msra.mxu0 0.0
    %316 = vmatprep.subr.mxu0 0.0
    %317 = vmatpush1.msra.mxu0 0.0
    %318 = vmatprep.subr.mxu0 0.0
    %319 = vmatpush1.msra.mxu0 0.0
    %320 = vmatprep.subr.mxu0 0.0
    %321 = vmatpush1.msra.mxu0 0.0
    %322 = vmatprep.subr.mxu0 0.0
    %323 = vmatpush1.msra.mxu0 0.0
    %324 = vmatprep.subr.mxu0 0.0
    %325 = vmatpush1.msra.mxu0 0.0
    %326 = vmatprep.subr.mxu0 0.0
    %327 = vmatpush1.msra.mxu0 0.0
    %328 = vmatprep.subr.mxu0 0.0
    %329 = vmatpush1.msra.mxu0 0.0
    %330 = vmatprep.subr.mxu0 0.0
    %331 = vmatpush1.msra.mxu0 0.0
    %332 = vmatprep.subr.mxu0 0.0
    %333 = vmatpush1.msra.mxu0 0.0
    %334 = vmatprep.subr.mxu0 0.0
    %335 = vmatpush1.msra.mxu0 0.0
    %336 = vmatprep.subr.mxu0 0.0
    %337 = vmatpush1.msra.mxu0 0.0
    %338 = vmatprep.mubr.f32.mxu0 0.0
    %339 = vmatmul.mubr.f32.gmra.mrb[0].mxu0 %v272
    %v340 = vpop.f32.mrb[0].mxu0
    %v341 = vadd.f32 0.0, %v340
    %v342 = vpop.f32.mrb[0].mxu0
    %343 = vdwg.mxu0
    %v344 = vadd.f32 %v207, %v341
    %v345 = vsub.f32 0.0, %v344
    %v346 = vmul.f32 %v345, 1.442695
    %v347 = vpow.pop %v346
    %v348 = vadd.f32 %v347, 1.0
    %v349 = vrcp.pop %v348
    %v350 = vtanh.pop %v344
    %v351 = vmul.f32 %v349, 0.0
    %353 = vrot.lane.b32.xlu0 %v350, 64
    %v354 = vpop.permute.xlu0 %353
    %v356 = vmul.f32 %v349, %v354
    %358 = vrot.lane.b32.xlu0 %v356, 32
    %v359 = vpop.permute.xlu0 %358
    %v361 = vadd.f32 %v351, %v359
    %v362 = vtanh.pop %v361
    %364 = vrot.lane.b32.xlu0 %v362, 64
    %v365 = vpop.permute.xlu0 %364
    %v367 = vmul.f32 %v349, %v365
    %368 = vmatprep.subr.mxu0 0.0
    %369 = vmatpush1.msra.mxu0 %v266
    %370 = vmatprep.subr.mxu0 0.0
    %371 = vmatpush1.msra.mxu0 %v267
    %372 = vmatprep.subr.mxu0 0.0
    %373 = vmatpush1.msra.mxu0 %v268
    %374 = vmatprep.subr.mxu0 0.0
    %375 = vmatpush1.msra.mxu0 %v269
    %376 = vmatprep.subr.mxu0 0.0
    %377 = vmatpush1.msra.mxu0 0.0
    %378 = vmatprep.subr.mxu0 0.0
    %379 = vmatpush1.msra.mxu0 0.0
    %380 = vmatprep.subr.mxu0 0.0
    %381 = vmatpush1.msra.mxu0 0.0
    %382 = vmatprep.subr.mxu0 0.0
    %383 = vmatpush1.msra.mxu0 0.0
    %384 = vmatprep.subr.mxu0 0.0
    %385 = vmatpush1.msra.mxu0 0.0
    %386 = vmatprep.subr.mxu0 0.0
    %387 = vmatpush1.msra.mxu0 0.0
    %388 = vmatprep.subr.mxu0 0.0
    %389 = vmatpush1.msra.mxu0 0.0
    %390 = vmatprep.subr.mxu0 0.0
    %391 = vmatpush1.msra.mxu0 0.0
    %392 = vmatprep.subr.mxu0 0.0
    %393 = vmatpush1.msra.mxu0 0.0
    %394 = vmatprep.subr.mxu0 0.0
    %395 = vmatpush1.msra.mxu0 0.0
    %396 = vmatprep.subr.mxu0 0.0
    %397 = vmatpush1.msra.mxu0 0.0
    %398 = vmatprep.subr.mxu0 0.0
    %399 = vmatpush1.msra.mxu0 0.0
    %400 = vmatprep.subr.mxu0 0.0
    %401 = vmatpush1.msra.mxu0 0.0
    %402 = vmatprep.subr.mxu0 0.0
    %403 = vmatpush1.msra.mxu0 0.0
    %404 = vmatprep.subr.mxu0 0.0
    %405 = vmatpush1.msra.mxu0 0.0
    %406 = vmatprep.subr.mxu0 0.0
    %407 = vmatpush1.msra.mxu0 0.0
    %408 = vmatprep.subr.mxu0 0.0
    %409 = vmatpush1.msra.mxu0 0.0
    %410 = vmatprep.subr.mxu0 0.0
    %411 = vmatpush1.msra.mxu0 0.0
    %412 = vmatprep.subr.mxu0 0.0
    %413 = vmatpush1.msra.mxu0 0.0
    %414 = vmatprep.subr.mxu0 0.0
    %415 = vmatpush1.msra.mxu0 0.0
    %416 = vmatprep.subr.mxu0 0.0
    %417 = vmatpush1.msra.mxu0 0.0
    %418 = vmatprep.subr.mxu0 0.0
    %419 = vmatpush1.msra.mxu0 0.0
    %420 = vmatprep.subr.mxu0 0.0
    %421 = vmatpush1.msra.mxu0 0.0
    %422 = vmatprep.subr.mxu0 0.0
    %423 = vmatpush1.msra.mxu0 0.0
    %424 = vmatprep.subr.mxu0 0.0
    %425 = vmatpush1.msra.mxu0 0.0
    %426 = vmatprep.subr.mxu0 0.0
    %427 = vmatpush1.msra.mxu0 0.0
    %428 = vmatprep.subr.mxu0 0.0
    %429 = vmatpush1.msra.mxu0 0.0
    %430 = vmatprep.subr.mxu0 0.0
    %431 = vmatpush1.msra.mxu0 0.0
    %432 = vmatprep.mubr.f32.mxu0 0.0
    %433 = vmatmul.mubr.f32.gmra.mrb[0].mxu0 %v272
    %v434 = vpop.f32.mrb[0].mxu0
    %v435 = vadd.f32 0.0, %v434
    %v436 = vpop.f32.mrb[0].mxu0
    %437 = vdwg.mxu0
    %439 = vrot.lane.b32.xlu0 %v367, 32
    %v440 = vpop.permute.xlu0 %439
    %v441 = vsel %vm270, %v440, 0
    %443 = vmatprep.subr.mxu0 0.0
    %444 = vmatpush1.msra.mxu0 %v262
    %445 = vmatprep.subr.mxu0 0.0
    %446 = vmatpush1.msra.mxu0 %v263
    %447 = vmatprep.subr.mxu0 0.0
    %448 = vmatpush1.msra.mxu0 %v264
    %449 = vmatprep.subr.mxu0 0.0
    %450 = vmatpush1.msra.mxu0 %v265
    %451 = vmatprep.subr.mxu0 0.0
    %452 = vmatpush1.msra.mxu0 0.0
    %453 = vmatprep.subr.mxu0 0.0
    %454 = vmatpush1.msra.mxu0 0.0
    %455 = vmatprep.subr.mxu0 0.0
    %456 = vmatpush1.msra.mxu0 0.0
    %457 = vmatprep.subr.mxu0 0.0
    %458 = vmatpush1.msra.mxu0 0.0
    %459 = vmatprep.subr.mxu0 0.0
    %460 = vmatpush1.msra.mxu0 0.0
    %461 = vmatprep.subr.mxu0 0.0
    %462 = vmatpush1.msra.mxu0 0.0
    %463 = vmatprep.subr.mxu0 0.0
    %464 = vmatpush1.msra.mxu0 0.0
    %465 = vmatprep.subr.mxu0 0.0
    %466 = vmatpush1.msra.mxu0 0.0
    %467 = vmatprep.subr.mxu0 0.0
    %468 = vmatpush1.msra.mxu0 0.0
    %469 = vmatprep.subr.mxu0 0.0
    %470 = vmatpush1.msra.mxu0 0.0
    %471 = vmatprep.subr.mxu0 0.0
    %472 = vmatpush1.msra.mxu0 0.0
    %473 = vmatprep.subr.mxu0 0.0
    %474 = vmatpush1.msra.mxu0 0.0
    %475 = vmatprep.subr.mxu0 0.0
    %476 = vmatpush1.msra.mxu0 0.0
    %477 = vmatprep.subr.mxu0 0.0
    %478 = vmatpush1.msra.mxu0 0.0
    %479 = vmatprep.subr.mxu0 0.0
    %480 = vmatpush1.msra.mxu0 0.0
    %481 = vmatprep.subr.mxu0 0.0
    %482 = vmatpush1.msra.mxu0 0.0
    %483 = vmatprep.subr.mxu0 0.0
    %484 = vmatpush1.msra.mxu0 0.0
    %485 = vmatprep.subr.mxu0 0.0
    %486 = vmatpush1.msra.mxu0 0.0
    %487 = vmatprep.subr.mxu0 0.0
    %488 = vmatpush1.msra.mxu0 0.0
    %489 = vmatprep.subr.mxu0 0.0
    %490 = vmatpush1.msra.mxu0 0.0
    %491 = vmatprep.subr.mxu0 0.0
    %492 = vmatpush1.msra.mxu0 0.0
    %493 = vmatprep.subr.mxu0 0.0
    %494 = vmatpush1.msra.mxu0 0.0
    %495 = vmatprep.subr.mxu0 0.0
    %496 = vmatpush1.msra.mxu0 0.0
    %497 = vmatprep.subr.mxu0 0.0
    %498 = vmatpush1.msra.mxu0 0.0
    %499 = vmatprep.subr.mxu0 0.0
    %500 = vmatpush1.msra.mxu0 0.0
    %501 = vmatprep.subr.mxu0 0.0
    %502 = vmatpush1.msra.mxu0 0.0
    %503 = vmatprep.subr.mxu0 0.0
    %504 = vmatpush1.msra.mxu0 0.0
    %505 = vmatprep.subr.mxu0 0.0
    %506 = vmatpush1.msra.mxu0 0.0
    %507 = vmatprep.mubr.f32.mxu0 0.0
    %508 = vmatmul.mubr.f32.gmra.mrb[0].mxu0 %v441
    %v509 = vpop.f32.mrb[0].mxu0
    %v510 = vadd.f32 %v435, %v509
    %v511 = vpop.f32.mrb[0].mxu0
    %512 = vdwg.mxu0
    %v513 = vadd.f32 %v510, %v250
    %v514 = vsub.f32 0.0, %v513
    %v515 = vmul.f32 %v514, 1.442695
    %v516 = vpow.pop %v515
    %v517 = vadd.f32 %v516, 1.0
    %v518 = vrcp.pop %v517
    %v519 = vtanh.pop %v513
    %v520 = vmul.f32 %v518, 0.0
    %522 = vrot.lane.b32.xlu0 %v519, 64
    %v523 = vpop.permute.xlu0 %522
    %v525 = vmul.f32 %v518, %v523
    %527 = vrot.lane.b32.xlu0 %v525, 32
    %v528 = vpop.permute.xlu0 %527
    %v530 = vadd.f32 %v520, %v528
    %v531 = vtanh.pop %v530
    %533 = vrot.lane.b32.xlu0 %v531, 64
    %v534 = vpop.permute.xlu0 %533
    %v536 = vmul.f32 %v518, %v534
    %537 = vrot.lane.b32.xlu0 %v257, 96
    %v538 = vpop.permute.xlu0 %537
    %v540 = vmul.f32 %v536, %v538
    %542 = vrot.lane.b32.xlu0 %v540, 32
    %v543 = vpop.permute.xlu0 %542
    %v545 = vsel %vm270, %v543, 0.0
    %546 = vadd.xlane.f32.xlu0 %v545
    %v547 = vpop.xlane.xlu0 %546
    %548 = vmatprep.subr.mxu0 0.0
    %549 = vmatpush1.msra.mxu0 %v258
    %550 = vmatprep.subr.mxu0 0.0
    %551 = vmatpush1.msra.mxu0 %v259
    %552 = vmatprep.subr.mxu0 0.0
    %553 = vmatpush1.msra.mxu0 %v260
    %554 = vmatprep.subr.mxu0 0.0
    %555 = vmatpush1.msra.mxu0 %v261
    %556 = vmatprep.subr.mxu0 0.0
    %557 = vmatpush1.msra.mxu0 0.0
    %558 = vmatprep.subr.mxu0 0.0
    %559 = vmatpush1.msra.mxu0 0.0
    %560 = vmatprep.subr.mxu0 0.0
    %561 = vmatpush1.msra.mxu0 0.0
    %562 = vmatprep.subr.mxu0 0.0
    %563 = vmatpush1.msra.mxu0 0.0
    %564 = vmatprep.subr.mxu0 0.0
    %565 = vmatpush1.msra.mxu0 0.0
    %566 = vmatprep.subr.mxu0 0.0
    %567 = vmatpush1.msra.mxu0 0.0
    %568 = vmatprep.subr.mxu0 0.0
    %569 = vmatpush1.msra.mxu0 0.0
    %570 = vmatprep.subr.mxu0 0.0
    %571 = vmatpush1.msra.mxu0 0.0
    %572 = vmatprep.subr.mxu0 0.0
    %573 = vmatpush1.msra.mxu0 0.0
    %574 = vmatprep.subr.mxu0 0.0
    %575 = vmatpush1.msra.mxu0 0.0
    %576 = vmatprep.subr.mxu0 0.0
    %577 = vmatpush1.msra.mxu0 0.0
    %578 = vmatprep.subr.mxu0 0.0
    %579 = vmatpush1.msra.mxu0 0.0
    %580 = vmatprep.subr.mxu0 0.0
    %581 = vmatpush1.msra.mxu0 0.0
    %582 = vmatprep.subr.mxu0 0.0
    %583 = vmatpush1.msra.mxu0 0.0
    %584 = vmatprep.subr.mxu0 0.0
    %585 = vmatpush1.msra.mxu0 0.0
    %586 = vmatprep.subr.mxu0 0.0
    %587 = vmatpush1.msra.mxu0 0.0
    %588 = vmatprep.subr.mxu0 0.0
    %589 = vmatpush1.msra.mxu0 0.0
    %590 = vmatprep.subr.mxu0 0.0
    %591 = vmatpush1.msra.mxu0 0.0
    %592 = vmatprep.subr.mxu0 0.0
    %593 = vmatpush1.msra.mxu0 0.0
    %594 = vmatprep.subr.mxu0 0.0
    %595 = vmatpush1.msra.mxu0 0.0
    %596 = vmatprep.subr.mxu0 0.0
    %597 = vmatpush1.msra.mxu0 0.0
    %598 = vmatprep.subr.mxu0 0.0
    %599 = vmatpush1.msra.mxu0 0.0
    %600 = vmatprep.subr.mxu0 0.0
    %601 = vmatpush1.msra.mxu0 0.0
    %602 = vmatprep.subr.mxu0 0.0
    %603 = vmatpush1.msra.mxu0 0.0
    %604 = vmatprep.subr.mxu0 0.0
    %605 = vmatpush1.msra.mxu0 0.0
    %606 = vmatprep.subr.mxu0 0.0
    %607 = vmatpush1.msra.mxu0 0.0
    %608 = vmatprep.subr.mxu0 0.0
    %609 = vmatpush1.msra.mxu0 0.0
    %610 = vmatprep.subr.mxu0 0.0
    %611 = vmatpush1.msra.mxu0 0.0
    %612 = vmatprep.mubr.f32.mxu0 0.0
    %613 = vmatmul.mubr.f32.gmra.mrb[0].mxu0 %v441
    %v614 = vpop.f32.mrb[0].mxu0
    %v615 = vadd.f32 0.0, %v614
    %v616 = vpop.f32.mrb[0].mxu0
    %617 = vdwg.mxu0
    %v618 = vadd.f32 %v212, %v615
    %v619 = vsub.f32 0.0, %v618
    %v620 = vmul.f32 %v619, 1.442695
    %v621 = vpow.pop %v620
    %v622 = vadd.f32 %v621, 1.0
    %v623 = vrcp.pop %v622
    %v624 = vtanh.pop %v618
    %v625 = vmul.f32 %v623, %v361
    %627 = vrot.lane.b32.xlu0 %v624, 64
    %v628 = vpop.permute.xlu0 %627
    %v630 = vmul.f32 %v623, %v628
    %632 = vrot.lane.b32.xlu0 %v630, 32
    %v633 = vpop.permute.xlu0 %632
    %v635 = vadd.f32 %v625, %v633
    %v636 = vtanh.pop %v635
    %638 = vrot.lane.b32.xlu0 %v636, 64
    %v639 = vpop.permute.xlu0 %638
    %v641 = vmul.f32 %v623, %v639
    %643 = vrot.lane.b32.xlu0 %v536, 32
    %v644 = vpop.permute.xlu0 %643
    %v645 = vsel %vm270, %v644, 0
    %647 = vmatprep.subr.mxu0 0.0
    %648 = vmatpush1.msra.mxu0 %v266
    %649 = vmatprep.subr.mxu0 0.0
    %650 = vmatpush1.msra.mxu0 %v267
    %651 = vmatprep.subr.mxu0 0.0
    %652 = vmatpush1.msra.mxu0 %v268
    %653 = vmatprep.subr.mxu0 0.0
    %654 = vmatpush1.msra.mxu0 %v269
    %655 = vmatprep.subr.mxu0 0.0
    %656 = vmatpush1.msra.mxu0 0.0
    %657 = vmatprep.subr.mxu0 0.0
    %658 = vmatpush1.msra.mxu0 0.0
    %659 = vmatprep.subr.mxu0 0.0
    %660 = vmatpush1.msra.mxu0 0.0
    %661 = vmatprep.subr.mxu0 0.0
    %662 = vmatpush1.msra.mxu0 0.0
    %663 = vmatprep.subr.mxu0 0.0
    %664 = vmatpush1.msra.mxu0 0.0
    %665 = vmatprep.subr.mxu0 0.0
    %666 = vmatpush1.msra.mxu0 0.0
    %667 = vmatprep.subr.mxu0 0.0
    %668 = vmatpush1.msra.mxu0 0.0
    %669 = vmatprep.subr.mxu0 0.0
    %670 = vmatpush1.msra.mxu0 0.0
    %671 = vmatprep.subr.mxu0 0.0
    %672 = vmatpush1.msra.mxu0 0.0
    %673 = vmatprep.subr.mxu0 0.0
    %674 = vmatpush1.msra.mxu0 0.0
    %675 = vmatprep.subr.mxu0 0.0
    %676 = vmatpush1.msra.mxu0 0.0
    %677 = vmatprep.subr.mxu0 0.0
    %678 = vmatpush1.msra.mxu0 0.0
    %679 = vmatprep.subr.mxu0 0.0
    %680 = vmatpush1.msra.mxu0 0.0
    %681 = vmatprep.subr.mxu0 0.0
    %682 = vmatpush1.msra.mxu0 0.0
    %683 = vmatprep.subr.mxu0 0.0
    %684 = vmatpush1.msra.mxu0 0.0
    %685 = vmatprep.subr.mxu0 0.0
    %686 = vmatpush1.msra.mxu0 0.0
    %687 = vmatprep.subr.mxu0 0.0
    %688 = vmatpush1.msra.mxu0 0.0
    %689 = vmatprep.subr.mxu0 0.0
    %690 = vmatpush1.msra.mxu0 0.0
    %691 = vmatprep.subr.mxu0 0.0
    %692 = vmatpush1.msra.mxu0 0.0
    %693 = vmatprep.subr.mxu0 0.0
    %694 = vmatpush1.msra.mxu0 0.0
    %695 = vmatprep.subr.mxu0 0.0
    %696 = vmatpush1.msra.mxu0 0.0
    %697 = vmatprep.subr.mxu0 0.0
    %698 = vmatpush1.msra.mxu0 0.0
    %699 = vmatprep.subr.mxu0 0.0
    %700 = vmatpush1.msra.mxu0 0.0
    %701 = vmatprep.subr.mxu0 0.0
    %702 = vmatpush1.msra.mxu0 0.0
    %703 = vmatprep.subr.mxu0 0.0
    %704 = vmatpush1.msra.mxu0 0.0
    %705 = vmatprep.subr.mxu0 0.0
    %706 = vmatpush1.msra.mxu0 0.0
    %707 = vmatprep.subr.mxu0 0.0
    %708 = vmatpush1.msra.mxu0 0.0
    %709 = vmatprep.subr.mxu0 0.0
    %710 = vmatpush1.msra.mxu0 0.0
    %711 = vmatprep.mubr.f32.mxu0 0.0
    %712 = vmatmul.mubr.f32.gmra.mrb[0].mxu0 %v645
    %v713 = vpop.f32.mrb[0].mxu0
    %v714 = vadd.f32 0.0, %v713
    %v715 = vpop.f32.mrb[0].mxu0
    %716 = vdwg.mxu0
    %718 = vrot.lane.b32.xlu0 %v641, 32
    %v719 = vpop.permute.xlu0 %718
    %v720 = vsel %vm270, %v719, 0
    %722 = vmatprep.subr.mxu0 0.0
    %723 = vmatpush1.msra.mxu0 %v262
    %724 = vmatprep.subr.mxu0 0.0
    %725 = vmatpush1.msra.mxu0 %v263
    %726 = vmatprep.subr.mxu0 0.0
    %727 = vmatpush1.msra.mxu0 %v264
    %728 = vmatprep.subr.mxu0 0.0
    %729 = vmatpush1.msra.mxu0 %v265
    %730 = vmatprep.subr.mxu0 0.0
    %731 = vmatpush1.msra.mxu0 0.0
    %732 = vmatprep.subr.mxu0 0.0
    %733 = vmatpush1.msra.mxu0 0.0
    %734 = vmatprep.subr.mxu0 0.0
    %735 = vmatpush1.msra.mxu0 0.0
    %736 = vmatprep.subr.mxu0 0.0
    %737 = vmatpush1.msra.mxu0 0.0
    %738 = vmatprep.subr.mxu0 0.0
    %739 = vmatpush1.msra.mxu0 0.0
    %740 = vmatprep.subr.mxu0 0.0
    %741 = vmatpush1.msra.mxu0 0.0
    %742 = vmatprep.subr.mxu0 0.0
    %743 = vmatpush1.msra.mxu0 0.0
    %744 = vmatprep.subr.mxu0 0.0
    %745 = vmatpush1.msra.mxu0 0.0
    %746 = vmatprep.subr.mxu0 0.0
    %747 = vmatpush1.msra.mxu0 0.0
    %748 = vmatprep.subr.mxu0 0.0
    %749 = vmatpush1.msra.mxu0 0.0
    %750 = vmatprep.subr.mxu0 0.0
    %751 = vmatpush1.msra.mxu0 0.0
    %752 = vmatprep.subr.mxu0 0.0
    %753 = vmatpush1.msra.mxu0 0.0
    %754 = vmatprep.subr.mxu0 0.0
    %755 = vmatpush1.msra.mxu0 0.0
    %756 = vmatprep.subr.mxu0 0.0
    %757 = vmatpush1.msra.mxu0 0.0
    %758 = vmatprep.subr.mxu0 0.0
    %759 = vmatpush1.msra.mxu0 0.0
    %760 = vmatprep.subr.mxu0 0.0
    %761 = vmatpush1.msra.mxu0 0.0
    %762 = vmatprep.subr.mxu0 0.0
    %763 = vmatpush1.msra.mxu0 0.0
    %764 = vmatprep.subr.mxu0 0.0
    %765 = vmatpush1.msra.mxu0 0.0
    %766 = vmatprep.subr.mxu0 0.0
    %767 = vmatpush1.msra.mxu0 0.0
    %768 = vmatprep.subr.mxu0 0.0
    %769 = vmatpush1.msra.mxu0 0.0
    %770 = vmatprep.subr.mxu0 0.0
    %771 = vmatpush1.msra.mxu0 0.0
    %772 = vmatprep.subr.mxu0 0.0
    %773 = vmatpush1.msra.mxu0 0.0
    %774 = vmatprep.subr.mxu0 0.0
    %775 = vmatpush1.msra.mxu0 0.0
    %776 = vmatprep.subr.mxu0 0.0
    %777 = vmatpush1.msra.mxu0 0.0
    %778 = vmatprep.subr.mxu0 0.0
    %779 = vmatpush1.msra.mxu0 0.0
    %780 = vmatprep.subr.mxu0 0.0
    %781 = vmatpush1.msra.mxu0 0.0
    %782 = vmatprep.subr.mxu0 0.0
    %783 = vmatpush1.msra.mxu0 0.0
    %784 = vmatprep.subr.mxu0 0.0
    %785 = vmatpush1.msra.mxu0 0.0
    %786 = vmatprep.mubr.f32.mxu0 0.0
    %787 = vmatmul.mubr.f32.gmra.mrb[0].mxu0 %v720
    %v788 = vpop.f32.mrb[0].mxu0
    %v789 = vadd.f32 %v714, %v788
    %v790 = vpop.f32.mrb[0].mxu0
    %791 = vdwg.mxu0
    %v792 = vadd.f32 %v789, %v250
    %v793 = vsub.f32 0.0, %v792
    %v794 = vmul.f32 %v793, 1.442695
    %v795 = vpow.pop %v794
    %v796 = vadd.f32 %v795, 1.0
    %v797 = vrcp.pop %v796
    %v798 = vtanh.pop %v792
    %v799 = vmul.f32 %v797, %v530
    %801 = vrot.lane.b32.xlu0 %v798, 64
    %v802 = vpop.permute.xlu0 %801
    %v804 = vmul.f32 %v797, %v802
    %806 = vrot.lane.b32.xlu0 %v804, 32
    %v807 = vpop.permute.xlu0 %806
    %v809 = vadd.f32 %v799, %v807
    %v810 = vtanh.pop %v809
    %812 = vrot.lane.b32.xlu0 %v810, 64
    %v813 = vpop.permute.xlu0 %812
    %v815 = vmul.f32 %v797, %v813
    %v816 = vmul.f32 %v815, %v538
    %818 = vrot.lane.b32.xlu0 %v816, 32
    %v819 = vpop.permute.xlu0 %818
    %v821 = vsel %vm270, %v819, 0.0
    %822 = vadd.xlane.f32.xlu0 %v821
    %v823 = vpop.xlane.xlu0 %822
    %824 = vmatprep.subr.mxu0 0.0
    %825 = vmatpush1.msra.mxu0 %v258
    %826 = vmatprep.subr.mxu0 0.0
    %827 = vmatpush1.msra.mxu0 %v259
    %828 = vmatprep.subr.mxu0 0.0
    %829 = vmatpush1.msra.mxu0 %v260
    %830 = vmatprep.subr.mxu0 0.0
    %831 = vmatpush1.msra.mxu0 %v261
    %832 = vmatprep.subr.mxu0 0.0
    %833 = vmatpush1.msra.mxu0 0.0
    %834 = vmatprep.subr.mxu0 0.0
    %835 = vmatpush1.msra.mxu0 0.0
    %836 = vmatprep.subr.mxu0 0.0
    %837 = vmatpush1.msra.mxu0 0.0
    %838 = vmatprep.subr.mxu0 0.0
    %839 = vmatpush1.msra.mxu0 0.0
    %840 = vmatprep.subr.mxu0 0.0
    %841 = vmatpush1.msra.mxu0 0.0
    %842 = vmatprep.subr.mxu0 0.0
    %843 = vmatpush1.msra.mxu0 0.0
    %844 = vmatprep.subr.mxu0 0.0
    %845 = vmatpush1.msra.mxu0 0.0
    %846 = vmatprep.subr.mxu0 0.0
    %847 = vmatpush1.msra.mxu0 0.0
    %848 = vmatprep.subr.mxu0 0.0
    %849 = vmatpush1.msra.mxu0 0.0
    %850 = vmatprep.subr.mxu0 0.0
    %851 = vmatpush1.msra.mxu0 0.0
    %852 = vmatprep.subr.mxu0 0.0
    %853 = vmatpush1.msra.mxu0 0.0
    %854 = vmatprep.subr.mxu0 0.0
    %855 = vmatpush1.msra.mxu0 0.0
    %856 = vmatprep.subr.mxu0 0.0
    %857 = vmatpush1.msra.mxu0 0.0
    %858 = vmatprep.subr.mxu0 0.0
    %859 = vmatpush1.msra.mxu0 0.0
    %860 = vmatprep.subr.mxu0 0.0
    %861 = vmatpush1.msra.mxu0 0.0
    %862 = vmatprep.subr.mxu0 0.0
    %863 = vmatpush1.msra.mxu0 0.0
    %864 = vmatprep.subr.mxu0 0.0
    %865 = vmatpush1.msra.mxu0 0.0
    %866 = vmatprep.subr.mxu0 0.0
    %867 = vmatpush1.msra.mxu0 0.0
    %868 = vmatprep.subr.mxu0 0.0
    %869 = vmatpush1.msra.mxu0 0.0
    %870 = vmatprep.subr.mxu0 0.0
    %871 = vmatpush1.msra.mxu0 0.0
    %872 = vmatprep.subr.mxu0 0.0
    %873 = vmatpush1.msra.mxu0 0.0
    %874 = vmatprep.subr.mxu0 0.0
    %875 = vmatpush1.msra.mxu0 0.0
    %876 = vmatprep.subr.mxu0 0.0
    %877 = vmatpush1.msra.mxu0 0.0
    %878 = vmatprep.subr.mxu0 0.0
    %879 = vmatpush1.msra.mxu0 0.0
    %880 = vmatprep.subr.mxu0 0.0
    %881 = vmatpush1.msra.mxu0 0.0
    %882 = vmatprep.subr.mxu0 0.0
    %883 = vmatpush1.msra.mxu0 0.0
    %884 = vmatprep.subr.mxu0 0.0
    %885 = vmatpush1.msra.mxu0 0.0
    %886 = vmatprep.subr.mxu0 0.0
    %887 = vmatpush1.msra.mxu0 0.0
    %888 = vmatprep.mubr.f32.mxu0 0.0
    %889 = vmatmul.mubr.f32.gmra.mrb[0].mxu0 %v720
    %v890 = vpop.f32.mrb[0].mxu0
    %v891 = vadd.f32 0.0, %v890
    %v892 = vpop.f32.mrb[0].mxu0
    %893 = vdwg.mxu0
    %v894 = vadd.f32 %v217, %v891
    %v895 = vsub.f32 0.0, %v894
    %v896 = vmul.f32 %v895, 1.442695
    %v897 = vpow.pop %v896
    %v898 = vadd.f32 %v897, 1.0
    %v899 = vrcp.pop %v898
    %v900 = vtanh.pop %v894
    %v901 = vmul.f32 %v899, %v635
    %903 = vrot.lane.b32.xlu0 %v900, 64
    %v904 = vpop.permute.xlu0 %903
    %v906 = vmul.f32 %v899, %v904
    %908 = vrot.lane.b32.xlu0 %v906, 32
    %v909 = vpop.permute.xlu0 %908
    %v911 = vadd.f32 %v901, %v909
    %v912 = vtanh.pop %v911
    %914 = vrot.lane.b32.xlu0 %v912, 64
    %v915 = vpop.permute.xlu0 %914
    %v917 = vmul.f32 %v899, %v915
    %919 = vrot.lane.b32.xlu0 %v815, 32
    %v920 = vpop.permute.xlu0 %919
    %v921 = vsel %vm270, %v920, 0
    %923 = vmatprep.subr.mxu0 0.0
    %924 = vmatpush1.msra.mxu0 %v266
    %925 = vmatprep.subr.mxu0 0.0
    %926 = vmatpush1.msra.mxu0 %v267
    %927 = vmatprep.subr.mxu0 0.0
    %928 = vmatpush1.msra.mxu0 %v268
    %929 = vmatprep.subr.mxu0 0.0
    %930 = vmatpush1.msra.mxu0 %v269
    %931 = vmatprep.subr.mxu0 0.0
    %932 = vmatpush1.msra.mxu0 0.0
    %933 = vmatprep.subr.mxu0 0.0
    %934 = vmatpush1.msra.mxu0 0.0
    %935 = vmatprep.subr.mxu0 0.0
    %936 = vmatpush1.msra.mxu0 0.0
    %937 = vmatprep.subr.mxu0 0.0
    %938 = vmatpush1.msra.mxu0 0.0
    %939 = vmatprep.subr.mxu0 0.0
    %940 = vmatpush1.msra.mxu0 0.0
    %941 = vmatprep.subr.mxu0 0.0
    %942 = vmatpush1.msra.mxu0 0.0
    %943 = vmatprep.subr.mxu0 0.0
    %944 = vmatpush1.msra.mxu0 0.0
    %945 = vmatprep.subr.mxu0 0.0
    %946 = vmatpush1.msra.mxu0 0.0
    %947 = vmatprep.subr.mxu0 0.0
    %948 = vmatpush1.msra.mxu0 0.0
    %949 = vmatprep.subr.mxu0 0.0
    %950 = vmatpush1.msra.mxu0 0.0
    %951 = vmatprep.subr.mxu0 0.0
    %952 = vmatpush1.msra.mxu0 0.0
    %953 = vmatprep.subr.mxu0 0.0
    %954 = vmatpush1.msra.mxu0 0.0
    %955 = vmatprep.subr.mxu0 0.0
    %956 = vmatpush1.msra.mxu0 0.0
    %957 = vmatprep.subr.mxu0 0.0
    %958 = vmatpush1.msra.mxu0 0.0
    %959 = vmatprep.subr.mxu0 0.0
    %960 = vmatpush1.msra.mxu0 0.0
    %961 = vmatprep.subr.mxu0 0.0
    %962 = vmatpush1.msra.mxu0 0.0
    %963 = vmatprep.subr.mxu0 0.0
    %964 = vmatpush1.msra.mxu0 0.0
    %965 = vmatprep.subr.mxu0 0.0
    %966 = vmatpush1.msra.mxu0 0.0
    %967 = vmatprep.subr.mxu0 0.0
    %968 = vmatpush1.msra.mxu0 0.0
    %969 = vmatprep.subr.mxu0 0.0
    %970 = vmatpush1.msra.mxu0 0.0
    %971 = vmatprep.subr.mxu0 0.0
    %972 = vmatpush1.msra.mxu0 0.0
    %973 = vmatprep.subr.mxu0 0.0
    %974 = vmatpush1.msra.mxu0 0.0
    %975 = vmatprep.subr.mxu0 0.0
    %976 = vmatpush1.msra.mxu0 0.0
    %977 = vmatprep.subr.mxu0 0.0
    %978 = vmatpush1.msra.mxu0 0.0
    %979 = vmatprep.subr.mxu0 0.0
    %980 = vmatpush1.msra.mxu0 0.0
    %981 = vmatprep.subr.mxu0 0.0
    %982 = vmatpush1.msra.mxu0 0.0
    %983 = vmatprep.subr.mxu0 0.0
    %984 = vmatpush1.msra.mxu0 0.0
    %985 = vmatprep.subr.mxu0 0.0
    %986 = vmatpush1.msra.mxu0 0.0
    %987 = vmatprep.mubr.f32.mxu0 0.0
    %988 = vmatmul.mubr.f32.gmra.mrb[0].mxu0 %v921
    %v989 = vpop.f32.mrb[0].mxu0
    %v990 = vadd.f32 0.0, %v989
    %v991 = vpop.f32.mrb[0].mxu0
    %992 = vdwg.mxu0
    %994 = vrot.lane.b32.xlu0 %v917, 32
    %v995 = vpop.permute.xlu0 %994
    %v996 = vsel %vm270, %v995, 0
    %998 = vmatprep.subr.mxu0 0.0
    %999 = vmatpush1.msra.mxu0 %v262
    %1000 = vmatprep.subr.mxu0 0.0
    %1001 = vmatpush1.msra.mxu0 %v263
    %1002 = vmatprep.subr.mxu0 0.0
    %1003 = vmatpush1.msra.mxu0 %v264
    %1004 = vmatprep.subr.mxu0 0.0
    %1005 = vmatpush1.msra.mxu0 %v265
    %1006 = vmatprep.subr.mxu0 0.0
    %1007 = vmatpush1.msra.mxu0 0.0
    %1008 = vmatprep.subr.mxu0 0.0
    %1009 = vmatpush1.msra.mxu0 0.0
    %1010 = vmatprep.subr.mxu0 0.0
    %1011 = vmatpush1.msra.mxu0 0.0
    %1012 = vmatprep.subr.mxu0 0.0
    %1013 = vmatpush1.msra.mxu0 0.0
    %1014 = vmatprep.subr.mxu0 0.0
    %1015 = vmatpush1.msra.mxu0 0.0
    %1016 = vmatprep.subr.mxu0 0.0
    %1017 = vmatpush1.msra.mxu0 0.0
    %1018 = vmatprep.subr.mxu0 0.0
    %1019 = vmatpush1.msra.mxu0 0.0
    %1020 = vmatprep.subr.mxu0 0.0
    %1021 = vmatpush1.msra.mxu0 0.0
    %1022 = vmatprep.subr.mxu0 0.0
    %1023 = vmatpush1.msra.mxu0 0.0
    %1024 = vmatprep.subr.mxu0 0.0
    %1025 = vmatpush1.msra.mxu0 0.0
    %1026 = vmatprep.subr.mxu0 0.0
    %1027 = vmatpush1.msra.mxu0 0.0
    %1028 = vmatprep.subr.mxu0 0.0
    %1029 = vmatpush1.msra.mxu0 0.0
    %1030 = vmatprep.subr.mxu0 0.0
    %1031 = vmatpush1.msra.mxu0 0.0
    %1032 = vmatprep.subr.mxu0 0.0
    %1033 = vmatpush1.msra.mxu0 0.0
    %1034 = vmatprep.subr.mxu0 0.0
    %1035 = vmatpush1.msra.mxu0 0.0
    %1036 = vmatprep.subr.mxu0 0.0
    %1037 = vmatpush1.msra.mxu0 0.0
    %1038 = vmatprep.subr.mxu0 0.0
    %1039 = vmatpush1.msra.mxu0 0.0
    %1040 = vmatprep.subr.mxu0 0.0
    %1041 = vmatpush1.msra.mxu0 0.0
    %1042 = vmatprep.subr.mxu0 0.0
    %1043 = vmatpush1.msra.mxu0 0.0
    %1044 = vmatprep.subr.mxu0 0.0
    %1045 = vmatpush1.msra.mxu0 0.0
    %1046 = vmatprep.subr.mxu0 0.0
    %1047 = vmatpush1.msra.mxu0 0.0
    %1048 = vmatprep.subr.mxu0 0.0
    %1049 = vmatpush1.msra.mxu0 0.0
    %1050 = vmatprep.subr.mxu0 0.0
    %1051 = vmatpush1.msra.mxu0 0.0
    %1052 = vmatprep.subr.mxu0 0.0
    %1053 = vmatpush1.msra.mxu0 0.0
    %1054 = vmatprep.subr.mxu0 0.0
    %1055 = vmatpush1.msra.mxu0 0.0
    %1056 = vmatprep.subr.mxu0 0.0
    %1057 = vmatpush1.msra.mxu0 0.0
    %1058 = vmatprep.subr.mxu0 0.0
    %1059 = vmatpush1.msra.mxu0 0.0
    %1060 = vmatprep.subr.mxu0 0.0
    %1061 = vmatpush1.msra.mxu0 0.0
    %1062 = vmatprep.mubr.f32.mxu0 0.0
    %1063 = vmatmul.mubr.f32.gmra.mrb[0].mxu0 %v996
    %v1064 = vpop.f32.mrb[0].mxu0
    %v1065 = vadd.f32 %v990, %v1064
    %v1066 = vpop.f32.mrb[0].mxu0
    %1067 = vdwg.mxu0
    %v1068 = vadd.f32 %v1065, %v250
    %v1069 = vsub.f32 0.0, %v1068
    %v1070 = vmul.f32 %v1069, 1.442695
    %v1071 = vpow.pop %v1070
    %v1072 = vadd.f32 %v1071, 1.0
    %v1073 = vrcp.pop %v1072
    %v1074 = vtanh.pop %v1068
    %v1075 = vmul.f32 %v1073, %v809
    %1077 = vrot.lane.b32.xlu0 %v1074, 64
    %v1078 = vpop.permute.xlu0 %1077
    %v1080 = vmul.f32 %v1073, %v1078
    %1082 = vrot.lane.b32.xlu0 %v1080, 32
    %v1083 = vpop.permute.xlu0 %1082
    %v1085 = vadd.f32 %v1075, %v1083
    %v1086 = vtanh.pop %v1085
    %1088 = vrot.lane.b32.xlu0 %v1086, 64
    %v1089 = vpop.permute.xlu0 %1088
    %v1091 = vmul.f32 %v1073, %v1089
    %v1092 = vmul.f32 %v1091, %v538
    %1094 = vrot.lane.b32.xlu0 %v1092, 32
    %v1095 = vpop.permute.xlu0 %1094
    %v1097 = vsel %vm270, %v1095, 0.0
    %1098 = vadd.xlane.f32.xlu0 %v1097
    %v1099 = vpop.xlane.xlu0 %1098
    %1100 = vmatprep.subr.mxu0 0.0
    %1101 = vmatpush1.msra.mxu0 %v258
    %1102 = vmatprep.subr.mxu0 0.0
    %1103 = vmatpush1.msra.mxu0 %v259
    %1104 = vmatprep.subr.mxu0 0.0
    %1105 = vmatpush1.msra.mxu0 %v260
    %1106 = vmatprep.subr.mxu0 0.0
    %1107 = vmatpush1.msra.mxu0 %v261
    %1108 = vmatprep.subr.mxu0 0.0
    %1109 = vmatpush1.msra.mxu0 0.0
    %1110 = vmatprep.subr.mxu0 0.0
    %1111 = vmatpush1.msra.mxu0 0.0
    %1112 = vmatprep.subr.mxu0 0.0
    %1113 = vmatpush1.msra.mxu0 0.0
    %1114 = vmatprep.subr.mxu0 0.0
    %1115 = vmatpush1.msra.mxu0 0.0
    %1116 = vmatprep.subr.mxu0 0.0
    %1117 = vmatpush1.msra.mxu0 0.0
    %1118 = vmatprep.subr.mxu0 0.0
    %1119 = vmatpush1.msra.mxu0 0.0
    %1120 = vmatprep.subr.mxu0 0.0
    %1121 = vmatpush1.msra.mxu0 0.0
    %1122 = vmatprep.subr.mxu0 0.0
    %1123 = vmatpush1.msra.mxu0 0.0
    %1124 = vmatprep.subr.mxu0 0.0
    %1125 = vmatpush1.msra.mxu0 0.0
    %1126 = vmatprep.subr.mxu0 0.0
    %1127 = vmatpush1.msra.mxu0 0.0
    %1128 = vmatprep.subr.mxu0 0.0
    %1129 = vmatpush1.msra.mxu0 0.0
    %1130 = vmatprep.subr.mxu0 0.0
    %1131 = vmatpush1.msra.mxu0 0.0
    %1132 = vmatprep.subr.mxu0 0.0
    %1133 = vmatpush1.msra.mxu0 0.0
    %1134 = vmatprep.subr.mxu0 0.0
    %1135 = vmatpush1.msra.mxu0 0.0
    %1136 = vmatprep.subr.mxu0 0.0
    %1137 = vmatpush1.msra.mxu0 0.0
    %1138 = vmatprep.subr.mxu0 0.0
    %1139 = vmatpush1.msra.mxu0 0.0
    %1140 = vmatprep.subr.mxu0 0.0
    %1141 = vmatpush1.msra.mxu0 0.0
    %1142 = vmatprep.subr.mxu0 0.0
    %1143 = vmatpush1.msra.mxu0 0.0
    %1144 = vmatprep.subr.mxu0 0.0
    %1145 = vmatpush1.msra.mxu0 0.0
    %1146 = vmatprep.subr.mxu0 0.0
    %1147 = vmatpush1.msra.mxu0 0.0
    %1148 = vmatprep.subr.mxu0 0.0
    %1149 = vmatpush1.msra.mxu0 0.0
    %1150 = vmatprep.subr.mxu0 0.0
    %1151 = vmatpush1.msra.mxu0 0.0
    %1152 = vmatprep.subr.mxu0 0.0
    %1153 = vmatpush1.msra.mxu0 0.0
    %1154 = vmatprep.subr.mxu0 0.0
    %1155 = vmatpush1.msra.mxu0 0.0
    %1156 = vmatprep.subr.mxu0 0.0
    %1157 = vmatpush1.msra.mxu0 0.0
    %1158 = vmatprep.subr.mxu0 0.0
    %1159 = vmatpush1.msra.mxu0 0.0
    %1160 = vmatprep.subr.mxu0 0.0
    %1161 = vmatpush1.msra.mxu0 0.0
    %1162 = vmatprep.subr.mxu0 0.0
    %1163 = vmatpush1.msra.mxu0 0.0
    %1164 = vmatprep.mubr.f32.mxu0 0.0
    %1165 = vmatmul.mubr.f32.gmra.mrb[0].mxu0 %v996
    %v1166 = vpop.f32.mrb[0].mxu0
    %v1167 = vadd.f32 0.0, %v1166
    %v1168 = vpop.f32.mrb[0].mxu0
    %1169 = vdwg.mxu0
    %v1170 = vadd.f32 %v222, %v1167
    %v1171 = vsub.f32 0.0, %v1170
    %v1172 = vmul.f32 %v1171, 1.442695
    %v1173 = vpow.pop %v1172
    %v1174 = vadd.f32 %v1173, 1.0
    %v1175 = vrcp.pop %v1174
    %v1176 = vtanh.pop %v1170
    %v1177 = vmul.f32 %v1175, %v911
    %1179 = vrot.lane.b32.xlu0 %v1176, 64
    %v1180 = vpop.permute.xlu0 %1179
    %v1182 = vmul.f32 %v1175, %v1180
    %1184 = vrot.lane.b32.xlu0 %v1182, 32
    %v1185 = vpop.permute.xlu0 %1184
    %v1187 = vadd.f32 %v1177, %v1185
    %v1188 = vtanh.pop %v1187
    %1190 = vrot.lane.b32.xlu0 %v1188, 64
    %v1191 = vpop.permute.xlu0 %1190
    %v1193 = vmul.f32 %v1175, %v1191
    %1195 = vrot.lane.b32.xlu0 %v1091, 32
    %v1196 = vpop.permute.xlu0 %1195
    %v1197 = vsel %vm270, %v1196, 0
    %1199 = vmatprep.subr.mxu0 0.0
    %1200 = vmatpush1.msra.mxu0 %v266
    %1201 = vmatprep.subr.mxu0 0.0
    %1202 = vmatpush1.msra.mxu0 %v267
    %1203 = vmatprep.subr.mxu0 0.0
    %1204 = vmatpush1.msra.mxu0 %v268
    %1205 = vmatprep.subr.mxu0 0.0
    %1206 = vmatpush1.msra.mxu0 %v269
    %1207 = vmatprep.subr.mxu0 0.0
    %1208 = vmatpush1.msra.mxu0 0.0
    %1209 = vmatprep.subr.mxu0 0.0
    %1210 = vmatpush1.msra.mxu0 0.0
    %1211 = vmatprep.subr.mxu0 0.0
    %1212 = vmatpush1.msra.mxu0 0.0
    %1213 = vmatprep.subr.mxu0 0.0
    %1214 = vmatpush1.msra.mxu0 0.0
    %1215 = vmatprep.subr.mxu0 0.0
    %1216 = vmatpush1.msra.mxu0 0.0
    %1217 = vmatprep.subr.mxu0 0.0
    %1218 = vmatpush1.msra.mxu0 0.0
    %1219 = vmatprep.subr.mxu0 0.0
    %1220 = vmatpush1.msra.mxu0 0.0
    %1221 = vmatprep.subr.mxu0 0.0
    %1222 = vmatpush1.msra.mxu0 0.0
    %1223 = vmatprep.subr.mxu0 0.0
    %1224 = vmatpush1.msra.mxu0 0.0
    %1225 = vmatprep.subr.mxu0 0.0
    %1226 = vmatpush1.msra.mxu0 0.0
    %1227 = vmatprep.subr.mxu0 0.0
    %1228 = vmatpush1.msra.mxu0 0.0
    %1229 = vmatprep.subr.mxu0 0.0
    %1230 = vmatpush1.msra.mxu0 0.0
    %1231 = vmatprep.subr.mxu0 0.0
    %1232 = vmatpush1.msra.mxu0 0.0
    %1233 = vmatprep.subr.mxu0 0.0
    %1234 = vmatpush1.msra.mxu0 0.0
    %1235 = vmatprep.subr.mxu0 0.0
    %1236 = vmatpush1.msra.mxu0 0.0
    %1237 = vmatprep.subr.mxu0 0.0
    %1238 = vmatpush1.msra.mxu0 0.0
    %1239 = vmatprep.subr.mxu0 0.0
    %1240 = vmatpush1.msra.mxu0 0.0
    %1241 = vmatprep.subr.mxu0 0.0
    %1242 = vmatpush1.msra.mxu0 0.0
    %1243 = vmatprep.subr.mxu0 0.0
    %1244 = vmatpush1.msra.mxu0 0.0
    %1245 = vmatprep.subr.mxu0 0.0
    %1246 = vmatpush1.msra.mxu0 0.0
    %1247 = vmatprep.subr.mxu0 0.0
    %1248 = vmatpush1.msra.mxu0 0.0
    %1249 = vmatprep.subr.mxu0 0.0
    %1250 = vmatpush1.msra.mxu0 0.0
    %1251 = vmatprep.subr.mxu0 0.0
    %1252 = vmatpush1.msra.mxu0 0.0
    %1253 = vmatprep.subr.mxu0 0.0
    %1254 = vmatpush1.msra.mxu0 0.0
    %1255 = vmatprep.subr.mxu0 0.0
    %1256 = vmatpush1.msra.mxu0 0.0
    %1257 = vmatprep.subr.mxu0 0.0
    %1258 = vmatpush1.msra.mxu0 0.0
    %1259 = vmatprep.subr.mxu0 0.0
    %1260 = vmatpush1.msra.mxu0 0.0
    %1261 = vmatprep.subr.mxu0 0.0
    %1262 = vmatpush1.msra.mxu0 0.0
    %1263 = vmatprep.mubr.f32.mxu0 0.0
    %1264 = vmatmul.mubr.f32.gmra.mrb[0].mxu0 %v1197
    %v1265 = vpop.f32.mrb[0].mxu0
    %v1266 = vadd.f32 0.0, %v1265
    %v1267 = vpop.f32.mrb[0].mxu0
    %1268 = vdwg.mxu0
    %1270 = vrot.lane.b32.xlu0 %v1193, 32
    %v1271 = vpop.permute.xlu0 %1270
    %v1272 = vsel %vm270, %v1271, 0
    %1274 = vmatprep.subr.mxu0 0.0
    %1275 = vmatpush1.msra.mxu0 %v262
    %1276 = vmatprep.subr.mxu0 0.0
    %1277 = vmatpush1.msra.mxu0 %v263
    %1278 = vmatprep.subr.mxu0 0.0
    %1279 = vmatpush1.msra.mxu0 %v264
    %1280 = vmatprep.subr.mxu0 0.0
    %1281 = vmatpush1.msra.mxu0 %v265
    %1282 = vmatprep.subr.mxu0 0.0
    %1283 = vmatpush1.msra.mxu0 0.0
    %1284 = vmatprep.subr.mxu0 0.0
    %1285 = vmatpush1.msra.mxu0 0.0
    %1286 = vmatprep.subr.mxu0 0.0
    %1287 = vmatpush1.msra.mxu0 0.0
    %1288 = vmatprep.subr.mxu0 0.0
    %1289 = vmatpush1.msra.mxu0 0.0
    %1290 = vmatprep.subr.mxu0 0.0
    %1291 = vmatpush1.msra.mxu0 0.0
    %1292 = vmatprep.subr.mxu0 0.0
    %1293 = vmatpush1.msra.mxu0 0.0
    %1294 = vmatprep.subr.mxu0 0.0
    %1295 = vmatpush1.msra.mxu0 0.0
    %1296 = vmatprep.subr.mxu0 0.0
    %1297 = vmatpush1.msra.mxu0 0.0
    %1298 = vmatprep.subr.mxu0 0.0
    %1299 = vmatpush1.msra.mxu0 0.0
    %1300 = vmatprep.subr.mxu0 0.0
    %1301 = vmatpush1.msra.mxu0 0.0
    %1302 = vmatprep.subr.mxu0 0.0
    %1303 = vmatpush1.msra.mxu0 0.0
    %1304 = vmatprep.subr.mxu0 0.0
    %1305 = vmatpush1.msra.mxu0 0.0
    %1306 = vmatprep.subr.mxu0 0.0
    %1307 = vmatpush1.msra.mxu0 0.0
    %1308 = vmatprep.subr.mxu0 0.0
    %1309 = vmatpush1.msra.mxu0 0.0
    %1310 = vmatprep.subr.mxu0 0.0
    %1311 = vmatpush1.msra.mxu0 0.0
    %1312 = vmatprep.subr.mxu0 0.0
    %1313 = vmatpush1.msra.mxu0 0.0
    %1314 = vmatprep.subr.mxu0 0.0
    %1315 = vmatpush1.msra.mxu0 0.0
    %1316 = vmatprep.subr.mxu0 0.0
    %1317 = vmatpush1.msra.mxu0 0.0
    %1318 = vmatprep.subr.mxu0 0.0
    %1319 = vmatpush1.msra.mxu0 0.0
    %1320 = vmatprep.subr.mxu0 0.0
    %1321 = vmatpush1.msra.mxu0 0.0
    %1322 = vmatprep.subr.mxu0 0.0
    %1323 = vmatpush1.msra.mxu0 0.0
    %1324 = vmatprep.subr.mxu0 0.0
    %1325 = vmatpush1.msra.mxu0 0.0
    %1326 = vmatprep.subr.mxu0 0.0
    %1327 = vmatpush1.msra.mxu0 0.0
    %1328 = vmatprep.subr.mxu0 0.0
    %1329 = vmatpush1.msra.mxu0 0.0
    %1330 = vmatprep.subr.mxu0 0.0
    %1331 = vmatpush1.msra.mxu0 0.0
    %1332 = vmatprep.subr.mxu0 0.0
    %1333 = vmatpush1.msra.mxu0 0.0
    %1334 = vmatprep.subr.mxu0 0.0
    %1335 = vmatpush1.msra.mxu0 0.0
    %1336 = vmatprep.subr.mxu0 0.0
    %1337 = vmatpush1.msra.mxu0 0.0
    %1338 = vmatprep.mubr.f32.mxu0 0.0
    %1339 = vmatmul.mubr.f32.gmra.mrb[0].mxu0 %v1272
    %v1340 = vpop.f32.mrb[0].mxu0
    %v1341 = vadd.f32 %v1266, %v1340
    %v1342 = vpop.f32.mrb[0].mxu0
    %1343 = vdwg.mxu0
    %v1344 = vadd.f32 %v1341, %v250
    %v1345 = vsub.f32 0.0, %v1344
    %v1346 = vmul.f32 %v1345, 1.442695
    %v1347 = vpow.pop %v1346
    %v1348 = vadd.f32 %v1347, 1.0
    %v1349 = vrcp.pop %v1348
    %v1350 = vtanh.pop %v1344
    %v1351 = vmul.f32 %v1349, %v1085
    %1353 = vrot.lane.b32.xlu0 %v1350, 64
    %v1354 = vpop.permute.xlu0 %1353
    %v1356 = vmul.f32 %v1349, %v1354
    %1358 = vrot.lane.b32.xlu0 %v1356, 32
    %v1359 = vpop.permute.xlu0 %1358
    %v1361 = vadd.f32 %v1351, %v1359
    %v1362 = vtanh.pop %v1361
    %1364 = vrot.lane.b32.xlu0 %v1362, 64
    %v1365 = vpop.permute.xlu0 %1364
    %v1367 = vmul.f32 %v1349, %v1365
    %v1368 = vmul.f32 %v1367, %v538
    %1370 = vrot.lane.b32.xlu0 %v1368, 32
    %v1371 = vpop.permute.xlu0 %1370
    %v1373 = vsel %vm270, %v1371, 0.0
    %1374 = vadd.xlane.f32.xlu0 %v1373
    %v1375 = vpop.xlane.xlu0 %1374
    %1376 = vmatprep.subr.mxu0 0.0
    %1377 = vmatpush1.msra.mxu0 %v258
    %1378 = vmatprep.subr.mxu0 0.0
    %1379 = vmatpush1.msra.mxu0 %v259
    %1380 = vmatprep.subr.mxu0 0.0
    %1381 = vmatpush1.msra.mxu0 %v260
    %1382 = vmatprep.subr.mxu0 0.0
    %1383 = vmatpush1.msra.mxu0 %v261
    %1384 = vmatprep.subr.mxu0 0.0
    %1385 = vmatpush1.msra.mxu0 0.0
    %1386 = vmatprep.subr.mxu0 0.0
    %1387 = vmatpush1.msra.mxu0 0.0
    %1388 = vmatprep.subr.mxu0 0.0
    %1389 = vmatpush1.msra.mxu0 0.0
    %1390 = vmatprep.subr.mxu0 0.0
    %1391 = vmatpush1.msra.mxu0 0.0
    %1392 = vmatprep.subr.mxu0 0.0
    %1393 = vmatpush1.msra.mxu0 0.0
    %1394 = vmatprep.subr.mxu0 0.0
    %1395 = vmatpush1.msra.mxu0 0.0
    %1396 = vmatprep.subr.mxu0 0.0
    %1397 = vmatpush1.msra.mxu0 0.0
    %1398 = vmatprep.subr.mxu0 0.0
    %1399 = vmatpush1.msra.mxu0 0.0
    %1400 = vmatprep.subr.mxu0 0.0
    %1401 = vmatpush1.msra.mxu0 0.0
    %1402 = vmatprep.subr.mxu0 0.0
    %1403 = vmatpush1.msra.mxu0 0.0
    %1404 = vmatprep.subr.mxu0 0.0
    %1405 = vmatpush1.msra.mxu0 0.0
    %1406 = vmatprep.subr.mxu0 0.0
    %1407 = vmatpush1.msra.mxu0 0.0
    %1408 = vmatprep.subr.mxu0 0.0
    %1409 = vmatpush1.msra.mxu0 0.0
    %1410 = vmatprep.subr.mxu0 0.0
    %1411 = vmatpush1.msra.mxu0 0.0
    %1412 = vmatprep.subr.mxu0 0.0
    %1413 = vmatpush1.msra.mxu0 0.0
    %1414 = vmatprep.subr.mxu0 0.0
    %1415 = vmatpush1.msra.mxu0 0.0
    %1416 = vmatprep.subr.mxu0 0.0
    %1417 = vmatpush1.msra.mxu0 0.0
    %1418 = vmatprep.subr.mxu0 0.0
    %1419 = vmatpush1.msra.mxu0 0.0
    %1420 = vmatprep.subr.mxu0 0.0
    %1421 = vmatpush1.msra.mxu0 0.0
    %1422 = vmatprep.subr.mxu0 0.0
    %1423 = vmatpush1.msra.mxu0 0.0
    %1424 = vmatprep.subr.mxu0 0.0
    %1425 = vmatpush1.msra.mxu0 0.0
    %1426 = vmatprep.subr.mxu0 0.0
    %1427 = vmatpush1.msra.mxu0 0.0
    %1428 = vmatprep.subr.mxu0 0.0
    %1429 = vmatpush1.msra.mxu0 0.0
    %1430 = vmatprep.subr.mxu0 0.0
    %1431 = vmatpush1.msra.mxu0 0.0
    %1432 = vmatprep.subr.mxu0 0.0
    %1433 = vmatpush1.msra.mxu0 0.0
    %1434 = vmatprep.subr.mxu0 0.0
    %1435 = vmatpush1.msra.mxu0 0.0
    %1436 = vmatprep.subr.mxu0 0.0
    %1437 = vmatpush1.msra.mxu0 0.0
    %1438 = vmatprep.subr.mxu0 0.0
    %1439 = vmatpush1.msra.mxu0 0.0
    %1440 = vmatprep.mubr.f32.mxu0 0.0
    %1441 = vmatmul.mubr.f32.gmra.mrb[0].mxu0 %v1272
    %v1442 = vpop.f32.mrb[0].mxu0
    %v1443 = vadd.f32 0.0, %v1442
    %v1444 = vpop.f32.mrb[0].mxu0
    %1445 = vdwg.mxu0
    %v1446 = vadd.f32 %v227, %v1443
    %v1447 = vsub.f32 0.0, %v1446
    %v1448 = vmul.f32 %v1447, 1.442695
    %v1449 = vpow.pop %v1448
    %v1450 = vadd.f32 %v1449, 1.0
    %v1451 = vrcp.pop %v1450
    %v1452 = vtanh.pop %v1446
    %v1453 = vmul.f32 %v1451, %v1187
    %1455 = vrot.lane.b32.xlu0 %v1452, 64
    %v1456 = vpop.permute.xlu0 %1455
    %v1458 = vmul.f32 %v1451, %v1456
    %1460 = vrot.lane.b32.xlu0 %v1458, 32
    %v1461 = vpop.permute.xlu0 %1460
    %v1463 = vadd.f32 %v1453, %v1461
    %v1464 = vtanh.pop %v1463
    %1466 = vrot.lane.b32.xlu0 %v1464, 64
    %v1467 = vpop.permute.xlu0 %1466
    %v1469 = vmul.f32 %v1451, %v1467
    %1471 = vrot.lane.b32.xlu0 %v1367, 32
    %v1472 = vpop.permute.xlu0 %1471
    %v1473 = vsel %vm270, %v1472, 0
    %1475 = vmatprep.subr.mxu0 0.0
    %1476 = vmatpush1.msra.mxu0 %v266
    %1477 = vmatprep.subr.mxu0 0.0
    %1478 = vmatpush1.msra.mxu0 %v267
    %1479 = vmatprep.subr.mxu0 0.0
    %1480 = vmatpush1.msra.mxu0 %v268
    %1481 = vmatprep.subr.mxu0 0.0
    %1482 = vmatpush1.msra.mxu0 %v269
    %1483 = vmatprep.subr.mxu0 0.0
    %1484 = vmatpush1.msra.mxu0 0.0
    %1485 = vmatprep.subr.mxu0 0.0
    %1486 = vmatpush1.msra.mxu0 0.0
    %1487 = vmatprep.subr.mxu0 0.0
    %1488 = vmatpush1.msra.mxu0 0.0
    %1489 = vmatprep.subr.mxu0 0.0
    %1490 = vmatpush1.msra.mxu0 0.0
    %1491 = vmatprep.subr.mxu0 0.0
    %1492 = vmatpush1.msra.mxu0 0.0
    %1493 = vmatprep.subr.mxu0 0.0
    %1494 = vmatpush1.msra.mxu0 0.0
    %1495 = vmatprep.subr.mxu0 0.0
    %1496 = vmatpush1.msra.mxu0 0.0
    %1497 = vmatprep.subr.mxu0 0.0
    %1498 = vmatpush1.msra.mxu0 0.0
    %1499 = vmatprep.subr.mxu0 0.0
    %1500 = vmatpush1.msra.mxu0 0.0
    %1501 = vmatprep.subr.mxu0 0.0
    %1502 = vmatpush1.msra.mxu0 0.0
    %1503 = vmatprep.subr.mxu0 0.0
    %1504 = vmatpush1.msra.mxu0 0.0
    %1505 = vmatprep.subr.mxu0 0.0
    %1506 = vmatpush1.msra.mxu0 0.0
    %1507 = vmatprep.subr.mxu0 0.0
    %1508 = vmatpush1.msra.mxu0 0.0
    %1509 = vmatprep.subr.mxu0 0.0
    %1510 = vmatpush1.msra.mxu0 0.0
    %1511 = vmatprep.subr.mxu0 0.0
    %1512 = vmatpush1.msra.mxu0 0.0
    %1513 = vmatprep.subr.mxu0 0.0
    %1514 = vmatpush1.msra.mxu0 0.0
    %1515 = vmatprep.subr.mxu0 0.0
    %1516 = vmatpush1.msra.mxu0 0.0
    %1517 = vmatprep.subr.mxu0 0.0
    %1518 = vmatpush1.msra.mxu0 0.0
    %1519 = vmatprep.subr.mxu0 0.0
    %1520 = vmatpush1.msra.mxu0 0.0
    %1521 = vmatprep.subr.mxu0 0.0
    %1522 = vmatpush1.msra.mxu0 0.0
    %1523 = vmatprep.subr.mxu0 0.0
    %1524 = vmatpush1.msra.mxu0 0.0
    %1525 = vmatprep.subr.mxu0 0.0
    %1526 = vmatpush1.msra.mxu0 0.0
    %1527 = vmatprep.subr.mxu0 0.0
    %1528 = vmatpush1.msra.mxu0 0.0
    %1529 = vmatprep.subr.mxu0 0.0
    %1530 = vmatpush1.msra.mxu0 0.0
    %1531 = vmatprep.subr.mxu0 0.0
    %1532 = vmatpush1.msra.mxu0 0.0
    %1533 = vmatprep.subr.mxu0 0.0
    %1534 = vmatpush1.msra.mxu0 0.0
    %1535 = vmatprep.subr.mxu0 0.0
    %1536 = vmatpush1.msra.mxu0 0.0
    %1537 = vmatprep.subr.mxu0 0.0
    %1538 = vmatpush1.msra.mxu0 0.0
    %1539 = vmatprep.mubr.f32.mxu0 0.0
    %1540 = vmatmul.mubr.f32.gmra.mrb[0].mxu0 %v1473
    %v1541 = vpop.f32.mrb[0].mxu0
    %v1542 = vadd.f32 0.0, %v1541
    %v1543 = vpop.f32.mrb[0].mxu0
    %1544 = vdwg.mxu0
    %1546 = vrot.lane.b32.xlu0 %v1469, 32
    %v1547 = vpop.permute.xlu0 %1546
    %v1548 = vsel %vm270, %v1547, 0
    %1550 = vmatprep.subr.mxu0 0.0
    %1551 = vmatpush1.msra.mxu0 %v262
    %1552 = vmatprep.subr.mxu0 0.0
    %1553 = vmatpush1.msra.mxu0 %v263
    %1554 = vmatprep.subr.mxu0 0.0
    %1555 = vmatpush1.msra.mxu0 %v264
    %1556 = vmatprep.subr.mxu0 0.0
    %1557 = vmatpush1.msra.mxu0 %v265
    %1558 = vmatprep.subr.mxu0 0.0
    %1559 = vmatpush1.msra.mxu0 0.0
    %1560 = vmatprep.subr.mxu0 0.0
    %1561 = vmatpush1.msra.mxu0 0.0
    %1562 = vmatprep.subr.mxu0 0.0
    %1563 = vmatpush1.msra.mxu0 0.0
    %1564 = vmatprep.subr.mxu0 0.0
    %1565 = vmatpush1.msra.mxu0 0.0
    %1566 = vmatprep.subr.mxu0 0.0
    %1567 = vmatpush1.msra.mxu0 0.0
    %1568 = vmatprep.subr.mxu0 0.0
    %1569 = vmatpush1.msra.mxu0 0.0
    %1570 = vmatprep.subr.mxu0 0.0
    %1571 = vmatpush1.msra.mxu0 0.0
    %1572 = vmatprep.subr.mxu0 0.0
    %1573 = vmatpush1.msra.mxu0 0.0
    %1574 = vmatprep.subr.mxu0 0.0
    %1575 = vmatpush1.msra.mxu0 0.0
    %1576 = vmatprep.subr.mxu0 0.0
    %1577 = vmatpush1.msra.mxu0 0.0
    %1578 = vmatprep.subr.mxu0 0.0
    %1579 = vmatpush1.msra.mxu0 0.0
    %1580 = vmatprep.subr.mxu0 0.0
    %1581 = vmatpush1.msra.mxu0 0.0
    %1582 = vmatprep.subr.mxu0 0.0
    %1583 = vmatpush1.msra.mxu0 0.0
    %1584 = vmatprep.subr.mxu0 0.0
    %1585 = vmatpush1.msra.mxu0 0.0
    %1586 = vmatprep.subr.mxu0 0.0
    %1587 = vmatpush1.msra.mxu0 0.0
    %1588 = vmatprep.subr.mxu0 0.0
    %1589 = vmatpush1.msra.mxu0 0.0
    %1590 = vmatprep.subr.mxu0 0.0
    %1591 = vmatpush1.msra.mxu0 0.0
    %1592 = vmatprep.subr.mxu0 0.0
    %1593 = vmatpush1.msra.mxu0 0.0
    %1594 = vmatprep.subr.mxu0 0.0
    %1595 = vmatpush1.msra.mxu0 0.0
    %1596 = vmatprep.subr.mxu0 0.0
    %1597 = vmatpush1.msra.mxu0 0.0
    %1598 = vmatprep.subr.mxu0 0.0
    %1599 = vmatpush1.msra.mxu0 0.0
    %1600 = vmatprep.subr.mxu0 0.0
    %1601 = vmatpush1.msra.mxu0 0.0
    %1602 = vmatprep.subr.mxu0 0.0
    %1603 = vmatpush1.msra.mxu0 0.0
    %1604 = vmatprep.subr.mxu0 0.0
    %1605 = vmatpush1.msra.mxu0 0.0
    %1606 = vmatprep.subr.mxu0 0.0
    %1607 = vmatpush1.msra.mxu0 0.0
    %1608 = vmatprep.subr.mxu0 0.0
    %1609 = vmatpush1.msra.mxu0 0.0
    %1610 = vmatprep.subr.mxu0 0.0
    %1611 = vmatpush1.msra.mxu0 0.0
    %1612 = vmatprep.subr.mxu0 0.0
    %1613 = vmatpush1.msra.mxu0 0.0
    %1614 = vmatprep.mubr.f32.mxu0 0.0
    %1615 = vmatmul.mubr.f32.gmra.mrb[0].mxu0 %v1548
    %v1616 = vpop.f32.mrb[0].mxu0
    %v1617 = vadd.f32 %v1542, %v1616
    %v1618 = vpop.f32.mrb[0].mxu0
    %1619 = vdwg.mxu0
    %v1620 = vadd.f32 %v1617, %v250
    %v1621 = vsub.f32 0.0, %v1620
    %v1622 = vmul.f32 %v1621, 1.442695
    %v1623 = vpow.pop %v1622
    %v1624 = vadd.f32 %v1623, 1.0
    %v1625 = vrcp.pop %v1624
    %v1626 = vtanh.pop %v1620
    %v1627 = vmul.f32 %v1625, %v1361
    %1629 = vrot.lane.b32.xlu0 %v1626, 64
    %v1630 = vpop.permute.xlu0 %1629
    %v1632 = vmul.f32 %v1625, %v1630
    %1634 = vrot.lane.b32.xlu0 %v1632, 32
    %v1635 = vpop.permute.xlu0 %1634
    %v1637 = vadd.f32 %v1627, %v1635
    %v1638 = vtanh.pop %v1637
    %1640 = vrot.lane.b32.xlu0 %v1638, 64
    %v1641 = vpop.permute.xlu0 %1640
    %v1643 = vmul.f32 %v1625, %v1641
    %v1644 = vmul.f32 %v1643, %v538
    %1646 = vrot.lane.b32.xlu0 %v1644, 32
    %v1647 = vpop.permute.xlu0 %1646
    %v1649 = vsel %vm270, %v1647, 0.0
    %1650 = vadd.xlane.f32.xlu0 %v1649
    %v1651 = vpop.xlane.xlu0 %1650
    %1652 = vmatprep.subr.mxu0 0.0
    %1653 = vmatpush1.msra.mxu0 %v258
    %1654 = vmatprep.subr.mxu0 0.0
    %1655 = vmatpush1.msra.mxu0 %v259
    %1656 = vmatprep.subr.mxu0 0.0
    %1657 = vmatpush1.msra.mxu0 %v260
    %1658 = vmatprep.subr.mxu0 0.0
    %1659 = vmatpush1.msra.mxu0 %v261
    %1660 = vmatprep.subr.mxu0 0.0
    %1661 = vmatpush1.msra.mxu0 0.0
    %1662 = vmatprep.subr.mxu0 0.0
    %1663 = vmatpush1.msra.mxu0 0.0
    %1664 = vmatprep.subr.mxu0 0.0
    %1665 = vmatpush1.msra.mxu0 0.0
    %1666 = vmatprep.subr.mxu0 0.0
    %1667 = vmatpush1.msra.mxu0 0.0
    %1668 = vmatprep.subr.mxu0 0.0
    %1669 = vmatpush1.msra.mxu0 0.0
    %1670 = vmatprep.subr.mxu0 0.0
    %1671 = vmatpush1.msra.mxu0 0.0
    %1672 = vmatprep.subr.mxu0 0.0
    %1673 = vmatpush1.msra.mxu0 0.0
    %1674 = vmatprep.subr.mxu0 0.0
    %1675 = vmatpush1.msra.mxu0 0.0
    %1676 = vmatprep.subr.mxu0 0.0
    %1677 = vmatpush1.msra.mxu0 0.0
    %1678 = vmatprep.subr.mxu0 0.0
    %1679 = vmatpush1.msra.mxu0 0.0
    %1680 = vmatprep.subr.mxu0 0.0
    %1681 = vmatpush1.msra.mxu0 0.0
    %1682 = vmatprep.subr.mxu0 0.0
    %1683 = vmatpush1.msra.mxu0 0.0
    %1684 = vmatprep.subr.mxu0 0.0
    %1685 = vmatpush1.msra.mxu0 0.0
    %1686 = vmatprep.subr.mxu0 0.0
    %1687 = vmatpush1.msra.mxu0 0.0
    %1688 = vmatprep.subr.mxu0 0.0
    %1689 = vmatpush1.msra.mxu0 0.0
    %1690 = vmatprep.subr.mxu0 0.0
    %1691 = vmatpush1.msra.mxu0 0.0
    %1692 = vmatprep.subr.mxu0 0.0
    %1693 = vmatpush1.msra.mxu0 0.0
    %1694 = vmatprep.subr.mxu0 0.0
    %1695 = vmatpush1.msra.mxu0 0.0
    %1696 = vmatprep.subr.mxu0 0.0
    %1697 = vmatpush1.msra.mxu0 0.0
    %1698 = vmatprep.subr.mxu0 0.0
    %1699 = vmatpush1.msra.mxu0 0.0
    %1700 = vmatprep.subr.mxu0 0.0
    %1701 = vmatpush1.msra.mxu0 0.0
    %1702 = vmatprep.subr.mxu0 0.0
    %1703 = vmatpush1.msra.mxu0 0.0
    %1704 = vmatprep.subr.mxu0 0.0
    %1705 = vmatpush1.msra.mxu0 0.0
    %1706 = vmatprep.subr.mxu0 0.0
    %1707 = vmatpush1.msra.mxu0 0.0
    %1708 = vmatprep.subr.mxu0 0.0
    %1709 = vmatpush1.msra.mxu0 0.0
    %1710 = vmatprep.subr.mxu0 0.0
    %1711 = vmatpush1.msra.mxu0 0.0
    %1712 = vmatprep.subr.mxu0 0.0
    %1713 = vmatpush1.msra.mxu0 0.0
    %1714 = vmatprep.subr.mxu0 0.0
    %1715 = vmatpush1.msra.mxu0 0.0
    %1716 = vmatprep.mubr.f32.mxu0 0.0
    %1717 = vmatmul.mubr.f32.gmra.mrb[0].mxu0 %v1548
    %v1718 = vpop.f32.mrb[0].mxu0
    %v1719 = vadd.f32 0.0, %v1718
    %v1720 = vpop.f32.mrb[0].mxu0
    %1721 = vdwg.mxu0
    %v1722 = vadd.f32 %v232, %v1719
    %v1723 = vsub.f32 0.0, %v1722
    %v1724 = vmul.f32 %v1723, 1.442695
    %v1725 = vpow.pop %v1724
    %v1726 = vadd.f32 %v1725, 1.0
    %v1727 = vrcp.pop %v1726
    %v1728 = vtanh.pop %v1722
    %v1729 = vmul.f32 %v1727, %v1463
    %1731 = vrot.lane.b32.xlu0 %v1728, 64
    %v1732 = vpop.permute.xlu0 %1731
    %v1734 = vmul.f32 %v1727, %v1732
    %1736 = vrot.lane.b32.xlu0 %v1734, 32
    %v1737 = vpop.permute.xlu0 %1736
    %v1739 = vadd.f32 %v1729, %v1737
    %v1740 = vtanh.pop %v1739
    %1742 = vrot.lane.b32.xlu0 %v1740, 64
    %v1743 = vpop.permute.xlu0 %1742
    %v1745 = vmul.f32 %v1727, %v1743
    %1747 = vrot.lane.b32.xlu0 %v1643, 32
    %v1748 = vpop.permute.xlu0 %1747
    %v1749 = vsel %vm270, %v1748, 0
    %1751 = vmatprep.subr.mxu0 0.0
    %1752 = vmatpush1.msra.mxu0 %v266
    %1753 = vmatprep.subr.mxu0 0.0
    %1754 = vmatpush1.msra.mxu0 %v267
    %1755 = vmatprep.subr.mxu0 0.0
    %1756 = vmatpush1.msra.mxu0 %v268
    %1757 = vmatprep.subr.mxu0 0.0
    %1758 = vmatpush1.msra.mxu0 %v269
    %1759 = vmatprep.subr.mxu0 0.0
    %1760 = vmatpush1.msra.mxu0 0.0
    %1761 = vmatprep.subr.mxu0 0.0
    %1762 = vmatpush1.msra.mxu0 0.0
    %1763 = vmatprep.subr.mxu0 0.0
    %1764 = vmatpush1.msra.mxu0 0.0
    %1765 = vmatprep.subr.mxu0 0.0
    %1766 = vmatpush1.msra.mxu0 0.0
    %1767 = vmatprep.subr.mxu0 0.0
    %1768 = vmatpush1.msra.mxu0 0.0
    %1769 = vmatprep.subr.mxu0 0.0
    %1770 = vmatpush1.msra.mxu0 0.0
    %1771 = vmatprep.subr.mxu0 0.0
    %1772 = vmatpush1.msra.mxu0 0.0
    %1773 = vmatprep.subr.mxu0 0.0
    %1774 = vmatpush1.msra.mxu0 0.0
    %1775 = vmatprep.subr.mxu0 0.0
    %1776 = vmatpush1.msra.mxu0 0.0
    %1777 = vmatprep.subr.mxu0 0.0
    %1778 = vmatpush1.msra.mxu0 0.0
    %1779 = vmatprep.subr.mxu0 0.0
    %1780 = vmatpush1.msra.mxu0 0.0
    %1781 = vmatprep.subr.mxu0 0.0
    %1782 = vmatpush1.msra.mxu0 0.0
    %1783 = vmatprep.subr.mxu0 0.0
    %1784 = vmatpush1.msra.mxu0 0.0
    %1785 = vmatprep.subr.mxu0 0.0
    %1786 = vmatpush1.msra.mxu0 0.0
    %1787 = vmatprep.subr.mxu0 0.0
    %1788 = vmatpush1.msra.mxu0 0.0
    %1789 = vmatprep.subr.mxu0 0.0
    %1790 = vmatpush1.msra.mxu0 0.0
    %1791 = vmatprep.subr.mxu0 0.0
    %1792 = vmatpush1.msra.mxu0 0.0
    %1793 = vmatprep.subr.mxu0 0.0
    %1794 = vmatpush1.msra.mxu0 0.0
    %1795 = vmatprep.subr.mxu0 0.0
    %1796 = vmatpush1.msra.mxu0 0.0
    %1797 = vmatprep.subr.mxu0 0.0
    %1798 = vmatpush1.msra.mxu0 0.0
    %1799 = vmatprep.subr.mxu0 0.0
    %1800 = vmatpush1.msra.mxu0 0.0
    %1801 = vmatprep.subr.mxu0 0.0
    %1802 = vmatpush1.msra.mxu0 0.0
    %1803 = vmatprep.subr.mxu0 0.0
    %1804 = vmatpush1.msra.mxu0 0.0
    %1805 = vmatprep.subr.mxu0 0.0
    %1806 = vmatpush1.msra.mxu0 0.0
    %1807 = vmatprep.subr.mxu0 0.0
    %1808 = vmatpush1.msra.mxu0 0.0
    %1809 = vmatprep.subr.mxu0 0.0
    %1810 = vmatpush1.msra.mxu0 0.0
    %1811 = vmatprep.subr.mxu0 0.0
    %1812 = vmatpush1.msra.mxu0 0.0
    %1813 = vmatprep.subr.mxu0 0.0
    %1814 = vmatpush1.msra.mxu0 0.0
    %1815 = vmatprep.mubr.f32.mxu0 0.0
    %1816 = vmatmul.mubr.f32.gmra.mrb[0].mxu0 %v1749
    %v1817 = vpop.f32.mrb[0].mxu0
    %v1818 = vadd.f32 0.0, %v1817
    %v1819 = vpop.f32.mrb[0].mxu0
    %1820 = vdwg.mxu0
    %1822 = vrot.lane.b32.xlu0 %v1745, 32
    %v1823 = vpop.permute.xlu0 %1822
    %v1824 = vsel %vm270, %v1823, 0
    %1826 = vmatprep.subr.mxu0 0.0
    %1827 = vmatpush1.msra.mxu0 %v262
    %1828 = vmatprep.subr.mxu0 0.0
    %1829 = vmatpush1.msra.mxu0 %v263
    %1830 = vmatprep.subr.mxu0 0.0
    %1831 = vmatpush1.msra.mxu0 %v264
    %1832 = vmatprep.subr.mxu0 0.0
    %1833 = vmatpush1.msra.mxu0 %v265
    %1834 = vmatprep.subr.mxu0 0.0
    %1835 = vmatpush1.msra.mxu0 0.0
    %1836 = vmatprep.subr.mxu0 0.0
    %1837 = vmatpush1.msra.mxu0 0.0
    %1838 = vmatprep.subr.mxu0 0.0
    %1839 = vmatpush1.msra.mxu0 0.0
    %1840 = vmatprep.subr.mxu0 0.0
    %1841 = vmatpush1.msra.mxu0 0.0
    %1842 = vmatprep.subr.mxu0 0.0
    %1843 = vmatpush1.msra.mxu0 0.0
    %1844 = vmatprep.subr.mxu0 0.0
    %1845 = vmatpush1.msra.mxu0 0.0
    %1846 = vmatprep.subr.mxu0 0.0
    %1847 = vmatpush1.msra.mxu0 0.0
    %1848 = vmatprep.subr.mxu0 0.0
    %1849 = vmatpush1.msra.mxu0 0.0
    %1850 = vmatprep.subr.mxu0 0.0
    %1851 = vmatpush1.msra.mxu0 0.0
    %1852 = vmatprep.subr.mxu0 0.0
    %1853 = vmatpush1.msra.mxu0 0.0
    %1854 = vmatprep.subr.mxu0 0.0
    %1855 = vmatpush1.msra.mxu0 0.0
    %1856 = vmatprep.subr.mxu0 0.0
    %1857 = vmatpush1.msra.mxu0 0.0
    %1858 = vmatprep.subr.mxu0 0.0
    %1859 = vmatpush1.msra.mxu0 0.0
    %1860 = vmatprep.subr.mxu0 0.0
    %1861 = vmatpush1.msra.mxu0 0.0
    %1862 = vmatprep.subr.mxu0 0.0
    %1863 = vmatpush1.msra.mxu0 0.0
    %1864 = vmatprep.subr.mxu0 0.0
    %1865 = vmatpush1.msra.mxu0 0.0
    %1866 = vmatprep.subr.mxu0 0.0
    %1867 = vmatpush1.msra.mxu0 0.0
    %1868 = vmatprep.subr.mxu0 0.0
    %1869 = vmatpush1.msra.mxu0 0.0
    %1870 = vmatprep.subr.mxu0 0.0
    %1871 = vmatpush1.msra.mxu0 0.0
    %1872 = vmatprep.subr.mxu0 0.0
    %1873 = vmatpush1.msra.mxu0 0.0
    %1874 = vmatprep.subr.mxu0 0.0
    %1875 = vmatpush1.msra.mxu0 0.0
    %1876 = vmatprep.subr.mxu0 0.0
    %1877 = vmatpush1.msra.mxu0 0.0
    %1878 = vmatprep.subr.mxu0 0.0
    %1879 = vmatpush1.msra.mxu0 0.0
    %1880 = vmatprep.subr.mxu0 0.0
    %1881 = vmatpush1.msra.mxu0 0.0
    %1882 = vmatprep.subr.mxu0 0.0
    %1883 = vmatpush1.msra.mxu0 0.0
    %1884 = vmatprep.subr.mxu0 0.0
    %1885 = vmatpush1.msra.mxu0 0.0
    %1886 = vmatprep.subr.mxu0 0.0
    %1887 = vmatpush1.msra.mxu0 0.0
    %1888 = vmatprep.subr.mxu0 0.0
    %1889 = vmatpush1.msra.mxu0 0.0
    %1890 = vmatprep.mubr.f32.mxu0 0.0
    %1891 = vmatmul.mubr.f32.gmra.mrb[0].mxu0 %v1824
    %v1892 = vpop.f32.mrb[0].mxu0
    %v1893 = vadd.f32 %v1818, %v1892
    %v1894 = vpop.f32.mrb[0].mxu0
    %1895 = vdwg.mxu0
    %v1896 = vadd.f32 %v1893, %v250
    %v1897 = vsub.f32 0.0, %v1896
    %v1898 = vmul.f32 %v1897, 1.442695
    %v1899 = vpow.pop %v1898
    %v1900 = vadd.f32 %v1899, 1.0
    %v1901 = vrcp.pop %v1900
    %v1902 = vtanh.pop %v1896
    %v1903 = vmul.f32 %v1901, %v1637
    %1905 = vrot.lane.b32.xlu0 %v1902, 64
    %v1906 = vpop.permute.xlu0 %1905
    %v1908 = vmul.f32 %v1901, %v1906
    %1910 = vrot.lane.b32.xlu0 %v1908, 32
    %v1911 = vpop.permute.xlu0 %1910
    %v1913 = vadd.f32 %v1903, %v1911
    %v1914 = vtanh.pop %v1913
    %1916 = vrot.lane.b32.xlu0 %v1914, 64
    %v1917 = vpop.permute.xlu0 %1916
    %v1919 = vmul.f32 %v1901, %v1917
    %v1920 = vmul.f32 %v1919, %v538
    %1922 = vrot.lane.b32.xlu0 %v1920, 32
    %v1923 = vpop.permute.xlu0 %1922
    %v1925 = vsel %vm270, %v1923, 0.0
    %1926 = vadd.xlane.f32.xlu0 %v1925
    %v1927 = vpop.xlane.xlu0 %1926
    %1928 = vmatprep.subr.mxu0 0.0
    %1929 = vmatpush1.msra.mxu0 %v258
    %1930 = vmatprep.subr.mxu0 0.0
    %1931 = vmatpush1.msra.mxu0 %v259
    %1932 = vmatprep.subr.mxu0 0.0
    %1933 = vmatpush1.msra.mxu0 %v260
    %1934 = vmatprep.subr.mxu0 0.0
    %1935 = vmatpush1.msra.mxu0 %v261
    %1936 = vmatprep.subr.mxu0 0.0
    %1937 = vmatpush1.msra.mxu0 0.0
    %1938 = vmatprep.subr.mxu0 0.0
    %1939 = vmatpush1.msra.mxu0 0.0
    %1940 = vmatprep.subr.mxu0 0.0
    %1941 = vmatpush1.msra.mxu0 0.0
    %1942 = vmatprep.subr.mxu0 0.0
    %1943 = vmatpush1.msra.mxu0 0.0
    %1944 = vmatprep.subr.mxu0 0.0
    %1945 = vmatpush1.msra.mxu0 0.0
    %1946 = vmatprep.subr.mxu0 0.0
    %1947 = vmatpush1.msra.mxu0 0.0
    %1948 = vmatprep.subr.mxu0 0.0
    %1949 = vmatpush1.msra.mxu0 0.0
    %1950 = vmatprep.subr.mxu0 0.0
    %1951 = vmatpush1.msra.mxu0 0.0
    %1952 = vmatprep.subr.mxu0 0.0
    %1953 = vmatpush1.msra.mxu0 0.0
    %1954 = vmatprep.subr.mxu0 0.0
    %1955 = vmatpush1.msra.mxu0 0.0
    %1956 = vmatprep.subr.mxu0 0.0
    %1957 = vmatpush1.msra.mxu0 0.0
    %1958 = vmatprep.subr.mxu0 0.0
    %1959 = vmatpush1.msra.mxu0 0.0
    %1960 = vmatprep.subr.mxu0 0.0
    %1961 = vmatpush1.msra.mxu0 0.0
    %1962 = vmatprep.subr.mxu0 0.0
    %1963 = vmatpush1.msra.mxu0 0.0
    %1964 = vmatprep.subr.mxu0 0.0
    %1965 = vmatpush1.msra.mxu0 0.0
    %1966 = vmatprep.subr.mxu0 0.0
    %1967 = vmatpush1.msra.mxu0 0.0
    %1968 = vmatprep.subr.mxu0 0.0
    %1969 = vmatpush1.msra.mxu0 0.0
    %1970 = vmatprep.subr.mxu0 0.0
    %1971 = vmatpush1.msra.mxu0 0.0
    %1972 = vmatprep.subr.mxu0 0.0
    %1973 = vmatpush1.msra.mxu0 0.0
    %1974 = vmatprep.subr.mxu0 0.0
    %1975 = vmatpush1.msra.mxu0 0.0
    %1976 = vmatprep.subr.mxu0 0.0
    %1977 = vmatpush1.msra.mxu0 0.0
    %1978 = vmatprep.subr.mxu0 0.0
    %1979 = vmatpush1.msra.mxu0 0.0
    %1980 = vmatprep.subr.mxu0 0.0
    %1981 = vmatpush1.msra.mxu0 0.0
    %1982 = vmatprep.subr.mxu0 0.0
    %1983 = vmatpush1.msra.mxu0 0.0
    %1984 = vmatprep.subr.mxu0 0.0
    %1985 = vmatpush1.msra.mxu0 0.0
    %1986 = vmatprep.subr.mxu0 0.0
    %1987 = vmatpush1.msra.mxu0 0.0
    %1988 = vmatprep.subr.mxu0 0.0
    %1989 = vmatpush1.msra.mxu0 0.0
    %1990 = vmatprep.subr.mxu0 0.0
    %1991 = vmatpush1.msra.mxu0 0.0
    %1992 = vmatprep.mubr.f32.mxu0 0.0
    %1993 = vmatmul.mubr.f32.gmra.mrb[0].mxu0 %v1824
    %v1994 = vpop.f32.mrb[0].mxu0
    %v1995 = vadd.f32 0.0, %v1994
    %v1996 = vpop.f32.mrb[0].mxu0
    %1997 = vdwg.mxu0
    %v1998 = vadd.f32 %v237, %v1995
    %v1999 = vsub.f32 0.0, %v1998
    %v2000 = vmul.f32 %v1999, 1.442695
    %v2001 = vpow.pop %v2000
    %v2002 = vadd.f32 %v2001, 1.0
    %v2003 = vrcp.pop %v2002
    %v2004 = vtanh.pop %v1998
    %v2005 = vmul.f32 %v2003, %v1739
    %2007 = vrot.lane.b32.xlu0 %v2004, 64
    %v2008 = vpop.permute.xlu0 %2007
    %v2010 = vmul.f32 %v2003, %v2008
    %2012 = vrot.lane.b32.xlu0 %v2010, 32
    %v2013 = vpop.permute.xlu0 %2012
    %v2015 = vadd.f32 %v2005, %v2013
    %v2016 = vtanh.pop %v2015
    %2018 = vrot.lane.b32.xlu0 %v2016, 64
    %v2019 = vpop.permute.xlu0 %2018
    %v2021 = vmul.f32 %v2003, %v2019
    %2023 = vrot.lane.b32.xlu0 %v1919, 32
    %v2024 = vpop.permute.xlu0 %2023
    %v2025 = vsel %vm270, %v2024, 0
    %2027 = vmatprep.subr.mxu0 0.0
    %2028 = vmatpush1.msra.mxu0 %v266
    %2029 = vmatprep.subr.mxu0 0.0
    %2030 = vmatpush1.msra.mxu0 %v267
    %2031 = vmatprep.subr.mxu0 0.0
    %2032 = vmatpush1.msra.mxu0 %v268
    %2033 = vmatprep.subr.mxu0 0.0
    %2034 = vmatpush1.msra.mxu0 %v269
    %2035 = vmatprep.subr.mxu0 0.0
    %2036 = vmatpush1.msra.mxu0 0.0
    %2037 = vmatprep.subr.mxu0 0.0
    %2038 = vmatpush1.msra.mxu0 0.0
    %2039 = vmatprep.subr.mxu0 0.0
    %2040 = vmatpush1.msra.mxu0 0.0
    %2041 = vmatprep.subr.mxu0 0.0
    %2042 = vmatpush1.msra.mxu0 0.0
    %2043 = vmatprep.subr.mxu0 0.0
    %2044 = vmatpush1.msra.mxu0 0.0
    %2045 = vmatprep.subr.mxu0 0.0
    %2046 = vmatpush1.msra.mxu0 0.0
    %2047 = vmatprep.subr.mxu0 0.0
    %2048 = vmatpush1.msra.mxu0 0.0
    %2049 = vmatprep.subr.mxu0 0.0
    %2050 = vmatpush1.msra.mxu0 0.0
    %2051 = vmatprep.subr.mxu0 0.0
    %2052 = vmatpush1.msra.mxu0 0.0
    %2053 = vmatprep.subr.mxu0 0.0
    %2054 = vmatpush1.msra.mxu0 0.0
    %2055 = vmatprep.subr.mxu0 0.0
    %2056 = vmatpush1.msra.mxu0 0.0
    %2057 = vmatprep.subr.mxu0 0.0
    %2058 = vmatpush1.msra.mxu0 0.0
    %2059 = vmatprep.subr.mxu0 0.0
    %2060 = vmatpush1.msra.mxu0 0.0
    %2061 = vmatprep.subr.mxu0 0.0
    %2062 = vmatpush1.msra.mxu0 0.0
    %2063 = vmatprep.subr.mxu0 0.0
    %2064 = vmatpush1.msra.mxu0 0.0
    %2065 = vmatprep.subr.mxu0 0.0
    %2066 = vmatpush1.msra.mxu0 0.0
    %2067 = vmatprep.subr.mxu0 0.0
    %2068 = vmatpush1.msra.mxu0 0.0
    %2069 = vmatprep.subr.mxu0 0.0
    %2070 = vmatpush1.msra.mxu0 0.0
    %2071 = vmatprep.subr.mxu0 0.0
    %2072 = vmatpush1.msra.mxu0 0.0
    %2073 = vmatprep.subr.mxu0 0.0
    %2074 = vmatpush1.msra.mxu0 0.0
    %2075 = vmatprep.subr.mxu0 0.0
    %2076 = vmatpush1.msra.mxu0 0.0
    %2077 = vmatprep.subr.mxu0 0.0
    %2078 = vmatpush1.msra.mxu0 0.0
    %2079 = vmatprep.subr.mxu0 0.0
    %2080 = vmatpush1.msra.mxu0 0.0
    %2081 = vmatprep.subr.mxu0 0.0
    %2082 = vmatpush1.msra.mxu0 0.0
    %2083 = vmatprep.subr.mxu0 0.0
    %2084 = vmatpush1.msra.mxu0 0.0
    %2085 = vmatprep.subr.mxu0 0.0
    %2086 = vmatpush1.msra.mxu0 0.0
    %2087 = vmatprep.subr.mxu0 0.0
    %2088 = vmatpush1.msra.mxu0 0.0
    %2089 = vmatprep.subr.mxu0 0.0
    %2090 = vmatpush1.msra.mxu0 0.0
    %2091 = vmatprep.mubr.f32.mxu0 0.0
    %2092 = vmatmul.mubr.f32.gmra.mrb[0].mxu0 %v2025
    %v2093 = vpop.f32.mrb[0].mxu0
    %v2094 = vadd.f32 0.0, %v2093
    %v2095 = vpop.f32.mrb[0].mxu0
    %2096 = vdwg.mxu0
    %2098 = vrot.lane.b32.xlu0 %v2021, 32
    %v2099 = vpop.permute.xlu0 %2098
    %v2100 = vsel %vm270, %v2099, 0
    %2102 = vmatprep.subr.mxu0 0.0
    %2103 = vmatpush1.msra.mxu0 %v262
    %2104 = vmatprep.subr.mxu0 0.0
    %2105 = vmatpush1.msra.mxu0 %v263
    %2106 = vmatprep.subr.mxu0 0.0
    %2107 = vmatpush1.msra.mxu0 %v264
    %2108 = vmatprep.subr.mxu0 0.0
    %2109 = vmatpush1.msra.mxu0 %v265
    %2110 = vmatprep.subr.mxu0 0.0
    %2111 = vmatpush1.msra.mxu0 0.0
    %2112 = vmatprep.subr.mxu0 0.0
    %2113 = vmatpush1.msra.mxu0 0.0
    %2114 = vmatprep.subr.mxu0 0.0
    %2115 = vmatpush1.msra.mxu0 0.0
    %2116 = vmatprep.subr.mxu0 0.0
    %2117 = vmatpush1.msra.mxu0 0.0
    %2118 = vmatprep.subr.mxu0 0.0
    %2119 = vmatpush1.msra.mxu0 0.0
    %2120 = vmatprep.subr.mxu0 0.0
    %2121 = vmatpush1.msra.mxu0 0.0
    %2122 = vmatprep.subr.mxu0 0.0
    %2123 = vmatpush1.msra.mxu0 0.0
    %2124 = vmatprep.subr.mxu0 0.0
    %2125 = vmatpush1.msra.mxu0 0.0
    %2126 = vmatprep.subr.mxu0 0.0
    %2127 = vmatpush1.msra.mxu0 0.0
    %2128 = vmatprep.subr.mxu0 0.0
    %2129 = vmatpush1.msra.mxu0 0.0
    %2130 = vmatprep.subr.mxu0 0.0
    %2131 = vmatpush1.msra.mxu0 0.0
    %2132 = vmatprep.subr.mxu0 0.0
    %2133 = vmatpush1.msra.mxu0 0.0
    %2134 = vmatprep.subr.mxu0 0.0
    %2135 = vmatpush1.msra.mxu0 0.0
    %2136 = vmatprep.subr.mxu0 0.0
    %2137 = vmatpush1.msra.mxu0 0.0
    %2138 = vmatprep.subr.mxu0 0.0
    %2139 = vmatpush1.msra.mxu0 0.0
    %2140 = vmatprep.subr.mxu0 0.0
    %2141 = vmatpush1.msra.mxu0 0.0
    %2142 = vmatprep.subr.mxu0 0.0
    %2143 = vmatpush1.msra.mxu0 0.0
    %2144 = vmatprep.subr.mxu0 0.0
    %2145 = vmatpush1.msra.mxu0 0.0
    %2146 = vmatprep.subr.mxu0 0.0
    %2147 = vmatpush1.msra.mxu0 0.0
    %2148 = vmatprep.subr.mxu0 0.0
    %2149 = vmatpush1.msra.mxu0 0.0
    %2150 = vmatprep.subr.mxu0 0.0
    %2151 = vmatpush1.msra.mxu0 0.0
    %2152 = vmatprep.subr.mxu0 0.0
    %2153 = vmatpush1.msra.mxu0 0.0
    %2154 = vmatprep.subr.mxu0 0.0
    %2155 = vmatpush1.msra.mxu0 0.0
    %2156 = vmatprep.subr.mxu0 0.0
    %2157 = vmatpush1.msra.mxu0 0.0
    %2158 = vmatprep.subr.mxu0 0.0
    %2159 = vmatpush1.msra.mxu0 0.0
    %2160 = vmatprep.subr.mxu0 0.0
    %2161 = vmatpush1.msra.mxu0 0.0
    %2162 = vmatprep.subr.mxu0 0.0
    %2163 = vmatpush1.msra.mxu0 0.0
    %2164 = vmatprep.subr.mxu0 0.0
    %2165 = vmatpush1.msra.mxu0 0.0
    %2166 = vmatprep.mubr.f32.mxu0 0.0
    %2167 = vmatmul.mubr.f32.gmra.mrb[0].mxu0 %v2100
    %v2168 = vpop.f32.mrb[0].mxu0
    %v2169 = vadd.f32 %v2094, %v2168
    %v2170 = vpop.f32.mrb[0].mxu0
    %2171 = vdwg.mxu0
    %v2172 = vadd.f32 %v2169, %v250
    %v2173 = vsub.f32 0.0, %v2172
    %v2174 = vmul.f32 %v2173, 1.442695
    %v2175 = vpow.pop %v2174
    %v2176 = vadd.f32 %v2175, 1.0
    %v2177 = vrcp.pop %v2176
    %v2178 = vtanh.pop %v2172
    %v2179 = vmul.f32 %v2177, %v1913
    %2181 = vrot.lane.b32.xlu0 %v2178, 64
    %v2182 = vpop.permute.xlu0 %2181
    %v2184 = vmul.f32 %v2177, %v2182
    %2186 = vrot.lane.b32.xlu0 %v2184, 32
    %v2187 = vpop.permute.xlu0 %2186
    %v2189 = vadd.f32 %v2179, %v2187
    %v2190 = vtanh.pop %v2189
    %2192 = vrot.lane.b32.xlu0 %v2190, 64
    %v2193 = vpop.permute.xlu0 %2192
    %v2195 = vmul.f32 %v2177, %v2193
    %v2196 = vmul.f32 %v2195, %v538
    %2198 = vrot.lane.b32.xlu0 %v2196, 32
    %v2199 = vpop.permute.xlu0 %2198
    %v2201 = vsel %vm270, %v2199, 0.0
    %2202 = vadd.xlane.f32.xlu0 %v2201
    %v2203 = vpop.xlane.xlu0 %2202
    %2204 = vmatprep.subr.mxu0 0.0
    %2205 = vmatpush1.msra.mxu0 %v258
    %2206 = vmatprep.subr.mxu0 0.0
    %2207 = vmatpush1.msra.mxu0 %v259
    %2208 = vmatprep.subr.mxu0 0.0
    %2209 = vmatpush1.msra.mxu0 %v260
    %2210 = vmatprep.subr.mxu0 0.0
    %2211 = vmatpush1.msra.mxu0 %v261
    %2212 = vmatprep.subr.mxu0 0.0
    %2213 = vmatpush1.msra.mxu0 0.0
    %2214 = vmatprep.subr.mxu0 0.0
    %2215 = vmatpush1.msra.mxu0 0.0
    %2216 = vmatprep.subr.mxu0 0.0
    %2217 = vmatpush1.msra.mxu0 0.0
    %2218 = vmatprep.subr.mxu0 0.0
    %2219 = vmatpush1.msra.mxu0 0.0
    %2220 = vmatprep.subr.mxu0 0.0
    %2221 = vmatpush1.msra.mxu0 0.0
    %2222 = vmatprep.subr.mxu0 0.0
    %2223 = vmatpush1.msra.mxu0 0.0
    %2224 = vmatprep.subr.mxu0 0.0
    %2225 = vmatpush1.msra.mxu0 0.0
    %2226 = vmatprep.subr.mxu0 0.0
    %2227 = vmatpush1.msra.mxu0 0.0
    %2228 = vmatprep.subr.mxu0 0.0
    %2229 = vmatpush1.msra.mxu0 0.0
    %2230 = vmatprep.subr.mxu0 0.0
    %2231 = vmatpush1.msra.mxu0 0.0
    %2232 = vmatprep.subr.mxu0 0.0
    %2233 = vmatpush1.msra.mxu0 0.0
    %2234 = vmatprep.subr.mxu0 0.0
    %2235 = vmatpush1.msra.mxu0 0.0
    %2236 = vmatprep.subr.mxu0 0.0
    %2237 = vmatpush1.msra.mxu0 0.0
    %2238 = vmatprep.subr.mxu0 0.0
    %2239 = vmatpush1.msra.mxu0 0.0
    %2240 = vmatprep.subr.mxu0 0.0
    %2241 = vmatpush1.msra.mxu0 0.0
    %2242 = vmatprep.subr.mxu0 0.0
    %2243 = vmatpush1.msra.mxu0 0.0
    %2244 = vmatprep.subr.mxu0 0.0
    %2245 = vmatpush1.msra.mxu0 0.0
    %2246 = vmatprep.subr.mxu0 0.0
    %2247 = vmatpush1.msra.mxu0 0.0
    %2248 = vmatprep.subr.mxu0 0.0
    %2249 = vmatpush1.msra.mxu0 0.0
    %2250 = vmatprep.subr.mxu0 0.0
    %2251 = vmatpush1.msra.mxu0 0.0
    %2252 = vmatprep.subr.mxu0 0.0
    %2253 = vmatpush1.msra.mxu0 0.0
    %2254 = vmatprep.subr.mxu0 0.0
    %2255 = vmatpush1.msra.mxu0 0.0
    %2256 = vmatprep.subr.mxu0 0.0
    %2257 = vmatpush1.msra.mxu0 0.0
    %2258 = vmatprep.subr.mxu0 0.0
    %2259 = vmatpush1.msra.mxu0 0.0
    %2260 = vmatprep.subr.mxu0 0.0
    %2261 = vmatpush1.msra.mxu0 0.0
    %2262 = vmatprep.subr.mxu0 0.0
    %2263 = vmatpush1.msra.mxu0 0.0
    %2264 = vmatprep.subr.mxu0 0.0
    %2265 = vmatpush1.msra.mxu0 0.0
    %2266 = vmatprep.subr.mxu0 0.0
    %2267 = vmatpush1.msra.mxu0 0.0
    %2268 = vmatprep.mubr.f32.mxu0 0.0
    %2269 = vmatmul.mubr.f32.gmra.mrb[0].mxu0 %v2100
    %v2270 = vpop.f32.mrb[0].mxu0
    %v2271 = vadd.f32 0.0, %v2270
    %v2272 = vpop.f32.mrb[0].mxu0
    %2273 = vdwg.mxu0
    %v2274 = vadd.f32 %v242, %v2271
    %v2275 = vsub.f32 0.0, %v2274
    %v2276 = vmul.f32 %v2275, 1.442695
    %v2277 = vpow.pop %v2276
    %v2278 = vadd.f32 %v2277, 1.0
    %v2279 = vrcp.pop %v2278
    %v2280 = vtanh.pop %v2274
    %v2281 = vmul.f32 %v2279, %v2015
    %2283 = vrot.lane.b32.xlu0 %v2280, 64
    %v2284 = vpop.permute.xlu0 %2283
    %v2286 = vmul.f32 %v2279, %v2284
    %2288 = vrot.lane.b32.xlu0 %v2286, 32
    %v2289 = vpop.permute.xlu0 %2288
    %v2291 = vadd.f32 %v2281, %v2289
    %v2292 = vtanh.pop %v2291
    %2294 = vrot.lane.b32.xlu0 %v2292, 64
    %v2295 = vpop.permute.xlu0 %2294
    %v2297 = vmul.f32 %v2279, %v2295
    %2299 = vrot.lane.b32.xlu0 %v2195, 32
    %v2300 = vpop.permute.xlu0 %2299
    %v2301 = vsel %vm270, %v2300, 0
    %2303 = vmatprep.subr.mxu0 0.0
    %2304 = vmatpush1.msra.mxu0 %v266
    %2305 = vmatprep.subr.mxu0 0.0
    %2306 = vmatpush1.msra.mxu0 %v267
    %2307 = vmatprep.subr.mxu0 0.0
    %2308 = vmatpush1.msra.mxu0 %v268
    %2309 = vmatprep.subr.mxu0 0.0
    %2310 = vmatpush1.msra.mxu0 %v269
    %2311 = vmatprep.subr.mxu0 0.0
    %2312 = vmatpush1.msra.mxu0 0.0
    %2313 = vmatprep.subr.mxu0 0.0
    %2314 = vmatpush1.msra.mxu0 0.0
    %2315 = vmatprep.subr.mxu0 0.0
    %2316 = vmatpush1.msra.mxu0 0.0
    %2317 = vmatprep.subr.mxu0 0.0
    %2318 = vmatpush1.msra.mxu0 0.0
    %2319 = vmatprep.subr.mxu0 0.0
    %2320 = vmatpush1.msra.mxu0 0.0
    %2321 = vmatprep.subr.mxu0 0.0
    %2322 = vmatpush1.msra.mxu0 0.0
    %2323 = vmatprep.subr.mxu0 0.0
    %2324 = vmatpush1.msra.mxu0 0.0
    %2325 = vmatprep.subr.mxu0 0.0
    %2326 = vmatpush1.msra.mxu0 0.0
    %2327 = vmatprep.subr.mxu0 0.0
    %2328 = vmatpush1.msra.mxu0 0.0
    %2329 = vmatprep.subr.mxu0 0.0
    %2330 = vmatpush1.msra.mxu0 0.0
    %2331 = vmatprep.subr.mxu0 0.0
    %2332 = vmatpush1.msra.mxu0 0.0
    %2333 = vmatprep.subr.mxu0 0.0
    %2334 = vmatpush1.msra.mxu0 0.0
    %2335 = vmatprep.subr.mxu0 0.0
    %2336 = vmatpush1.msra.mxu0 0.0
    %2337 = vmatprep.subr.mxu0 0.0
    %2338 = vmatpush1.msra.mxu0 0.0
    %2339 = vmatprep.subr.mxu0 0.0
    %2340 = vmatpush1.msra.mxu0 0.0
    %2341 = vmatprep.subr.mxu0 0.0
    %2342 = vmatpush1.msra.mxu0 0.0
    %2343 = vmatprep.subr.mxu0 0.0
    %2344 = vmatpush1.msra.mxu0 0.0
    %2345 = vmatprep.subr.mxu0 0.0
    %2346 = vmatpush1.msra.mxu0 0.0
    %2347 = vmatprep.subr.mxu0 0.0
    %2348 = vmatpush1.msra.mxu0 0.0
    %2349 = vmatprep.subr.mxu0 0.0
    %2350 = vmatpush1.msra.mxu0 0.0
    %2351 = vmatprep.subr.mxu0 0.0
    %2352 = vmatpush1.msra.mxu0 0.0
    %2353 = vmatprep.subr.mxu0 0.0
    %2354 = vmatpush1.msra.mxu0 0.0
    %2355 = vmatprep.subr.mxu0 0.0
    %2356 = vmatpush1.msra.mxu0 0.0
    %2357 = vmatprep.subr.mxu0 0.0
    %2358 = vmatpush1.msra.mxu0 0.0
    %2359 = vmatprep.subr.mxu0 0.0
    %2360 = vmatpush1.msra.mxu0 0.0
    %2361 = vmatprep.subr.mxu0 0.0
    %2362 = vmatpush1.msra.mxu0 0.0
    %2363 = vmatprep.subr.mxu0 0.0
    %2364 = vmatpush1.msra.mxu0 0.0
    %2365 = vmatprep.subr.mxu0 0.0
    %2366 = vmatpush1.msra.mxu0 0.0
    %2367 = vmatprep.mubr.f32.mxu0 0.0
    %2368 = vmatmul.mubr.f32.gmra.mrb[0].mxu0 %v2301
    %v2369 = vpop.f32.mrb[0].mxu0
    %v2370 = vadd.f32 0.0, %v2369
    %v2371 = vpop.f32.mrb[0].mxu0
    %2372 = vdwg.mxu0
    %2374 = vrot.lane.b32.xlu0 %v2297, 32
    %v2375 = vpop.permute.xlu0 %2374
    %v2376 = vsel %vm270, %v2375, 0
    %2378 = vmatprep.subr.mxu0 0.0
    %2379 = vmatpush1.msra.mxu0 %v262
    %2380 = vmatprep.subr.mxu0 0.0
    %2381 = vmatpush1.msra.mxu0 %v263
    %2382 = vmatprep.subr.mxu0 0.0
    %2383 = vmatpush1.msra.mxu0 %v264
    %2384 = vmatprep.subr.mxu0 0.0
    %2385 = vmatpush1.msra.mxu0 %v265
    %2386 = vmatprep.subr.mxu0 0.0
    %2387 = vmatpush1.msra.mxu0 0.0
    %2388 = vmatprep.subr.mxu0 0.0
    %2389 = vmatpush1.msra.mxu0 0.0
    %2390 = vmatprep.subr.mxu0 0.0
    %2391 = vmatpush1.msra.mxu0 0.0
    %2392 = vmatprep.subr.mxu0 0.0
    %2393 = vmatpush1.msra.mxu0 0.0
    %2394 = vmatprep.subr.mxu0 0.0
    %2395 = vmatpush1.msra.mxu0 0.0
    %2396 = vmatprep.subr.mxu0 0.0
    %2397 = vmatpush1.msra.mxu0 0.0
    %2398 = vmatprep.subr.mxu0 0.0
    %2399 = vmatpush1.msra.mxu0 0.0
    %2400 = vmatprep.subr.mxu0 0.0
    %2401 = vmatpush1.msra.mxu0 0.0
    %2402 = vmatprep.subr.mxu0 0.0
    %2403 = vmatpush1.msra.mxu0 0.0
    %2404 = vmatprep.subr.mxu0 0.0
    %2405 = vmatpush1.msra.mxu0 0.0
    %2406 = vmatprep.subr.mxu0 0.0
    %2407 = vmatpush1.msra.mxu0 0.0
    %2408 = vmatprep.subr.mxu0 0.0
    %2409 = vmatpush1.msra.mxu0 0.0
    %2410 = vmatprep.subr.mxu0 0.0
    %2411 = vmatpush1.msra.mxu0 0.0
    %2412 = vmatprep.subr.mxu0 0.0
    %2413 = vmatpush1.msra.mxu0 0.0
    %2414 = vmatprep.subr.mxu0 0.0
    %2415 = vmatpush1.msra.mxu0 0.0
    %2416 = vmatprep.subr.mxu0 0.0
    %2417 = vmatpush1.msra.mxu0 0.0
    %2418 = vmatprep.subr.mxu0 0.0
    %2419 = vmatpush1.msra.mxu0 0.0
    %2420 = vmatprep.subr.mxu0 0.0
    %2421 = vmatpush1.msra.mxu0 0.0
    %2422 = vmatprep.subr.mxu0 0.0
    %2423 = vmatpush1.msra.mxu0 0.0
    %2424 = vmatprep.subr.mxu0 0.0
    %2425 = vmatpush1.msra.mxu0 0.0
    %2426 = vmatprep.subr.mxu0 0.0
    %2427 = vmatpush1.msra.mxu0 0.0
    %2428 = vmatprep.subr.mxu0 0.0
    %2429 = vmatpush1.msra.mxu0 0.0
    %2430 = vmatprep.subr.mxu0 0.0
    %2431 = vmatpush1.msra.mxu0 0.0
    %2432 = vmatprep.subr.mxu0 0.0
    %2433 = vmatpush1.msra.mxu0 0.0
    %2434 = vmatprep.subr.mxu0 0.0
    %2435 = vmatpush1.msra.mxu0 0.0
    %2436 = vmatprep.subr.mxu0 0.0
    %2437 = vmatpush1.msra.mxu0 0.0
    %2438 = vmatprep.subr.mxu0 0.0
    %2439 = vmatpush1.msra.mxu0 0.0
    %2440 = vmatprep.subr.mxu0 0.0
    %2441 = vmatpush1.msra.mxu0 0.0
    %2442 = vmatprep.mubr.f32.mxu0 0.0
    %2443 = vmatmul.mubr.f32.gmra.mrb[0].mxu0 %v2376
    %v2444 = vpop.f32.mrb[0].mxu0
    %v2445 = vadd.f32 %v2370, %v2444
    %v2446 = vpop.f32.mrb[0].mxu0
    %2447 = vdwg.mxu0
    %v2448 = vadd.f32 %v2445, %v250
    %v2449 = vsub.f32 0.0, %v2448
    %v2450 = vmul.f32 %v2449, 1.442695
    %v2451 = vpow.pop %v2450
    %v2452 = vadd.f32 %v2451, 1.0
    %v2453 = vrcp.pop %v2452
    %v2454 = vtanh.pop %v2448
    %v2455 = vmul.f32 %v2453, %v2189
    %2457 = vrot.lane.b32.xlu0 %v2454, 64
    %v2458 = vpop.permute.xlu0 %2457
    %v2460 = vmul.f32 %v2453, %v2458
    %2462 = vrot.lane.b32.xlu0 %v2460, 32
    %v2463 = vpop.permute.xlu0 %2462
    %v2465 = vadd.f32 %v2455, %v2463
    %v2466 = vtanh.pop %v2465
    %2468 = vrot.lane.b32.xlu0 %v2466, 64
    %v2469 = vpop.permute.xlu0 %2468
    %v2471 = vmul.f32 %v2453, %v2469
    %v2472 = vmul.f32 %v2471, %v538
    %2474 = vrot.lane.b32.xlu0 %v2472, 32
    %v2475 = vpop.permute.xlu0 %2474
    %v2477 = vsel %vm270, %v2475, 0.0
    %2478 = vadd.xlane.f32.xlu0 %v2477
    %v2479 = vpop.xlane.xlu0 %2478
    %vm2480 = vcmask 7168
    %v2481 = vsel %vm2480, %v547, %v823
    %vm2482 = vcmask 15360
    %v2483 = vsel %vm2482, %v2481, %v1099
    %vm2484 = vcmask 23552
    %v2485 = vsel %vm2484, %v2483, %v1375
    %vm2486 = vcmask 31744
    %v2487 = vsel %vm2486, %v2485, %v1651
    %vm2488 = vcmask 39936
    %v2489 = vsel %vm2488, %v2487, %v1927
    %vm2490 = vcmask 48128
    %v2491 = vsel %vm2490, %v2489, %v2203
    %vm2492 = vcmask 56320
    %v2493 = vsel %vm2492, %v2491, %v2479
    %vm2494 = vcmask 64512
    %2495 = vst.msk [vmem:[#allocation11] sm:$0xff] %vm2494, %v2493
    // Predicated region
    $region54: #{tpu_custom_call.1} parent=1 // pred_check
      _
    $region55: #{tpu_custom_call.1} parent=1 // pred_check_branch
      %2497 = sbr.rel (0) target = $region57
    $region56: #{tpu_custom_call.1} parent=1 // pred_region
      %s2499 = ssub.s32 128, 128
      %2500 = vsyncadd [#allocation4], %s2499
      %s2502 = sshll.u32 [#allocation11], 4
      %s2503 = int_to_ptr.vmem [resolvable:$true] %s2502
      %2505 = dma.vmem_to_hbm [thread:$0]  %s2503, 128, %s8, [#allocation4]
    $region57: #{tpu_custom_call.1} parent=1 // pred_fallthru
      _
    // Predicated region
    $region58: #{tpu_custom_call.1} parent=1 // pred_check
      _
    $region59: #{tpu_custom_call.1} parent=1 // pred_check_branch
      %2507 = sbr.rel (0) target = $region61
    $region60: #{tpu_custom_call.1} parent=1 // pred_region
      %2508 = dma.done [#allocation4], 128
    $region61: #{tpu_custom_call.1} parent=1 // pred_fallthru
      _
    %2509 = vsyncpa [#allocation3], 1
    %2510 = vsyncpa [#allocation6], 1
    %2511 = vsyncpa [#allocation9], 1
    %2512 = vsyncpa [#allocation4], 1

</llo_original>
